<compile_context>
chip_gen: v7x
topology: tpu7x:2x2x1
jax: 0.10.0
libtpu: 0.0.40
codegen_flags: <defaults>
</compile_context>

<pallas_src>
import functools
import math

import jax
import jax.numpy as jnp
from jax.experimental import pallas as pl
from jax.experimental.pallas import tpu as pltpu


# ----------------------------------------------------------------------------- helpers
def _layernorm(x, gamma, beta, eps=1e-5):
    mu = jnp.mean(x, axis=-1, keepdims=True)
    var = jnp.mean(jnp.square(x - mu), axis=-1, keepdims=True)
    return (x - mu) * jax.lax.rsqrt(var + eps) * gamma + beta


def _erf(x):
    # Abramowitz & Stegun 7.1.26 rational approximation (|err| <= 1.5e-7).
    # Uses only exp / mul / add / select so it always lowers on Mosaic, while matching
    # PyTorch's exact (erf) GELU far better than the tanh approximation (~1e-3 off).
    p = 0.3275911
    a1, a2, a3, a4, a5 = 0.254829592, -0.284496736, 1.421413741, -1.453152027, 1.061405429
    sgn = jnp.where(x >= 0.0, 1.0, -1.0)
    ax = jnp.abs(x)
    t = 1.0 / (1.0 + p * ax)
    poly = ((((a5 * t + a4) * t + a3) * t + a2) * t + a1) * t
    return sgn * (1.0 - poly * jnp.exp(-(ax * ax)))


def _gelu_exact(x):
    return 0.5 * x * (1.0 + _erf(x * 0.7071067811865476))


# ----------------------------------------------------------------------------- kernel
def post_decoder_fused_kernel(
        x_ref, sa_ref, km_ref,
        ln1g_ref, ln1b_ref, wqkv_ref, bqkv_ref, wo_ref, bo_ref,
        ln2g_ref, ln2b_ref, w1_ref, b1_ref, w2_ref, b2_ref,
        gate_ref, lngg_ref, lngb_ref,
        o_ref, act_ref, bias_ref, *, n_head):
    """Whole PostDecoder: all encoder layers + gate/LN epilogue, one grid step per layer."""
    l = pl.program_id(1)
    n_layers = pl.num_programs(1)
    bn, S, d = act_ref.shape
    hd = d // n_head

    # -- one-time init: resident activations + layer-invariant attention bias -----------
    @pl.when(l == 0)
    def _():
        act_ref[...] = x_ref[...].astype(jnp.float32)
        sa_ok = sa_ref[...] > 0.5                       # (S, S)  block-diag same-group
        km_ok = km_ref[...] > 0.5                       # (bn, 1, S) key padding
        allowed = sa_ok[None, :, :] & km_ok             # (bn, S, S)
        bias_ref[...] = jnp.where(allowed, 0.0, -1e9).astype(jnp.float32)

    x = act_ref[...]                                    # (bn, S, d) f32
    bias = bias_ref[...]                                # (bn, S, S) f32

    # -- self attention (pre-LN); batch folded into the matmul M dim, fused QKV ----------
    xn = _layernorm(x, ln1g_ref[0], ln1b_ref[0])
    xn2d = xn.reshape(bn * S, d).astype(jnp.bfloat16)
    # 1/sqrt(hd) is already folded into the Q columns of wqkv / bqkv (wrapper).
    qkv = jnp.dot(xn2d, wqkv_ref[0], preferred_element_type=jnp.float32) + bqkv_ref[0]

    ctx_heads = []
    for h in range(n_head):                             # static unroll; each head batched over bn
        qh = qkv[:, h * hd:(h + 1) * hd].reshape(bn, S, hd).astype(jnp.bfloat16)
        kh = qkv[:, d + h * hd:d + (h + 1) * hd].reshape(bn, S, hd).astype(jnp.bfloat16)
        vh = qkv[:, 2 * d + h * hd:2 * d + (h + 1) * hd].reshape(bn, S, hd).astype(jnp.bfloat16)
        s = jnp.einsum('nqc,nkc->nqk', qh, kh, preferred_element_type=jnp.float32) + bias
        s = s - jnp.max(s, axis=-1, keepdims=True)
        p = jnp.exp(s)
        p = p * pl.reciprocal(jnp.sum(p, axis=-1, keepdims=True), approx=True)
        ctx_heads.append(jnp.einsum('nqk,nkc->nqc', p.astype(jnp.bfloat16), vh,
                                    preferred_element_type=jnp.float32))   # (bn, S, hd)
    # Single K=d output projection (accumulates inside the MXU) instead of per-head
    # K=hd matmuls + f32 adds.
    ctx2d = jnp.concatenate(ctx_heads, axis=-1).reshape(bn * S, d).astype(jnp.bfloat16)
    attn = jnp.dot(ctx2d, wo_ref[0], preferred_element_type=jnp.float32) + bo_ref[0]
    x = x + attn.reshape(bn, S, d)

    # -- feed forward (pre-LN), exact-erf GELU -------------------------------------------
    xn2 = _layernorm(x, ln2g_ref[0], ln2b_ref[0])
    h1 = jnp.dot(xn2.reshape(bn * S, d).astype(jnp.bfloat16), w1_ref[0],
                 preferred_element_type=jnp.float32) + b1_ref[0]
    h1 = _gelu_exact(h1)
    y = jnp.dot(h1.astype(jnp.bfloat16), w2_ref[0],
                preferred_element_type=jnp.float32) + b2_ref[0]
    out = x + y.reshape(bn, S, d)
    act_ref[...] = out                                  # carry to the next layer step

    # -- fused gate + LayerNorm epilogue on the last layer step --------------------------
    @pl.when(l == n_layers - 1)
    def _():
        orig = x_ref[...].astype(jnp.float32)           # original packed tokens (resident)
        gated = _layernorm(orig + gate_ref[0] * out, lngg_ref[0], lngb_ref[0])
        o_ref[...] = gated.astype(o_ref.dtype)


# ----------------------------------------------------------------------------- wrapper
def _default_batch_blocks(N):
    # v7x has 2 TensorCores per chip: split the batch across the "parallel" grid axis so
    # both cores work.  v5e/v6e are single-core: keep one block so the matmul M dimension
    # (bn*S) stays as large as possible and weights are streamed only once per layer.
    try:
        kind = jax.devices()[0].device_kind.lower()
    except Exception:
        return 1
    if ("v7" in kind or "7x" in kind) and N % 2 == 0:
        return 2
    return 1


def _vmem_estimate_bytes(bn, S, d, ffn):
    act = 4 * bn * S * d                                 # resident activations (scratch)
    bias = 4 * bn * S * S                                # resident attention bias (scratch)
    io = 2 * 2 * 4 * bn * S * d                          # in + out blocks, double-buffered
    wts = 2 * 2 * (3 * d * d + d * d + 2 * d * ffn)      # bf16 weights, double-buffered
    work = 4 * bn * S * (4 * d + ffn) + 3 * 4 * bn * S * S   # qkv / ctx / ffn hidden / scores
    return act + bias + io + wts + work


def post_decoder_forward(box_features, multiboxes_features, query_mask, params,
                         *, weight_dtype=jnp.bfloat16, batch_blocks=None):
    """Pallas implementation of PostDecoder.forward (no patch/cls cross-attention)."""
    N, Q, R, d = multiboxes_features.shape
    S = Q * (R + 1)
    layers = params["layers"]
    L = len(layers)
    n_head = params["n_head"]
    ffn = layers[0]["w1"].shape[1]
    scale = 1.0 / math.sqrt(d // n_head)

    # ---- glue: token packing + small masks (plain JAX) ---------------------------------
    box_tokens = jnp.concatenate(
        [box_features[:, :, None, :], multiboxes_features], axis=2
    ).reshape(N, S, d).astype(jnp.float32)

    # (S, S) block diagonal of (R+1)x(R+1) ones — layer/batch independent.
    sa = jnp.repeat(jnp.repeat(jnp.eye(Q, dtype=jnp.float32), R + 1, axis=0),
                    R + 1, axis=1)                                        # (S, S)
    # key-padding mask 'n q -> n (q r)', shaped (N, 1, S) so blocks stay (8,128)-legal
    # even when the batch is split across cores.
    key_mask = jnp.repeat(query_mask, R + 1, axis=1).astype(jnp.float32).reshape(N, 1, S)

    # ---- stack per-layer weights along a leading layer axis (streamed per grid step) ---
    def stack(name, dtype):
        return jnp.stack([lp[name] for lp in layers]).astype(dtype)

    # weight_dtype: bf16 default; on v7x jnp.float8_e4m3fn halves weight VMEM/HBM traffic
    # (accuracy decision — keep bf16 on v5e/v6e).
    wdt = weight_dtype
    # Fused QKV weight/bias with the softmax scale folded into the Q columns.
    wqkv = jnp.stack([jnp.concatenate([lp["wq"] * scale, lp["wk"], lp["wv"]], axis=1)
                      for lp in layers]).astype(wdt)                      # (L, d, 3d)
    bqkv = jnp.stack([jnp.concatenate([lp["bq"] * scale, lp["bk"], lp["bv"]], axis=1)
                      for lp in layers]).astype(jnp.float32)              # (L, 1, 3d)

    ln1g, ln1b = stack("ln1_g", jnp.float32), stack("ln1_b", jnp.float32)
    wo, bo = stack("wo", wdt), stack("bo", jnp.float32)
    ln2g, ln2b = stack("ln2_g", jnp.float32), stack("ln2_b", jnp.float32)
    w1, b1 = stack("w1", wdt), stack("b1", jnp.float32)
    w2, b2 = stack("w2", wdt), stack("b2", jnp.float32)

    nb = batch_blocks if batch_blocks is not None else _default_batch_blocks(N)
    if N % nb != 0:
        nb = 1
    bn = N // nb

    tok_spec = pl.BlockSpec((bn, S, d), lambda b, l: (b, 0, 0))
    sa_spec = pl.BlockSpec((S, S), lambda b, l: (0, 0))
    km_spec = pl.BlockSpec((bn, 1, S), lambda b, l: (b, 0, 0))

    def wspec(arr):  # stacked (L, x, y) weight, streamed along the layer axis
        return pl.BlockSpec((1,) + arr.shape[1:], lambda b, l: (l, 0, 0))

    const2d = lambda shape: pl.BlockSpec(shape, lambda b, l: (0, 0))

    # Explicit VMEM budget for large configs; cap at v7x's 64 MiB physical VMEM
    # (v5e/v6e have 128 MiB).  Leave the default for small footprints.
    est = _vmem_estimate_bytes(bn, S, d, ffn)
    vmem_limit = min(int(est * 1.5), 64 << 20) if est > (24 << 20) else None

    out = pl.pallas_call(
        functools.partial(post_decoder_fused_kernel, n_head=n_head),
        out_shape=jax.ShapeDtypeStruct((N, S, d), jnp.float32),
        grid=(nb, L),
        in_specs=[tok_spec, sa_spec, km_spec,
                  wspec(ln1g), wspec(ln1b), wspec(wqkv), wspec(bqkv), wspec(wo), wspec(bo),
                  wspec(ln2g), wspec(ln2b), wspec(w1), wspec(b1), wspec(w2), wspec(b2),
                  pl.BlockSpec(memory_space=pltpu.MemorySpace.SMEM),   # gate scalar
                  const2d((1, d)), const2d((1, d))],                   # ln_gate gamma/beta
        out_specs=pl.BlockSpec((bn, S, d), lambda b, l: (b, 0, 0)),
        scratch_shapes=[pltpu.VMEM((bn, S, d), jnp.float32),           # resident activations
                        pltpu.VMEM((bn, S, S), jnp.float32)],          # resident attn bias
        compiler_params=pltpu.CompilerParams(
            dimension_semantics=("parallel", "arbitrary"),
            vmem_limit_bytes=vmem_limit),
    )(box_tokens, sa, key_mask,
      ln1g, ln1b, wqkv, bqkv, wo, bo, ln2g, ln2b, w1, b1, w2, b2,
      params["gate"], params["ln_gate_g"], params["ln_gate_b"])

    gated = out.reshape(N, Q, R + 1, d)
    return gated[:, :, 0], gated[:, :, 1:]


# ----------------------------------------------------------------------------- setup
def init_layer_params(key, d, ffn):
    ks = jax.random.split(key, 6)
    w = lambda k, s: 0.02 * jax.random.normal(k, s, jnp.float32)
    z = lambda s: jnp.zeros(s, jnp.float32)
    return dict(
        ln1_g=jnp.ones((1, d), jnp.float32), ln1_b=z((1, d)),
        wq=w(ks[0], (d, d)), bq=z((1, d)),
        wk=w(ks[1], (d, d)), bk=z((1, d)),
        wv=w(ks[2], (d, d)), bv=z((1, d)),
        wo=w(ks[3], (d, d)), bo=z((1, d)),
        ln2_g=jnp.ones((1, d), jnp.float32), ln2_b=z((1, d)),
        w1=w(ks[4], (d, ffn)), b1=z((1, ffn)),
        w2=w(ks[5], (ffn, d)), b2=z((1, d)),
    )


if __name__ == "__main__":
    N, Q, R, d, n_head, n_layers = 2, 4, 3, 32, 4, 2
    ffn = 4 * d

    key = jax.random.PRNGKey(0)
    k_box, k_multi, k_p = jax.random.split(key, 3)
    box_features = jax.random.normal(k_box, (N, Q, d), jnp.float32)
    multiboxes_features = jax.random.normal(k_multi, (N, Q, R, d), jnp.float32)
    query_mask = jnp.array([[True, True, True, True],
                            [True, True, True, False]])

    layer_keys = jax.random.split(k_p, n_layers)
    params = dict(
        n_head=n_head,
        layers=[init_layer_params(layer_keys[i], d, ffn) for i in range(n_layers)],
        # nn.Parameter(torch.zeros(1)) in __init__; nonzero here so the synthetic test
        # exercises the full gate path.
        gate=jnp.array([0.25], jnp.float32),
        ln_gate_g=jnp.ones((1, d), jnp.float32),
        ln_gate_b=jnp.zeros((1, d), jnp.float32),
    )

    box_out, multi_out = post_decoder_forward(
        box_features, multiboxes_features, query_mask, params)
    jax.block_until_ready((box_out, multi_out))

    assert box_out.shape == (N, Q, d)
    assert multi_out.shape == (N, Q, R, d)
    assert bool(jnp.isfinite(box_out).all()) and bool(jnp.isfinite(multi_out).all())
    print("KERNEL_OK")
</pallas_src>

<mosaic_0001>
module attributes {stable_mosaic.version = 11 : i64} {
  func.func @post_decoder_fused_kernel(%arg0: i32, %arg1: i32, %arg2: memref<2x16x32xf32, #tpu.memory_space<vmem>>, %arg3: memref<16x16xf32, #tpu.memory_space<vmem>>, %arg4: memref<2x1x16xf32, #tpu.memory_space<vmem>>, %arg5: memref<1x1x32xf32, #tpu.memory_space<vmem>>, %arg6: memref<1x1x32xf32, #tpu.memory_space<vmem>>, %arg7: memref<1x32x96xbf16, #tpu.memory_space<vmem>>, %arg8: memref<1x1x96xf32, #tpu.memory_space<vmem>>, %arg9: memref<1x32x32xbf16, #tpu.memory_space<vmem>>, %arg10: memref<1x1x32xf32, #tpu.memory_space<vmem>>, %arg11: memref<1x1x32xf32, #tpu.memory_space<vmem>>, %arg12: memref<1x1x32xf32, #tpu.memory_space<vmem>>, %arg13: memref<1x32x128xbf16, #tpu.memory_space<vmem>>, %arg14: memref<1x1x128xf32, #tpu.memory_space<vmem>>, %arg15: memref<1x128x32xbf16, #tpu.memory_space<vmem>>, %arg16: memref<1x1x32xf32, #tpu.memory_space<vmem>>, %arg17: memref<1xf32, #tpu.memory_space<smem>>, %arg18: memref<1x32xf32, #tpu.memory_space<vmem>>, %arg19: memref<1x32xf32, #tpu.memory_space<vmem>>, %arg20: memref<2x16x32xf32, #tpu.memory_space<vmem>>, %arg21: memref<2x16x32xf32, #tpu.memory_space<vmem>>, %arg22: memref<2x16x16xf32, #tpu.memory_space<vmem>>) attributes {dimension_semantics = [#tpu.dimension_semantics<parallel>, #tpu.dimension_semantics<arbitrary>], iteration_bounds = array<i64: 1, 2>, scalar_prefetch = 0 : i64, scratch_operands = 2 : i64, tpu.core_type = #tpu.core_type<tc>, window_params = [{transform_indices = @transform_0, window_bounds = array<i64: 2, 16, 32>}, {pipeline_mode = #tpu.pipeline_mode<synchronous>, transform_indices = @transform_1, window_bounds = array<i64: 16, 16>}, {transform_indices = @transform_2, window_bounds = array<i64: 2, 1, 16>}, {transform_indices = @transform_3, window_bounds = array<i64: 1, 1, 32>}, {transform_indices = @transform_4, window_bounds = array<i64: 1, 1, 32>}, {transform_indices = @transform_5, window_bounds = array<i64: 1, 32, 96>}, {transform_indices = @transform_6, window_bounds = array<i64: 1, 1, 96>}, {transform_indices = @transform_7, window_bounds = array<i64: 1, 32, 32>}, {transform_indices = @transform_8, window_bounds = array<i64: 1, 1, 32>}, {transform_indices = @transform_9, window_bounds = array<i64: 1, 1, 32>}, {transform_indices = @transform_10, window_bounds = array<i64: 1, 1, 32>}, {transform_indices = @transform_11, window_bounds = array<i64: 1, 32, 128>}, {transform_indices = @transform_12, window_bounds = array<i64: 1, 1, 128>}, {transform_indices = @transform_13, window_bounds = array<i64: 1, 128, 32>}, {transform_indices = @transform_14, window_bounds = array<i64: 1, 1, 32>}, {transform_indices = @transform_15, window_bounds = array<i64: 1>}, {pipeline_mode = #tpu.pipeline_mode<synchronous>, transform_indices = @transform_16, window_bounds = array<i64: 1, 32>}, {pipeline_mode = #tpu.pipeline_mode<synchronous>, transform_indices = @transform_17, window_bounds = array<i64: 1, 32>}, {transform_indices = @transform_18, window_bounds = array<i64: 2, 16, 32>}]} {
    %c0_i32 = arith.constant 0 : i32
    %0 = arith.cmpi eq, %arg1, %c0_i32 : i32
    %1 = arith.extui %0 : i1 to i32
    %c0_i32_0 = arith.constant 0 : i32
    %2 = arith.cmpi ne, %1, %c0_i32_0 : i32
    scf.if %2 {
      %c0_91 = arith.constant 0 : index
      %c0_92 = arith.constant 0 : index
      %c0_93 = arith.constant 0 : index
      %238 = vector.load %arg2[%c0_91, %c0_92, %c0_93] : memref<2x16x32xf32, #tpu.memory_space<vmem>>, vector<2x16x32xf32>
      %c0_94 = arith.constant 0 : index
      %c0_95 = arith.constant 0 : index
      %c0_96 = arith.constant 0 : index
      %239 = vector.load %arg21[%c0_94, %c0_95, %c0_96] : memref<2x16x32xf32, #tpu.memory_space<vmem>>, vector<2x16x32xf32>
      tpu.vector_store %arg21[%c0_94, %c0_95, %c0_96], %238 {strides = array<i32>} : memref<2x16x32xf32, #tpu.memory_space<vmem>>, vector<2x16x32xf32>,
      %c0_97 = arith.constant 0 : index
      %c0_98 = arith.constant 0 : index
      %240 = vector.load %arg3[%c0_97, %c0_98] : memref<16x16xf32, #tpu.memory_space<vmem>>, vector<16x16xf32>
      %cst_99 = arith.constant 5.000000e-01 : f32
      %241 = vector.broadcast %cst_99 : f32 to vector<16x16xf32>
      %242 = arith.cmpf ogt, %240, %241 : vector<16x16xf32>
      %c0_100 = arith.constant 0 : index
      %c0_101 = arith.constant 0 : index
      %c0_102 = arith.constant 0 : index
      %243 = vector.load %arg4[%c0_100, %c0_101, %c0_102] : memref<2x1x16xf32, #tpu.memory_space<vmem>>, vector<2x1x16xf32>
      %cst_103 = arith.constant 5.000000e-01 : f32
      %244 = vector.broadcast %cst_103 : f32 to vector<2x1x16xf32>
      %245 = arith.cmpf ogt, %243, %244 : vector<2x1x16xf32>
      %246 = vector.shape_cast %242 : vector<16x16xi1> to vector<1x16x16xi1>
      %247 = vector.broadcast %246 : vector<1x16x16xi1> to vector<2x16x16xi1>
      %248 = vector.broadcast %245 : vector<2x1x16xi1> to vector<2x16x16xi1>
      %249 = arith.andi %247, %248 : vector<2x16x16xi1>
      %cst_104 = arith.constant 0.000000e+00 : f32
      %cst_105 = arith.constant -1.000000e+09 : f32
      %250 = vector.broadcast %cst_104 : f32 to vector<2x16x16xf32>
      %251 = vector.broadcast %cst_105 : f32 to vector<2x16x16xf32>
      %252 = arith.select %249, %250, %251 : vector<2x16x16xi1>, vector<2x16x16xf32>
      %c0_106 = arith.constant 0 : index
      %c0_107 = arith.constant 0 : index
      %c0_108 = arith.constant 0 : index
      %253 = vector.load %arg22[%c0_106, %c0_107, %c0_108] : memref<2x16x16xf32, #tpu.memory_space<vmem>>, vector<2x16x16xf32>
      tpu.vector_store %arg22[%c0_106, %c0_107, %c0_108], %252 {strides = array<i32>} : memref<2x16x16xf32, #tpu.memory_space<vmem>>, vector<2x16x16xf32>,
    } else {
    }
    %c0 = arith.constant 0 : index
    %c0_1 = arith.constant 0 : index
    %c0_2 = arith.constant 0 : index
    %3 = vector.load %arg21[%c0, %c0_1, %c0_2] : memref<2x16x32xf32, #tpu.memory_space<vmem>>, vector<2x16x32xf32>
    %c0_3 = arith.constant 0 : index
    %c0_4 = arith.constant 0 : index
    %c0_5 = arith.constant 0 : index
    %4 = vector.load %arg22[%c0_3, %c0_4, %c0_5] : memref<2x16x16xf32, #tpu.memory_space<vmem>>, vector<2x16x16xf32>
    %c0_6 = arith.constant 0 : index
    %c0_7 = arith.constant 0 : index
    %c0_8 = arith.constant 0 : index
    %5 = vector.load %arg5[%c0_6, %c0_7, %c0_8] : memref<1x1x32xf32, #tpu.memory_space<vmem>>, vector<1x1x32xf32>
    %6 = vector.shape_cast %5 : vector<1x1x32xf32> to vector<1x32xf32>
    %c0_9 = arith.constant 0 : index
    %c0_10 = arith.constant 0 : index
    %c0_11 = arith.constant 0 : index
    %7 = vector.load %arg6[%c0_9, %c0_10, %c0_11] : memref<1x1x32xf32, #tpu.memory_space<vmem>>, vector<1x1x32xf32>
    %8 = vector.shape_cast %7 : vector<1x1x32xf32> to vector<1x32xf32>
    %cst = arith.constant dense<0.000000e+00> : vector<2x16xf32>
    %9 = vector.multi_reduction <add>, %3, %cst [2] : vector<2x16x32xf32> to vector<2x16xf32>
    %10 = vector.shape_cast %9 : vector<2x16xf32> to vector<2x16x1xf32>
    %cst_12 = arith.constant 3.200000e+01 : f32
    %11 = vector.broadcast %cst_12 : f32 to vector<2x16x1xf32>
    %12 = arith.divf %10, %11 : vector<2x16x1xf32>
    %13 = vector.broadcast %12 : vector<2x16x1xf32> to vector<2x16x32xf32>
    %14 = arith.subf %3, %13 : vector<2x16x32xf32>
    %15 = arith.mulf %14, %14 : vector<2x16x32xf32>
    %cst_13 = arith.constant dense<0.000000e+00> : vector<2x16xf32>
    %16 = vector.multi_reduction <add>, %15, %cst_13 [2] : vector<2x16x32xf32> to vector<2x16xf32>
    %17 = vector.shape_cast %16 : vector<2x16xf32> to vector<2x16x1xf32>
    %cst_14 = arith.constant 3.200000e+01 : f32
    %18 = vector.broadcast %cst_14 : f32 to vector<2x16x1xf32>
    %19 = arith.divf %17, %18 : vector<2x16x1xf32>
    %20 = vector.broadcast %12 : vector<2x16x1xf32> to vector<2x16x32xf32>
    %21 = arith.subf %3, %20 : vector<2x16x32xf32>
    %cst_15 = arith.constant 9.99999974E-6 : f32
    %22 = vector.broadcast %cst_15 : f32 to vector<2x16x1xf32>
    %23 = arith.addf %19, %22 : vector<2x16x1xf32>
    %24 = math.rsqrt %23 : vector<2x16x1xf32>
    %25 = vector.broadcast %24 : vector<2x16x1xf32> to vector<2x16x32xf32>
    %26 = arith.mulf %21, %25 : vector<2x16x32xf32>
    %27 = vector.shape_cast %6 : vector<1x32xf32> to vector<1x1x32xf32>
    %28 = vector.broadcast %27 : vector<1x1x32xf32> to vector<2x16x32xf32>
    %29 = arith.mulf %26, %28 : vector<2x16x32xf32>
    %30 = vector.shape_cast %8 : vector<1x32xf32> to vector<1x1x32xf32>
    %31 = vector.broadcast %30 : vector<1x1x32xf32> to vector<2x16x32xf32>
    %32 = arith.addf %29, %31 : vector<2x16x32xf32>
    %33 = vector.shape_cast %32 : vector<2x16x32xf32> to vector<32x32xf32>
    %34 = arith.truncf %33 : vector<32x32xf32> to vector<32x32xbf16>
    %c0_16 = arith.constant 0 : index
    %c0_17 = arith.constant 0 : index
    %c0_18 = arith.constant 0 : index
    %35 = vector.load %arg7[%c0_16, %c0_17, %c0_18] : memref<1x32x96xbf16, #tpu.memory_space<vmem>>, vector<1x32x96xbf16>
    %36 = vector.shape_cast %35 : vector<1x32x96xbf16> to vector<32x96xbf16>
    %cst_19 = arith.constant dense<0.000000e+00> : vector<32x96xf32>
    %37 = tpu.matmul %34, %36, %cst_19 {dimension_numbers = #tpu.dot_dimension_numbers<[1], [0], [0], [1], [0, 0, 1, 1], [], []>} : vector<32x32xbf16>, vector<32x96xbf16>, vector<32x96xf32> -> vector<32x96xf32>
    %c0_20 = arith.constant 0 : index
    %c0_21 = arith.constant 0 : index
    %c0_22 = arith.constant 0 : index
    %38 = vector.load %arg8[%c0_20, %c0_21, %c0_22] : memref<1x1x96xf32, #tpu.memory_space<vmem>>, vector<1x1x96xf32>
    %39 = vector.shape_cast %38 : vector<1x1x96xf32> to vector<1x96xf32>
    %40 = vector.broadcast %39 : vector<1x96xf32> to vector<32x96xf32>
    %41 = arith.addf %37, %40 : vector<32x96xf32>
    %42 = vector.extract_strided_slice %41 {offsets = [0, 0], sizes = [32, 8], strides = [1, 1]} : vector<32x96xf32> to vector<32x8xf32>
    %43 = vector.shape_cast %42 : vector<32x8xf32> to vector<2x16x8xf32>
    %44 = arith.truncf %43 : vector<2x16x8xf32> to vector<2x16x8xbf16>
    %45 = vector.extract_strided_slice %41 {offsets = [0, 32], sizes = [32, 8], strides = [1, 1]} : vector<32x96xf32> to vector<32x8xf32>
    %46 = vector.shape_cast %45 : vector<32x8xf32> to vector<2x16x8xf32>
    %47 = arith.truncf %46 : vector<2x16x8xf32> to vector<2x16x8xbf16>
    %48 = vector.extract_strided_slice %41 {offsets = [0, 64], sizes = [32, 8], strides = [1, 1]} : vector<32x96xf32> to vector<32x8xf32>
    %49 = vector.shape_cast %48 : vector<32x8xf32> to vector<2x16x8xf32>
    %50 = arith.truncf %49 : vector<2x16x8xf32> to vector<2x16x8xbf16>
    "tpu.trace_start"() <{level = 10 : i32, message = "nqc,nkc->nqk"}> : () -> ()
    %cst_23 = arith.constant dense<0.000000e+00> : vector<2x16x16xf32>
    %51 = tpu.matmul %44, %47, %cst_23 {dimension_numbers = #tpu.dot_dimension_numbers<[2], [2], [1], [1], [0, 0, 0, 1, 1, 1], [0], [0]>} : vector<2x16x8xbf16>, vector<2x16x8xbf16>, vector<2x16x16xf32> -> vector<2x16x16xf32>
    "tpu.trace_stop"() : () -> ()
    %52 = arith.addf %51, %4 : vector<2x16x16xf32>
    %cst_24 = arith.constant dense<0xFF800000> : vector<2x16xf32>
    %53 = vector.multi_reduction <maximumf>, %52, %cst_24 [2] : vector<2x16x16xf32> to vector<2x16xf32>
    %54 = vector.shape_cast %53 : vector<2x16xf32> to vector<2x16x1xf32>
    %55 = vector.broadcast %54 : vector<2x16x1xf32> to vector<2x16x16xf32>
    %56 = arith.subf %52, %55 : vector<2x16x16xf32>
    %57 = math.exp %56 : vector<2x16x16xf32>
    %cst_25 = arith.constant dense<0.000000e+00> : vector<2x16xf32>
    %58 = vector.multi_reduction <add>, %57, %cst_25 [2] : vector<2x16x16xf32> to vector<2x16xf32>
    %59 = vector.shape_cast %58 : vector<2x16xf32> to vector<2x16x1xf32>
    %60 = tpu.reciprocal %59 {approx = true} : vector<2x16x1xf32> -> vector<2x16x1xf32>
    %61 = vector.broadcast %60 : vector<2x16x1xf32> to vector<2x16x16xf32>
    %62 = arith.mulf %57, %61 : vector<2x16x16xf32>
    %63 = arith.truncf %62 : vector<2x16x16xf32> to vector<2x16x16xbf16>
    "tpu.trace_start"() <{level = 10 : i32, message = "nqk,nkc->nqc"}> : () -> ()
    %cst_26 = arith.constant dense<0.000000e+00> : vector<2x16x8xf32>
    %64 = tpu.matmul %63, %50, %cst_26 {dimension_numbers = #tpu.dot_dimension_numbers<[2], [1], [1], [2], [0, 0, 0, 1, 1, 2], [0], [0]>} : vector<2x16x16xbf16>, vector<2x16x8xbf16>, vector<2x16x8xf32> -> vector<2x16x8xf32>
    "tpu.trace_stop"() : () -> ()
    %65 = vector.extract_strided_slice %41 {offsets = [0, 8], sizes = [32, 8], strides = [1, 1]} : vector<32x96xf32> to vector<32x8xf32>
    %66 = vector.shape_cast %65 : vector<32x8xf32> to vector<2x16x8xf32>
    %67 = arith.truncf %66 : vector<2x16x8xf32> to vector<2x16x8xbf16>
    %68 = vector.extract_strided_slice %41 {offsets = [0, 40], sizes = [32, 8], strides = [1, 1]} : vector<32x96xf32> to vector<32x8xf32>
    %69 = vector.shape_cast %68 : vector<32x8xf32> to vector<2x16x8xf32>
    %70 = arith.truncf %69 : vector<2x16x8xf32> to vector<2x16x8xbf16>
    %71 = vector.extract_strided_slice %41 {offsets = [0, 72], sizes = [32, 8], strides = [1, 1]} : vector<32x96xf32> to vector<32x8xf32>
    %72 = vector.shape_cast %71 : vector<32x8xf32> to vector<2x16x8xf32>
    %73 = arith.truncf %72 : vector<2x16x8xf32> to vector<2x16x8xbf16>
    "tpu.trace_start"() <{level = 10 : i32, message = "nqc,nkc->nqk"}> : () -> ()
    %cst_27 = arith.constant dense<0.000000e+00> : vector<2x16x16xf32>
    %74 = tpu.matmul %67, %70, %cst_27 {dimension_numbers = #tpu.dot_dimension_numbers<[2], [2], [1], [1], [0, 0, 0, 1, 1, 1], [0], [0]>} : vector<2x16x8xbf16>, vector<2x16x8xbf16>, vector<2x16x16xf32> -> vector<2x16x16xf32>
    "tpu.trace_stop"() : () -> ()
    %75 = arith.addf %74, %4 : vector<2x16x16xf32>
    %cst_28 = arith.constant dense<0xFF800000> : vector<2x16xf32>
    %76 = vector.multi_reduction <maximumf>, %75, %cst_28 [2] : vector<2x16x16xf32> to vector<2x16xf32>
    %77 = vector.shape_cast %76 : vector<2x16xf32> to vector<2x16x1xf32>
    %78 = vector.broadcast %77 : vector<2x16x1xf32> to vector<2x16x16xf32>
    %79 = arith.subf %75, %78 : vector<2x16x16xf32>
    %80 = math.exp %79 : vector<2x16x16xf32>
    %cst_29 = arith.constant dense<0.000000e+00> : vector<2x16xf32>
    %81 = vector.multi_reduction <add>, %80, %cst_29 [2] : vector<2x16x16xf32> to vector<2x16xf32>
    %82 = vector.shape_cast %81 : vector<2x16xf32> to vector<2x16x1xf32>
    %83 = tpu.reciprocal %82 {approx = true} : vector<2x16x1xf32> -> vector<2x16x1xf32>
    %84 = vector.broadcast %83 : vector<2x16x1xf32> to vector<2x16x16xf32>
    %85 = arith.mulf %80, %84 : vector<2x16x16xf32>
    %86 = arith.truncf %85 : vector<2x16x16xf32> to vector<2x16x16xbf16>
    "tpu.trace_start"() <{level = 10 : i32, message = "nqk,nkc->nqc"}> : () -> ()
    %cst_30 = arith.constant dense<0.000000e+00> : vector<2x16x8xf32>
    %87 = tpu.matmul %86, %73, %cst_30 {dimension_numbers = #tpu.dot_dimension_numbers<[2], [1], [1], [2], [0, 0, 0, 1, 1, 2], [0], [0]>} : vector<2x16x16xbf16>, vector<2x16x8xbf16>, vector<2x16x8xf32> -> vector<2x16x8xf32>
    "tpu.trace_stop"() : () -> ()
    %88 = vector.extract_strided_slice %41 {offsets = [0, 16], sizes = [32, 8], strides = [1, 1]} : vector<32x96xf32> to vector<32x8xf32>
    %89 = vector.shape_cast %88 : vector<32x8xf32> to vector<2x16x8xf32>
    %90 = arith.truncf %89 : vector<2x16x8xf32> to vector<2x16x8xbf16>
    %91 = vector.extract_strided_slice %41 {offsets = [0, 48], sizes = [32, 8], strides = [1, 1]} : vector<32x96xf32> to vector<32x8xf32>
    %92 = vector.shape_cast %91 : vector<32x8xf32> to vector<2x16x8xf32>
    %93 = arith.truncf %92 : vector<2x16x8xf32> to vector<2x16x8xbf16>
    %94 = vector.extract_strided_slice %41 {offsets = [0, 80], sizes = [32, 8], strides = [1, 1]} : vector<32x96xf32> to vector<32x8xf32>
    %95 = vector.shape_cast %94 : vector<32x8xf32> to vector<2x16x8xf32>
    %96 = arith.truncf %95 : vector<2x16x8xf32> to vector<2x16x8xbf16>
    "tpu.trace_start"() <{level = 10 : i32, message = "nqc,nkc->nqk"}> : () -> ()
    %cst_31 = arith.constant dense<0.000000e+00> : vector<2x16x16xf32>
    %97 = tpu.matmul %90, %93, %cst_31 {dimension_numbers = #tpu.dot_dimension_numbers<[2], [2], [1], [1], [0, 0, 0, 1, 1, 1], [0], [0]>} : vector<2x16x8xbf16>, vector<2x16x8xbf16>, vector<2x16x16xf32> -> vector<2x16x16xf32>
    "tpu.trace_stop"() : () -> ()
    %98 = arith.addf %97, %4 : vector<2x16x16xf32>
    %cst_32 = arith.constant dense<0xFF800000> : vector<2x16xf32>
    %99 = vector.multi_reduction <maximumf>, %98, %cst_32 [2] : vector<2x16x16xf32> to vector<2x16xf32>
    %100 = vector.shape_cast %99 : vector<2x16xf32> to vector<2x16x1xf32>
    %101 = vector.broadcast %100 : vector<2x16x1xf32> to vector<2x16x16xf32>
    %102 = arith.subf %98, %101 : vector<2x16x16xf32>
    %103 = math.exp %102 : vector<2x16x16xf32>
    %cst_33 = arith.constant dense<0.000000e+00> : vector<2x16xf32>
    %104 = vector.multi_reduction <add>, %103, %cst_33 [2] : vector<2x16x16xf32> to vector<2x16xf32>
    %105 = vector.shape_cast %104 : vector<2x16xf32> to vector<2x16x1xf32>
    %106 = tpu.reciprocal %105 {approx = true} : vector<2x16x1xf32> -> vector<2x16x1xf32>
    %107 = vector.broadcast %106 : vector<2x16x1xf32> to vector<2x16x16xf32>
    %108 = arith.mulf %103, %107 : vector<2x16x16xf32>
    %109 = arith.truncf %108 : vector<2x16x16xf32> to vector<2x16x16xbf16>
    "tpu.trace_start"() <{level = 10 : i32, message = "nqk,nkc->nqc"}> : () -> ()
    %cst_34 = arith.constant dense<0.000000e+00> : vector<2x16x8xf32>
    %110 = tpu.matmul %109, %96, %cst_34 {dimension_numbers = #tpu.dot_dimension_numbers<[2], [1], [1], [2], [0, 0, 0, 1, 1, 2], [0], [0]>} : vector<2x16x16xbf16>, vector<2x16x8xbf16>, vector<2x16x8xf32> -> vector<2x16x8xf32>
    "tpu.trace_stop"() : () -> ()
    %111 = vector.extract_strided_slice %41 {offsets = [0, 24], sizes = [32, 8], strides = [1, 1]} : vector<32x96xf32> to vector<32x8xf32>
    %112 = vector.shape_cast %111 : vector<32x8xf32> to vector<2x16x8xf32>
    %113 = arith.truncf %112 : vector<2x16x8xf32> to vector<2x16x8xbf16>
    %114 = vector.extract_strided_slice %41 {offsets = [0, 56], sizes = [32, 8], strides = [1, 1]} : vector<32x96xf32> to vector<32x8xf32>
    %115 = vector.shape_cast %114 : vector<32x8xf32> to vector<2x16x8xf32>
    %116 = arith.truncf %115 : vector<2x16x8xf32> to vector<2x16x8xbf16>
    %117 = vector.extract_strided_slice %41 {offsets = [0, 88], sizes = [32, 8], strides = [1, 1]} : vector<32x96xf32> to vector<32x8xf32>
    %118 = vector.shape_cast %117 : vector<32x8xf32> to vector<2x16x8xf32>
    %119 = arith.truncf %118 : vector<2x16x8xf32> to vector<2x16x8xbf16>
    "tpu.trace_start"() <{level = 10 : i32, message = "nqc,nkc->nqk"}> : () -> ()
    %cst_35 = arith.constant dense<0.000000e+00> : vector<2x16x16xf32>
    %120 = tpu.matmul %113, %116, %cst_35 {dimension_numbers = #tpu.dot_dimension_numbers<[2], [2], [1], [1], [0, 0, 0, 1, 1, 1], [0], [0]>} : vector<2x16x8xbf16>, vector<2x16x8xbf16>, vector<2x16x16xf32> -> vector<2x16x16xf32>
    "tpu.trace_stop"() : () -> ()
    %121 = arith.addf %120, %4 : vector<2x16x16xf32>
    %cst_36 = arith.constant dense<0xFF800000> : vector<2x16xf32>
    %122 = vector.multi_reduction <maximumf>, %121, %cst_36 [2] : vector<2x16x16xf32> to vector<2x16xf32>
    %123 = vector.shape_cast %122 : vector<2x16xf32> to vector<2x16x1xf32>
    %124 = vector.broadcast %123 : vector<2x16x1xf32> to vector<2x16x16xf32>
    %125 = arith.subf %121, %124 : vector<2x16x16xf32>
    %126 = math.exp %125 : vector<2x16x16xf32>
    %cst_37 = arith.constant dense<0.000000e+00> : vector<2x16xf32>
    %127 = vector.multi_reduction <add>, %126, %cst_37 [2] : vector<2x16x16xf32> to vector<2x16xf32>
    %128 = vector.shape_cast %127 : vector<2x16xf32> to vector<2x16x1xf32>
    %129 = tpu.reciprocal %128 {approx = true} : vector<2x16x1xf32> -> vector<2x16x1xf32>
    %130 = vector.broadcast %129 : vector<2x16x1xf32> to vector<2x16x16xf32>
    %131 = arith.mulf %126, %130 : vector<2x16x16xf32>
    %132 = arith.truncf %131 : vector<2x16x16xf32> to vector<2x16x16xbf16>
    "tpu.trace_start"() <{level = 10 : i32, message = "nqk,nkc->nqc"}> : () -> ()
    %cst_38 = arith.constant dense<0.000000e+00> : vector<2x16x8xf32>
    %133 = tpu.matmul %132, %119, %cst_38 {dimension_numbers = #tpu.dot_dimension_numbers<[2], [1], [1], [2], [0, 0, 0, 1, 1, 2], [0], [0]>} : vector<2x16x16xbf16>, vector<2x16x8xbf16>, vector<2x16x8xf32> -> vector<2x16x8xf32>
    "tpu.trace_stop"() : () -> ()
    %134 = tpu.concatenate %64, %87, %110, %133 in 2 : vector<2x16x8xf32>, vector<2x16x8xf32>, vector<2x16x8xf32>, vector<2x16x8xf32> -> vector<2x16x32xf32>
    %135 = vector.shape_cast %134 : vector<2x16x32xf32> to vector<32x32xf32>
    %136 = arith.truncf %135 : vector<32x32xf32> to vector<32x32xbf16>
    %c0_39 = arith.constant 0 : index
    %c0_40 = arith.constant 0 : index
    %c0_41 = arith.constant 0 : index
    %137 = vector.load %arg9[%c0_39, %c0_40, %c0_41] : memref<1x32x32xbf16, #tpu.memory_space<vmem>>, vector<1x32x32xbf16>
    %138 = vector.shape_cast %137 : vector<1x32x32xbf16> to vector<32x32xbf16>
    %cst_42 = arith.constant dense<0.000000e+00> : vector<32x32xf32>
    %139 = tpu.matmul %136, %138, %cst_42 {dimension_numbers = #tpu.dot_dimension_numbers<[1], [0], [0], [1], [0, 0, 1, 1], [], []>} : vector<32x32xbf16>, vector<32x32xbf16>, vector<32x32xf32> -> vector<32x32xf32>
    %c0_43 = arith.constant 0 : index
    %c0_44 = arith.constant 0 : index
    %c0_45 = arith.constant 0 : index
    %140 = vector.load %arg10[%c0_43, %c0_44, %c0_45] : memref<1x1x32xf32, #tpu.memory_space<vmem>>, vector<1x1x32xf32>
    %141 = vector.shape_cast %140 : vector<1x1x32xf32> to vector<1x32xf32>
    %142 = vector.broadcast %141 : vector<1x32xf32> to vector<32x32xf32>
    %143 = arith.addf %139, %142 : vector<32x32xf32>
    %144 = vector.shape_cast %143 : vector<32x32xf32> to vector<2x16x32xf32>
    %145 = arith.addf %3, %144 : vector<2x16x32xf32>
    %c0_46 = arith.constant 0 : index
    %c0_47 = arith.constant 0 : index
    %c0_48 = arith.constant 0 : index
    %146 = vector.load %arg11[%c0_46, %c0_47, %c0_48] : memref<1x1x32xf32, #tpu.memory_space<vmem>>, vector<1x1x32xf32>
    %147 = vector.shape_cast %146 : vector<1x1x32xf32> to vector<1x32xf32>
    %c0_49 = arith.constant 0 : index
    %c0_50 = arith.constant 0 : index
    %c0_51 = arith.constant 0 : index
    %148 = vector.load %arg12[%c0_49, %c0_50, %c0_51] : memref<1x1x32xf32, #tpu.memory_space<vmem>>, vector<1x1x32xf32>
    %149 = vector.shape_cast %148 : vector<1x1x32xf32> to vector<1x32xf32>
    %cst_52 = arith.constant dense<0.000000e+00> : vector<2x16xf32>
    %150 = vector.multi_reduction <add>, %145, %cst_52 [2] : vector<2x16x32xf32> to vector<2x16xf32>
    %151 = vector.shape_cast %150 : vector<2x16xf32> to vector<2x16x1xf32>
    %cst_53 = arith.constant 3.200000e+01 : f32
    %152 = vector.broadcast %cst_53 : f32 to vector<2x16x1xf32>
    %153 = arith.divf %151, %152 : vector<2x16x1xf32>
    %154 = vector.broadcast %153 : vector<2x16x1xf32> to vector<2x16x32xf32>
    %155 = arith.subf %145, %154 : vector<2x16x32xf32>
    %156 = arith.mulf %155, %155 : vector<2x16x32xf32>
    %cst_54 = arith.constant dense<0.000000e+00> : vector<2x16xf32>
    %157 = vector.multi_reduction <add>, %156, %cst_54 [2] : vector<2x16x32xf32> to vector<2x16xf32>
    %158 = vector.shape_cast %157 : vector<2x16xf32> to vector<2x16x1xf32>
    %cst_55 = arith.constant 3.200000e+01 : f32
    %159 = vector.broadcast %cst_55 : f32 to vector<2x16x1xf32>
    %160 = arith.divf %158, %159 : vector<2x16x1xf32>
    %161 = vector.broadcast %153 : vector<2x16x1xf32> to vector<2x16x32xf32>
    %162 = arith.subf %145, %161 : vector<2x16x32xf32>
    %cst_56 = arith.constant 9.99999974E-6 : f32
    %163 = vector.broadcast %cst_56 : f32 to vector<2x16x1xf32>
    %164 = arith.addf %160, %163 : vector<2x16x1xf32>
    %165 = math.rsqrt %164 : vector<2x16x1xf32>
    %166 = vector.broadcast %165 : vector<2x16x1xf32> to vector<2x16x32xf32>
    %167 = arith.mulf %162, %166 : vector<2x16x32xf32>
    %168 = vector.shape_cast %147 : vector<1x32xf32> to vector<1x1x32xf32>
    %169 = vector.broadcast %168 : vector<1x1x32xf32> to vector<2x16x32xf32>
    %170 = arith.mulf %167, %169 : vector<2x16x32xf32>
    %171 = vector.shape_cast %149 : vector<1x32xf32> to vector<1x1x32xf32>
    %172 = vector.broadcast %171 : vector<1x1x32xf32> to vector<2x16x32xf32>
    %173 = arith.addf %170, %172 : vector<2x16x32xf32>
    %174 = vector.shape_cast %173 : vector<2x16x32xf32> to vector<32x32xf32>
    %175 = arith.truncf %174 : vector<32x32xf32> to vector<32x32xbf16>
    %c0_57 = arith.constant 0 : index
    %c0_58 = arith.constant 0 : index
    %c0_59 = arith.constant 0 : index
    %176 = vector.load %arg13[%c0_57, %c0_58, %c0_59] : memref<1x32x128xbf16, #tpu.memory_space<vmem>>, vector<1x32x128xbf16>
    %177 = vector.shape_cast %176 : vector<1x32x128xbf16> to vector<32x128xbf16>
    %cst_60 = arith.constant dense<0.000000e+00> : vector<32x128xf32>
    %178 = tpu.matmul %175, %177, %cst_60 {dimension_numbers = #tpu.dot_dimension_numbers<[1], [0], [0], [1], [0, 0, 1, 1], [], []>} : vector<32x32xbf16>, vector<32x128xbf16>, vector<32x128xf32> -> vector<32x128xf32>
    %c0_61 = arith.constant 0 : index
    %c0_62 = arith.constant 0 : index
    %c0_63 = arith.constant 0 : index
    %179 = vector.load %arg14[%c0_61, %c0_62, %c0_63] : memref<1x1x128xf32, #tpu.memory_space<vmem>>, vector<1x1x128xf32>
    %180 = vector.shape_cast %179 : vector<1x1x128xf32> to vector<1x128xf32>
    %181 = vector.broadcast %180 : vector<1x128xf32> to vector<32x128xf32>
    %182 = arith.addf %178, %181 : vector<32x128xf32>
    %cst_64 = arith.constant 5.000000e-01 : f32
    %183 = vector.broadcast %cst_64 : f32 to vector<32x128xf32>
    %184 = arith.mulf %183, %182 : vector<32x128xf32>
    %cst_65 = arith.constant 0.707106769 : f32
    %185 = vector.broadcast %cst_65 : f32 to vector<32x128xf32>
    %186 = arith.mulf %182, %185 : vector<32x128xf32>
    %cst_66 = arith.constant 0.000000e+00 : f32
    %187 = vector.broadcast %cst_66 : f32 to vector<32x128xf32>
    %188 = arith.cmpf oge, %186, %187 : vector<32x128xf32>
    %cst_67 = arith.constant 1.000000e+00 : f32
    %cst_68 = arith.constant -1.000000e+00 : f32
    %189 = vector.broadcast %cst_67 : f32 to vector<32x128xf32>
    %190 = vector.broadcast %cst_68 : f32 to vector<32x128xf32>
    %191 = arith.select %188, %189, %190 : vector<32x128xi1>, vector<32x128xf32>
    %192 = math.absf %186 : vector<32x128xf32>
    %cst_69 = arith.constant 0.327591091 : f32
    %193 = vector.broadcast %cst_69 : f32 to vector<32x128xf32>
    %194 = arith.mulf %193, %192 : vector<32x128xf32>
    %cst_70 = arith.constant 1.000000e+00 : f32
    %195 = vector.broadcast %cst_70 : f32 to vector<32x128xf32>
    %196 = arith.addf %195, %194 : vector<32x128xf32>
    %cst_71 = arith.constant 1.000000e+00 : f32
    %197 = vector.broadcast %cst_71 : f32 to vector<32x128xf32>
    %198 = arith.divf %197, %196 : vector<32x128xf32>
    %cst_72 = arith.constant 1.06140542 : f32
    %199 = vector.broadcast %cst_72 : f32 to vector<32x128xf32>
    %200 = arith.mulf %199, %198 : vector<32x128xf32>
    %cst_73 = arith.constant -1.45315206 : f32
    %201 = vector.broadcast %cst_73 : f32 to vector<32x128xf32>
    %202 = arith.addf %200, %201 : vector<32x128xf32>
    %203 = arith.mulf %202, %198 : vector<32x128xf32>
    %cst_74 = arith.constant 1.42141378 : f32
    %204 = vector.broadcast %cst_74 : f32 to vector<32x128xf32>
    %205 = arith.addf %203, %204 : vector<32x128xf32>
    %206 = arith.mulf %205, %198 : vector<32x128xf32>
    %cst_75 = arith.constant -0.284496725 : f32
    %207 = vector.broadcast %cst_75 : f32 to vector<32x128xf32>
    %208 = arith.addf %206, %207 : vector<32x128xf32>
    %209 = arith.mulf %208, %198 : vector<32x128xf32>
    %cst_76 = arith.constant 0.254829586 : f32
    %210 = vector.broadcast %cst_76 : f32 to vector<32x128xf32>
    %211 = arith.addf %209, %210 : vector<32x128xf32>
    %212 = arith.mulf %211, %198 : vector<32x128xf32>
    %213 = arith.mulf %192, %192 : vector<32x128xf32>
    %cst_77 = arith.constant 0.000000e+00 : f32
    %214 = vector.broadcast %cst_77 : f32 to vector<32x128xf32>
    %215 = arith.subf %214, %213 : vector<32x128xf32>
    %216 = math.exp %215 : vector<32x128xf32>
    %217 = arith.mulf %212, %216 : vector<32x128xf32>
    %cst_78 = arith.constant 1.000000e+00 : f32
    %218 = vector.broadcast %cst_78 : f32 to vector<32x128xf32>
    %219 = arith.subf %218, %217 : vector<32x128xf32>
    %220 = arith.mulf %191, %219 : vector<32x128xf32>
    %cst_79 = arith.constant 1.000000e+00 : f32
    %221 = vector.broadcast %cst_79 : f32 to vector<32x128xf32>
    %222 = arith.addf %221, %220 : vector<32x128xf32>
    %223 = arith.mulf %184, %222 : vector<32x128xf32>
    %224 = arith.truncf %223 : vector<32x128xf32> to vector<32x128xbf16>
    %c0_80 = arith.constant 0 : index
    %c0_81 = arith.constant 0 : index
    %c0_82 = arith.constant 0 : index
    %225 = vector.load %arg15[%c0_80, %c0_81, %c0_82] : memref<1x128x32xbf16, #tpu.memory_space<vmem>>, vector<1x128x32xbf16>
    %226 = vector.shape_cast %225 : vector<1x128x32xbf16> to vector<128x32xbf16>
    %cst_83 = arith.constant dense<0.000000e+00> : vector<32x32xf32>
    %227 = tpu.matmul %224, %226, %cst_83 {dimension_numbers = #tpu.dot_dimension_numbers<[1], [0], [0], [1], [0, 0, 1, 1], [], []>} : vector<32x128xbf16>, vector<128x32xbf16>, vector<32x32xf32> -> vector<32x32xf32>
    %c0_84 = arith.constant 0 : index
    %c0_85 = arith.constant 0 : index
    %c0_86 = arith.constant 0 : index
    %228 = vector.load %arg16[%c0_84, %c0_85, %c0_86] : memref<1x1x32xf32, #tpu.memory_space<vmem>>, vector<1x1x32xf32>
    %229 = vector.shape_cast %228 : vector<1x1x32xf32> to vector<1x32xf32>
    %230 = vector.broadcast %229 : vector<1x32xf32> to vector<32x32xf32>
    %231 = arith.addf %227, %230 : vector<32x32xf32>
    %232 = vector.shape_cast %231 : vector<32x32xf32> to vector<2x16x32xf32>
    %233 = arith.addf %145, %232 : vector<2x16x32xf32>
    %c0_87 = arith.constant 0 : index
    %c0_88 = arith.constant 0 : index
    %c0_89 = arith.constant 0 : index
    %234 = vector.load %arg21[%c0_87, %c0_88, %c0_89] : memref<2x16x32xf32, #tpu.memory_space<vmem>>, vector<2x16x32xf32>
    tpu.vector_store %arg21[%c0_87, %c0_88, %c0_89], %233 {strides = array<i32>} : memref<2x16x32xf32, #tpu.memory_space<vmem>>, vector<2x16x32xf32>,
    %c1_i32 = arith.constant 1 : i32
    %235 = arith.cmpi eq, %arg1, %c1_i32 : i32
    %236 = arith.extui %235 : i1 to i32
    %c0_i32_90 = arith.constant 0 : i32
    %237 = arith.cmpi ne, %236, %c0_i32_90 : i32
    scf.if %237 {
      %c0_91 = arith.constant 0 : index
      %c0_92 = arith.constant 0 : index
      %c0_93 = arith.constant 0 : index
      %238 = vector.load %arg2[%c0_91, %c0_92, %c0_93] : memref<2x16x32xf32, #tpu.memory_space<vmem>>, vector<2x16x32xf32>
      %c0_94 = arith.constant 0 : index
      %239 = memref.load %arg17[%c0_94] : memref<1xf32, #tpu.memory_space<smem>>
      %240 = vector.broadcast %239 : f32 to vector<2x16x32xf32>
      %241 = arith.mulf %240, %233 : vector<2x16x32xf32>
      %242 = arith.addf %238, %241 : vector<2x16x32xf32>
      %c0_95 = arith.constant 0 : index
      %c0_96 = arith.constant 0 : index
      %243 = vector.load %arg18[%c0_95, %c0_96] : memref<1x32xf32, #tpu.memory_space<vmem>>, vector<1x32xf32>
      %244 = vector.shape_cast %243 : vector<1x32xf32> to vector<32xf32>
      %c0_97 = arith.constant 0 : index
      %c0_98 = arith.constant 0 : index
      %245 = vector.load %arg19[%c0_97, %c0_98] : memref<1x32xf32, #tpu.memory_space<vmem>>, vector<1x32xf32>
      %246 = vector.shape_cast %245 : vector<1x32xf32> to vector<32xf32>
      %cst_99 = arith.constant dense<0.000000e+00> : vector<2x16xf32>
      %247 = vector.multi_reduction <add>, %242, %cst_99 [2] : vector<2x16x32xf32> to vector<2x16xf32>
      %248 = vector.shape_cast %247 : vector<2x16xf32> to vector<2x16x1xf32>
      %cst_100 = arith.constant 3.200000e+01 : f32
      %249 = vector.broadcast %cst_100 : f32 to vector<2x16x1xf32>
      %250 = arith.divf %248, %249 : vector<2x16x1xf32>
      %251 = vector.broadcast %250 : vector<2x16x1xf32> to vector<2x16x32xf32>
      %252 = arith.subf %242, %251 : vector<2x16x32xf32>
      %253 = arith.mulf %252, %252 : vector<2x16x32xf32>
      %cst_101 = arith.constant dense<0.000000e+00> : vector<2x16xf32>
      %254 = vector.multi_reduction <add>, %253, %cst_101 [2] : vector<2x16x32xf32> to vector<2x16xf32>
      %255 = vector.shape_cast %254 : vector<2x16xf32> to vector<2x16x1xf32>
      %cst_102 = arith.constant 3.200000e+01 : f32
      %256 = vector.broadcast %cst_102 : f32 to vector<2x16x1xf32>
      %257 = arith.divf %255, %256 : vector<2x16x1xf32>
      %258 = vector.broadcast %250 : vector<2x16x1xf32> to vector<2x16x32xf32>
      %259 = arith.subf %242, %258 : vector<2x16x32xf32>
      %cst_103 = arith.constant 9.99999974E-6 : f32
      %260 = vector.broadcast %cst_103 : f32 to vector<2x16x1xf32>
      %261 = arith.addf %257, %260 : vector<2x16x1xf32>
      %262 = math.rsqrt %261 : vector<2x16x1xf32>
      %263 = vector.broadcast %262 : vector<2x16x1xf32> to vector<2x16x32xf32>
      %264 = arith.mulf %259, %263 : vector<2x16x32xf32>
      %265 = vector.shape_cast %244 : vector<32xf32> to vector<1x1x32xf32>
      %266 = vector.broadcast %265 : vector<1x1x32xf32> to vector<2x16x32xf32>
      %267 = arith.mulf %264, %266 : vector<2x16x32xf32>
      %268 = vector.shape_cast %246 : vector<32xf32> to vector<1x1x32xf32>
      %269 = vector.broadcast %268 : vector<1x1x32xf32> to vector<2x16x32xf32>
      %270 = arith.addf %267, %269 : vector<2x16x32xf32>
      %c0_104 = arith.constant 0 : index
      %c0_105 = arith.constant 0 : index
      %c0_106 = arith.constant 0 : index
      %271 = vector.load %arg20[%c0_104, %c0_105, %c0_106] : memref<2x16x32xf32, #tpu.memory_space<vmem>>, vector<2x16x32xf32>
      tpu.vector_store %arg20[%c0_104, %c0_105, %c0_106], %270 {strides = array<i32>} : memref<2x16x32xf32, #tpu.memory_space<vmem>>, vector<2x16x32xf32>,
    } else {
    }
    return
  }
  func.func @transform_0(%arg0: i32, %arg1: i32) -> (i32, i32, i32) {
    %c0_i32 = arith.constant 0 : i32
    %c0_i32_0 = arith.constant 0 : i32
    %c0_i32_1 = arith.constant 0 : i32
    return %arg0, %c0_i32, %c0_i32_0 : i32, i32, i32
  }
  func.func @transform_1(%arg0: i32, %arg1: i32) -> (i32, i32) {
    %c0_i32 = arith.constant 0 : i32
    %c0_i32_0 = arith.constant 0 : i32
    %c0_i32_1 = arith.constant 0 : i32
    return %c0_i32, %c0_i32_0 : i32, i32
  }
  func.func @transform_2(%arg0: i32, %arg1: i32) -> (i32, i32, i32) {
    %c0_i32 = arith.constant 0 : i32
    %c0_i32_0 = arith.constant 0 : i32
    %c0_i32_1 = arith.constant 0 : i32
    return %arg0, %c0_i32, %c0_i32_0 : i32, i32, i32
  }
  func.func @transform_3(%arg0: i32, %arg1: i32) -> (i32, i32, i32) {
    %c0_i32 = arith.constant 0 : i32
    %c0_i32_0 = arith.constant 0 : i32
    %c0_i32_1 = arith.constant 0 : i32
    return %arg1, %c0_i32, %c0_i32_0 : i32, i32, i32
  }
  func.func @transform_4(%arg0: i32, %arg1: i32) -> (i32, i32, i32) {
    %c0_i32 = arith.constant 0 : i32
    %c0_i32_0 = arith.constant 0 : i32
    %c0_i32_1 = arith.constant 0 : i32
    return %arg1, %c0_i32, %c0_i32_0 : i32, i32, i32
  }
  func.func @transform_5(%arg0: i32, %arg1: i32) -> (i32, i32, i32) {
    %c0_i32 = arith.constant 0 : i32
    %c0_i32_0 = arith.constant 0 : i32
    %c0_i32_1 = arith.constant 0 : i32
    return %arg1, %c0_i32, %c0_i32_0 : i32, i32, i32
  }
  func.func @transform_6(%arg0: i32, %arg1: i32) -> (i32, i32, i32) {
    %c0_i32 = arith.constant 0 : i32
    %c0_i32_0 = arith.constant 0 : i32
    %c0_i32_1 = arith.constant 0 : i32
    return %arg1, %c0_i32, %c0_i32_0 : i32, i32, i32
  }
  func.func @transform_7(%arg0: i32, %arg1: i32) -> (i32, i32, i32) {
    %c0_i32 = arith.constant 0 : i32
    %c0_i32_0 = arith.constant 0 : i32
    %c0_i32_1 = arith.constant 0 : i32
    return %arg1, %c0_i32, %c0_i32_0 : i32, i32, i32
  }
  func.func @transform_8(%arg0: i32, %arg1: i32) -> (i32, i32, i32) {
    %c0_i32 = arith.constant 0 : i32
    %c0_i32_0 = arith.constant 0 : i32
    %c0_i32_1 = arith.constant 0 : i32
    return %arg1, %c0_i32, %c0_i32_0 : i32, i32, i32
  }
  func.func @transform_9(%arg0: i32, %arg1: i32) -> (i32, i32, i32) {
    %c0_i32 = arith.constant 0 : i32
    %c0_i32_0 = arith.constant 0 : i32
    %c0_i32_1 = arith.constant 0 : i32
    return %arg1, %c0_i32, %c0_i32_0 : i32, i32, i32
  }
  func.func @transform_10(%arg0: i32, %arg1: i32) -> (i32, i32, i32) {
    %c0_i32 = arith.constant 0 : i32
    %c0_i32_0 = arith.constant 0 : i32
    %c0_i32_1 = arith.constant 0 : i32
    return %arg1, %c0_i32, %c0_i32_0 : i32, i32, i32
  }
  func.func @transform_11(%arg0: i32, %arg1: i32) -> (i32, i32, i32) {
    %c0_i32 = arith.constant 0 : i32
    %c0_i32_0 = arith.constant 0 : i32
    %c0_i32_1 = arith.constant 0 : i32
    return %arg1, %c0_i32, %c0_i32_0 : i32, i32, i32
  }
  func.func @transform_12(%arg0: i32, %arg1: i32) -> (i32, i32, i32) {
    %c0_i32 = arith.constant 0 : i32
    %c0_i32_0 = arith.constant 0 : i32
    %c0_i32_1 = arith.constant 0 : i32
    return %arg1, %c0_i32, %c0_i32_0 : i32, i32, i32
  }
  func.func @transform_13(%arg0: i32, %arg1: i32) -> (i32, i32, i32) {
    %c0_i32 = arith.constant 0 : i32
    %c0_i32_0 = arith.constant 0 : i32
    %c0_i32_1 = arith.constant 0 : i32
    return %arg1, %c0_i32, %c0_i32_0 : i32, i32, i32
  }
  func.func @transform_14(%arg0: i32, %arg1: i32) -> (i32, i32, i32) {
    %c0_i32 = arith.constant 0 : i32
    %c0_i32_0 = arith.constant 0 : i32
    %c0_i32_1 = arith.constant 0 : i32
    return %arg1, %c0_i32, %c0_i32_0 : i32, i32, i32
  }
  func.func @transform_15(%arg0: i32, %arg1: i32) -> i32 {
    %c0_i32 = arith.constant 0 : i32
    %c0_i32_0 = arith.constant 0 : i32
    return %c0_i32 : i32
  }
  func.func @transform_16(%arg0: i32, %arg1: i32) -> (i32, i32) {
    %c0_i32 = arith.constant 0 : i32
    %c0_i32_0 = arith.constant 0 : i32
    %c0_i32_1 = arith.constant 0 : i32
    return %c0_i32, %c0_i32_0 : i32, i32
  }
  func.func @transform_17(%arg0: i32, %arg1: i32) -> (i32, i32) {
    %c0_i32 = arith.constant 0 : i32
    %c0_i32_0 = arith.constant 0 : i32
    %c0_i32_1 = arith.constant 0 : i32
    return %c0_i32, %c0_i32_0 : i32, i32
  }
  func.func @transform_18(%arg0: i32, %arg1: i32) -> (i32, i32, i32) {
    %c0_i32 = arith.constant 0 : i32
    %c0_i32_0 = arith.constant 0 : i32
    %c0_i32_1 = arith.constant 0 : i32
    return %arg0, %c0_i32, %c0_i32_0 : i32, i32, i32
  }
}

</mosaic_0001>

<llo_original>
// kernel: tpu_custom_call.1
$region0: #{tpu_custom_call.1}
  #allocation0 [shape = 'u32[]', space=smem, size = 0x4, offset = 0x4, fixed_abs, tag = 'smem constant byte address 0x4 - core index']
  #allocation1 [shape = 'u32[144,128]{1,0:T(1,128)}', space=vmem, size = 0x12000, scoped, tag = 'internal scratch']
  #allocation2 [shape = 'f32[2,16,32]{2,1,0:T(8,128)}', space=vmem, size = 0x4000, scoped, tag = 'scratch operand']
  #allocation3 [shape = 'f32[2,16,16]{2,1,0:T(8,128)}', space=vmem, size = 0x4000, scoped, tag = 'scratch operand']
  #allocation4 [shape = 'f32[1]{0:T(128)S(6)}', space=smem, size = 0x200, scoped, tag = 'scoped memory for tpu_custom_call.1']
  %s0 = inlined_call_operand.vmem [shape: f32[2,16,32], index: 0, kind: input, shape index: {}]
  %s1 = inlined_call_operand.vmem [shape: f32[16,16], index: 1, kind: input, shape index: {}]
  %s2 = inlined_call_operand.vmem [shape: f32[2,1,16], index: 2, kind: input, shape index: {}]
  %s3 = inlined_call_operand.vmem [shape: f32[2,1,32], index: 3, kind: input, shape index: {}]
  %s4 = inlined_call_operand.vmem [shape: f32[2,1,32], index: 4, kind: input, shape index: {}]
  %s5 = inlined_call_operand.vmem [shape: bf16[2,32,96], index: 5, kind: input, shape index: {}]
  %s6 = inlined_call_operand.vmem [shape: f32[2,1,96], index: 6, kind: input, shape index: {}]
  %s7 = inlined_call_operand.vmem [shape: bf16[2,32,32], index: 7, kind: input, shape index: {}]
  %s8 = inlined_call_operand.vmem [shape: f32[2,1,32], index: 8, kind: input, shape index: {}]
  %s9 = inlined_call_operand.vmem [shape: f32[2,1,32], index: 9, kind: input, shape index: {}]
  %s10 = inlined_call_operand.vmem [shape: f32[2,1,32], index: 10, kind: input, shape index: {}]
  %s11 = inlined_call_operand.vmem [shape: bf16[2,32,128], index: 11, kind: input, shape index: {}]
  %s12 = inlined_call_operand.vmem [shape: f32[2,1,128], index: 12, kind: input, shape index: {}]
  %s13 = inlined_call_operand.vmem [shape: bf16[2,128,32], index: 13, kind: input, shape index: {}]
  %s14 = inlined_call_operand.vmem [shape: f32[2,1,32], index: 14, kind: input, shape index: {}]
  %s15 = inlined_call_operand.<no memory space> [shape: f32[1], index: 15, kind: input, shape index: {}]
  %s16 = inlined_call_operand.vmem [shape: f32[1,32], index: 16, kind: input, shape index: {}]
  %s17 = inlined_call_operand.vmem [shape: f32[1,32], index: 17, kind: input, shape index: {}]
  %s18 = inlined_call_operand.hbm [shape: f32[2,16,32], index: 18, kind: output, shape index: {}]
  %s19 = sld [smem:[#allocation0]]
  $region113: #{tpu_custom_call.1} parent=0
    _
  %s21 = ssub.s32 1, %s19
  %s22 = scalar_select 0, %s21, %s19
  %23 = sst [smem:[#allocation4]] %s15
  $region1: #{tpu_custom_call.1} parent=0
    #allocation5 [shape = 'u8[16384]{0}', space=vmem, size = 0x4000, scoped, tag = 'output window, operand 0, single buffered']
    #allocation6 [shape = 's32[2]{0}', space=sflag, size = 0x8, scoped, tag = 'scoped memory for tpu_custom_call.1']
    %24 = vsyncpa [#allocation6], 0
    loop: start=0, step=1, limit=4
    $region2: #{tpu_custom_call.1} parent=1 // loop_pre_header
      _
    $region3: #{tpu_custom_call.1} parent=1 // loop_header
      %s26 = sphi 0, %s30
      %p27 = scmp.ge.s32.totalorder %s26, 4
      %s33 = sphi 0, %s45
      %s34 = sphi 0, %s41
      %s35 = sphi 0, %s33
      %s36 = sphi 0, %s34
      %s37 = sphi 0, %s35
      %s38 = sphi 0, %s36
      %s48 = sphi 0, %s50
      %s51 = sphi 0, %s48
      %s52 = sphi 0, %s51
      %s68 = sphi 0, %s52
      %s72 = sphi 0, %s72
      %s74 = sphi 0, %s72
      %s75 = sphi 0, %s74
      %s89 = sphi 0, %s75
      %s95 = sphi 0, %s97
      %s98 = sphi 0, %s95
      %s99 = sphi 0, %s98
      %s115 = sphi 0, %s99
      %s121 = sphi 0, %s123
      %s124 = sphi 0, %s121
      %s125 = sphi 0, %s124
      %s141 = sphi 0, %s125
      %s147 = sphi 0, %s149
      %s150 = sphi 0, %s147
      %s151 = sphi 0, %s150
      %s167 = sphi 0, %s151
      %s173 = sphi 0, %s175
      %s176 = sphi 0, %s173
      %s177 = sphi 0, %s176
      %s193 = sphi 0, %s177
      %s199 = sphi 0, %s201
      %s202 = sphi 0, %s199
      %s203 = sphi 0, %s202
      %s219 = sphi 0, %s203
      %s225 = sphi 0, %s227
      %s228 = sphi 0, %s225
      %s229 = sphi 0, %s228
      %s245 = sphi 0, %s229
      %s251 = sphi 0, %s253
      %s254 = sphi 0, %s251
      %s255 = sphi 0, %s254
      %s271 = sphi 0, %s255
      %s277 = sphi 0, %s279
      %s280 = sphi 0, %s277
      %s281 = sphi 0, %s280
      %s297 = sphi 0, %s281
      %s303 = sphi 0, %s305
      %s306 = sphi 0, %s303
      %s307 = sphi 0, %s306
      %s323 = sphi 0, %s307
      %s329 = sphi 0, %s331
      %s332 = sphi 0, %s329
      %s333 = sphi 0, %s332
      %s349 = sphi 0, %s333
      %s355 = sphi 0, %s357
      %s358 = sphi 0, %s355
      %s359 = sphi 0, %s358
      %s375 = sphi 0, %s359
      %s381 = sphi 0, %s383
      %s384 = sphi 0, %s381
      %s385 = sphi 0, %s384
      %s401 = sphi 0, %s385
      %s407 = sphi 0, %s409
      %s410 = sphi 0, %s407
      %s411 = sphi 0, %s410
      %s427 = sphi 0, %s411
      %s431 = sphi 0, %s431
      %s433 = sphi 0, %s431
      %s434 = sphi 0, %s433
      %s448 = sphi 0, %s434
      %s452 = sphi 0, %s452
      %s454 = sphi 0, %s452
      %s455 = sphi 0, %s454
      %s469 = sphi 0, %s455
      %s473 = sphi 0, %s473
      %s475 = sphi 0, %s473
      %s476 = sphi 0, %s475
      %s490 = sphi 0, %s476
      %s496 = sphi 0, %s498
      %s499 = sphi 0, %s496
      %s500 = sphi 0, %s499
      %s516 = sphi 0, %s500
    $region4: #{tpu_custom_call.1} parent=1 // loop_header_branch
      %29 = sbr.rel (%p27) target = $region8
    $region5: #{tpu_custom_call.1} parent=1 // loop_body
      %s31 = ssub.s32 %s26, 1
      %s32 = ssub.s32 %s26, 2
      %s39 = sadd.s32 1, %s34
      %p40 = scmp.ge.s32.totalorder %s39, 2
      %s41 = scalar_select %p40, 0, %s39
      %s42 = sadd.s32 1, %s33
      %s43 = scalar_select %p40, %s42, %s33
      %p44 = scmp.ge.s32.totalorder %s43, 1
      %s45 = scalar_select %p44, 0, %s43
      %s46 = ssub.s32 %s33, %s45
      %p47 = scmp.eq.s32.totalorder %s46, 0
      %s49 = sadd.s32 %s48, 1
      %s50 = scalar_select %p47, %s48, %s49
      %p53 = pneg %p47
      %p54 = scmp.eq.s32.totalorder %s26, 1
      %p55 = por %p53, %p54
      %p56 = scmp.ne.s32.totalorder %s48, %s51
      %p57 = scmp.eq.s32.totalorder %s26, 0
      %p58 = por %p56, %p57
      %p59 = scmp.ne.s32.totalorder %s48, %s51
      %p60 = scmp.eq.s32.totalorder %s31, 1
      %p61 = por %p59, %p60
      %p62 = scmp.ne.s32.totalorder %s51, %s52
      %p63 = scmp.eq.s32.totalorder %s31, 0
      %p64 = por %p62, %p63
      %p65 = scmp.ne.s32.totalorder %s51, %s52
      %p66 = scmp.eq.s32.totalorder %s32, 1
      %p67 = por %p65, %p66
      %p69 = scmp.ne.s32.totalorder %s52, %s68
      %p70 = scmp.eq.s32.totalorder %s32, 0
      %p71 = por %p69, %p70
      %s73 = sadd.s32 %s72, 1
      %p76 = scmp.eq.s32.totalorder %s26, 1
      %p77 = scmp.ne.s32.totalorder %s72, %s74
      %p78 = scmp.eq.s32.totalorder %s26, 0
      %p79 = por %p77, %p78
      %p80 = scmp.ne.s32.totalorder %s72, %s74
      %p81 = scmp.eq.s32.totalorder %s31, 1
      %p82 = por %p80, %p81
      %p83 = scmp.ne.s32.totalorder %s74, %s75
      %p84 = scmp.eq.s32.totalorder %s31, 0
      %p85 = por %p83, %p84
      %p86 = scmp.ne.s32.totalorder %s74, %s75
      %p87 = scmp.eq.s32.totalorder %s32, 1
      %p88 = por %p86, %p87
      %p90 = scmp.ne.s32.totalorder %s75, %s89
      %p91 = scmp.eq.s32.totalorder %s32, 0
      %p92 = por %p90, %p91
      %s93 = ssub.s32 %s33, %s45
      %p94 = scmp.eq.s32.totalorder %s93, 0
      %s96 = sadd.s32 %s95, 1
      %s97 = scalar_select %p94, %s95, %s96
      %p100 = pneg %p94
      %p101 = scmp.eq.s32.totalorder %s26, 1
      %p102 = por %p100, %p101
      %p103 = scmp.ne.s32.totalorder %s95, %s98
      %p104 = scmp.eq.s32.totalorder %s26, 0
      %p105 = por %p103, %p104
      %p106 = scmp.ne.s32.totalorder %s95, %s98
      %p107 = scmp.eq.s32.totalorder %s31, 1
      %p108 = por %p106, %p107
      %p109 = scmp.ne.s32.totalorder %s98, %s99
      %p110 = scmp.eq.s32.totalorder %s31, 0
      %p111 = por %p109, %p110
      %p112 = scmp.ne.s32.totalorder %s98, %s99
      %p113 = scmp.eq.s32.totalorder %s32, 1
      %p114 = por %p112, %p113
      %p116 = scmp.ne.s32.totalorder %s99, %s115
      %p117 = scmp.eq.s32.totalorder %s32, 0
      %p118 = por %p116, %p117
      %s119 = ssub.s32 %s34, %s41
      %p120 = scmp.eq.s32.totalorder %s119, 0
      %s122 = sadd.s32 %s121, 1
      %s123 = scalar_select %p120, %s121, %s122
      %p126 = pneg %p120
      %p127 = scmp.eq.s32.totalorder %s26, 1
      %p128 = por %p126, %p127
      %p129 = scmp.ne.s32.totalorder %s121, %s124
      %p130 = scmp.eq.s32.totalorder %s26, 0
      %p131 = por %p129, %p130
      %p132 = scmp.ne.s32.totalorder %s121, %s124
      %p133 = scmp.eq.s32.totalorder %s31, 1
      %p134 = por %p132, %p133
      %p135 = scmp.ne.s32.totalorder %s124, %s125
      %p136 = scmp.eq.s32.totalorder %s31, 0
      %p137 = por %p135, %p136
      %p138 = scmp.ne.s32.totalorder %s124, %s125
      %p139 = scmp.eq.s32.totalorder %s32, 1
      %p140 = por %p138, %p139
      %p142 = scmp.ne.s32.totalorder %s125, %s141
      %p143 = scmp.eq.s32.totalorder %s32, 0
      %p144 = por %p142, %p143
      %s145 = ssub.s32 %s34, %s41
      %p146 = scmp.eq.s32.totalorder %s145, 0
      %s148 = sadd.s32 %s147, 1
      %s149 = scalar_select %p146, %s147, %s148
      %p152 = pneg %p146
      %p153 = scmp.eq.s32.totalorder %s26, 1
      %p154 = por %p152, %p153
      %p155 = scmp.ne.s32.totalorder %s147, %s150
      %p156 = scmp.eq.s32.totalorder %s26, 0
      %p157 = por %p155, %p156
      %p158 = scmp.ne.s32.totalorder %s147, %s150
      %p159 = scmp.eq.s32.totalorder %s31, 1
      %p160 = por %p158, %p159
      %p161 = scmp.ne.s32.totalorder %s150, %s151
      %p162 = scmp.eq.s32.totalorder %s31, 0
      %p163 = por %p161, %p162
      %p164 = scmp.ne.s32.totalorder %s150, %s151
      %p165 = scmp.eq.s32.totalorder %s32, 1
      %p166 = por %p164, %p165
      %p168 = scmp.ne.s32.totalorder %s151, %s167
      %p169 = scmp.eq.s32.totalorder %s32, 0
      %p170 = por %p168, %p169
      %s171 = ssub.s32 %s34, %s41
      %p172 = scmp.eq.s32.totalorder %s171, 0
      %s174 = sadd.s32 %s173, 1
      %s175 = scalar_select %p172, %s173, %s174
      %p178 = pneg %p172
      %p179 = scmp.eq.s32.totalorder %s26, 1
      %p180 = por %p178, %p179
      %p181 = scmp.ne.s32.totalorder %s173, %s176
      %p182 = scmp.eq.s32.totalorder %s26, 0
      %p183 = por %p181, %p182
      %p184 = scmp.ne.s32.totalorder %s173, %s176
      %p185 = scmp.eq.s32.totalorder %s31, 1
      %p186 = por %p184, %p185
      %p187 = scmp.ne.s32.totalorder %s176, %s177
      %p188 = scmp.eq.s32.totalorder %s31, 0
      %p189 = por %p187, %p188
      %p190 = scmp.ne.s32.totalorder %s176, %s177
      %p191 = scmp.eq.s32.totalorder %s32, 1
      %p192 = por %p190, %p191
      %p194 = scmp.ne.s32.totalorder %s177, %s193
      %p195 = scmp.eq.s32.totalorder %s32, 0
      %p196 = por %p194, %p195
      %s197 = ssub.s32 %s34, %s41
      %p198 = scmp.eq.s32.totalorder %s197, 0
      %s200 = sadd.s32 %s199, 1
      %s201 = scalar_select %p198, %s199, %s200
      %p204 = pneg %p198
      %p205 = scmp.eq.s32.totalorder %s26, 1
      %p206 = por %p204, %p205
      %p207 = scmp.ne.s32.totalorder %s199, %s202
      %p208 = scmp.eq.s32.totalorder %s26, 0
      %p209 = por %p207, %p208
      %p210 = scmp.ne.s32.totalorder %s199, %s202
      %p211 = scmp.eq.s32.totalorder %s31, 1
      %p212 = por %p210, %p211
      %p213 = scmp.ne.s32.totalorder %s202, %s203
      %p214 = scmp.eq.s32.totalorder %s31, 0
      %p215 = por %p213, %p214
      %p216 = scmp.ne.s32.totalorder %s202, %s203
      %p217 = scmp.eq.s32.totalorder %s32, 1
      %p218 = por %p216, %p217
      %p220 = scmp.ne.s32.totalorder %s203, %s219
      %p221 = scmp.eq.s32.totalorder %s32, 0
      %p222 = por %p220, %p221
      %s223 = ssub.s32 %s34, %s41
      %p224 = scmp.eq.s32.totalorder %s223, 0
      %s226 = sadd.s32 %s225, 1
      %s227 = scalar_select %p224, %s225, %s226
      %p230 = pneg %p224
      %p231 = scmp.eq.s32.totalorder %s26, 1
      %p232 = por %p230, %p231
      %p233 = scmp.ne.s32.totalorder %s225, %s228
      %p234 = scmp.eq.s32.totalorder %s26, 0
      %p235 = por %p233, %p234
      %p236 = scmp.ne.s32.totalorder %s225, %s228
      %p237 = scmp.eq.s32.totalorder %s31, 1
      %p238 = por %p236, %p237
      %p239 = scmp.ne.s32.totalorder %s228, %s229
      %p240 = scmp.eq.s32.totalorder %s31, 0
      %p241 = por %p239, %p240
      %p242 = scmp.ne.s32.totalorder %s228, %s229
      %p243 = scmp.eq.s32.totalorder %s32, 1
      %p244 = por %p242, %p243
      %p246 = scmp.ne.s32.totalorder %s229, %s245
      %p247 = scmp.eq.s32.totalorder %s32, 0
      %p248 = por %p246, %p247
      %s249 = ssub.s32 %s34, %s41
      %p250 = scmp.eq.s32.totalorder %s249, 0
      %s252 = sadd.s32 %s251, 1
      %s253 = scalar_select %p250, %s251, %s252
      %p256 = pneg %p250
      %p257 = scmp.eq.s32.totalorder %s26, 1
      %p258 = por %p256, %p257
      %p259 = scmp.ne.s32.totalorder %s251, %s254
      %p260 = scmp.eq.s32.totalorder %s26, 0
      %p261 = por %p259, %p260
      %p262 = scmp.ne.s32.totalorder %s251, %s254
      %p263 = scmp.eq.s32.totalorder %s31, 1
      %p264 = por %p262, %p263
      %p265 = scmp.ne.s32.totalorder %s254, %s255
      %p266 = scmp.eq.s32.totalorder %s31, 0
      %p267 = por %p265, %p266
      %p268 = scmp.ne.s32.totalorder %s254, %s255
      %p269 = scmp.eq.s32.totalorder %s32, 1
      %p270 = por %p268, %p269
      %p272 = scmp.ne.s32.totalorder %s255, %s271
      %p273 = scmp.eq.s32.totalorder %s32, 0
      %p274 = por %p272, %p273
      %s275 = ssub.s32 %s34, %s41
      %p276 = scmp.eq.s32.totalorder %s275, 0
      %s278 = sadd.s32 %s277, 1
      %s279 = scalar_select %p276, %s277, %s278
      %p282 = pneg %p276
      %p283 = scmp.eq.s32.totalorder %s26, 1
      %p284 = por %p282, %p283
      %p285 = scmp.ne.s32.totalorder %s277, %s280
      %p286 = scmp.eq.s32.totalorder %s26, 0
      %p287 = por %p285, %p286
      %p288 = scmp.ne.s32.totalorder %s277, %s280
      %p289 = scmp.eq.s32.totalorder %s31, 1
      %p290 = por %p288, %p289
      %p291 = scmp.ne.s32.totalorder %s280, %s281
      %p292 = scmp.eq.s32.totalorder %s31, 0
      %p293 = por %p291, %p292
      %p294 = scmp.ne.s32.totalorder %s280, %s281
      %p295 = scmp.eq.s32.totalorder %s32, 1
      %p296 = por %p294, %p295
      %p298 = scmp.ne.s32.totalorder %s281, %s297
      %p299 = scmp.eq.s32.totalorder %s32, 0
      %p300 = por %p298, %p299
      %s301 = ssub.s32 %s34, %s41
      %p302 = scmp.eq.s32.totalorder %s301, 0
      %s304 = sadd.s32 %s303, 1
      %s305 = scalar_select %p302, %s303, %s304
      %p308 = pneg %p302
      %p309 = scmp.eq.s32.totalorder %s26, 1
      %p310 = por %p308, %p309
      %p311 = scmp.ne.s32.totalorder %s303, %s306
      %p312 = scmp.eq.s32.totalorder %s26, 0
      %p313 = por %p311, %p312
      %p314 = scmp.ne.s32.totalorder %s303, %s306
      %p315 = scmp.eq.s32.totalorder %s31, 1
      %p316 = por %p314, %p315
      %p317 = scmp.ne.s32.totalorder %s306, %s307
      %p318 = scmp.eq.s32.totalorder %s31, 0
      %p319 = por %p317, %p318
      %p320 = scmp.ne.s32.totalorder %s306, %s307
      %p321 = scmp.eq.s32.totalorder %s32, 1
      %p322 = por %p320, %p321
      %p324 = scmp.ne.s32.totalorder %s307, %s323
      %p325 = scmp.eq.s32.totalorder %s32, 0
      %p326 = por %p324, %p325
      %s327 = ssub.s32 %s34, %s41
      %p328 = scmp.eq.s32.totalorder %s327, 0
      %s330 = sadd.s32 %s329, 1
      %s331 = scalar_select %p328, %s329, %s330
      %p334 = pneg %p328
      %p335 = scmp.eq.s32.totalorder %s26, 1
      %p336 = por %p334, %p335
      %p337 = scmp.ne.s32.totalorder %s329, %s332
      %p338 = scmp.eq.s32.totalorder %s26, 0
      %p339 = por %p337, %p338
      %p340 = scmp.ne.s32.totalorder %s329, %s332
      %p341 = scmp.eq.s32.totalorder %s31, 1
      %p342 = por %p340, %p341
      %p343 = scmp.ne.s32.totalorder %s332, %s333
      %p344 = scmp.eq.s32.totalorder %s31, 0
      %p345 = por %p343, %p344
      %p346 = scmp.ne.s32.totalorder %s332, %s333
      %p347 = scmp.eq.s32.totalorder %s32, 1
      %p348 = por %p346, %p347
      %p350 = scmp.ne.s32.totalorder %s333, %s349
      %p351 = scmp.eq.s32.totalorder %s32, 0
      %p352 = por %p350, %p351
      %s353 = ssub.s32 %s34, %s41
      %p354 = scmp.eq.s32.totalorder %s353, 0
      %s356 = sadd.s32 %s355, 1
      %s357 = scalar_select %p354, %s355, %s356
      %p360 = pneg %p354
      %p361 = scmp.eq.s32.totalorder %s26, 1
      %p362 = por %p360, %p361
      %p363 = scmp.ne.s32.totalorder %s355, %s358
      %p364 = scmp.eq.s32.totalorder %s26, 0
      %p365 = por %p363, %p364
      %p366 = scmp.ne.s32.totalorder %s355, %s358
      %p367 = scmp.eq.s32.totalorder %s31, 1
      %p368 = por %p366, %p367
      %p369 = scmp.ne.s32.totalorder %s358, %s359
      %p370 = scmp.eq.s32.totalorder %s31, 0
      %p371 = por %p369, %p370
      %p372 = scmp.ne.s32.totalorder %s358, %s359
      %p373 = scmp.eq.s32.totalorder %s32, 1
      %p374 = por %p372, %p373
      %p376 = scmp.ne.s32.totalorder %s359, %s375
      %p377 = scmp.eq.s32.totalorder %s32, 0
      %p378 = por %p376, %p377
      %s379 = ssub.s32 %s34, %s41
      %p380 = scmp.eq.s32.totalorder %s379, 0
      %s382 = sadd.s32 %s381, 1
      %s383 = scalar_select %p380, %s381, %s382
      %p386 = pneg %p380
      %p387 = scmp.eq.s32.totalorder %s26, 1
      %p388 = por %p386, %p387
      %p389 = scmp.ne.s32.totalorder %s381, %s384
      %p390 = scmp.eq.s32.totalorder %s26, 0
      %p391 = por %p389, %p390
      %p392 = scmp.ne.s32.totalorder %s381, %s384
      %p393 = scmp.eq.s32.totalorder %s31, 1
      %p394 = por %p392, %p393
      %p395 = scmp.ne.s32.totalorder %s384, %s385
      %p396 = scmp.eq.s32.totalorder %s31, 0
      %p397 = por %p395, %p396
      %p398 = scmp.ne.s32.totalorder %s384, %s385
      %p399 = scmp.eq.s32.totalorder %s32, 1
      %p400 = por %p398, %p399
      %p402 = scmp.ne.s32.totalorder %s385, %s401
      %p403 = scmp.eq.s32.totalorder %s32, 0
      %p404 = por %p402, %p403
      %s405 = ssub.s32 %s34, %s41
      %p406 = scmp.eq.s32.totalorder %s405, 0
      %s408 = sadd.s32 %s407, 1
      %s409 = scalar_select %p406, %s407, %s408
      %p412 = pneg %p406
      %p413 = scmp.eq.s32.totalorder %s26, 1
      %p414 = por %p412, %p413
      %p415 = scmp.ne.s32.totalorder %s407, %s410
      %p416 = scmp.eq.s32.totalorder %s26, 0
      %p417 = por %p415, %p416
      %p418 = scmp.ne.s32.totalorder %s407, %s410
      %p419 = scmp.eq.s32.totalorder %s31, 1
      %p420 = por %p418, %p419
      %p421 = scmp.ne.s32.totalorder %s410, %s411
      %p422 = scmp.eq.s32.totalorder %s31, 0
      %p423 = por %p421, %p422
      %p424 = scmp.ne.s32.totalorder %s410, %s411
      %p425 = scmp.eq.s32.totalorder %s32, 1
      %p426 = por %p424, %p425
      %p428 = scmp.ne.s32.totalorder %s411, %s427
      %p429 = scmp.eq.s32.totalorder %s32, 0
      %p430 = por %p428, %p429
      %s432 = sadd.s32 %s431, 1
      %p435 = scmp.eq.s32.totalorder %s26, 1
      %p436 = scmp.ne.s32.totalorder %s431, %s433
      %p437 = scmp.eq.s32.totalorder %s26, 0
      %p438 = por %p436, %p437
      %p439 = scmp.ne.s32.totalorder %s431, %s433
      %p440 = scmp.eq.s32.totalorder %s31, 1
      %p441 = por %p439, %p440
      %p442 = scmp.ne.s32.totalorder %s433, %s434
      %p443 = scmp.eq.s32.totalorder %s31, 0
      %p444 = por %p442, %p443
      %p445 = scmp.ne.s32.totalorder %s433, %s434
      %p446 = scmp.eq.s32.totalorder %s32, 1
      %p447 = por %p445, %p446
      %p449 = scmp.ne.s32.totalorder %s434, %s448
      %p450 = scmp.eq.s32.totalorder %s32, 0
      %p451 = por %p449, %p450
      %s453 = sadd.s32 %s452, 1
      %p456 = scmp.eq.s32.totalorder %s26, 1
      %p457 = scmp.ne.s32.totalorder %s452, %s454
      %p458 = scmp.eq.s32.totalorder %s26, 0
      %p459 = por %p457, %p458
      %p460 = scmp.ne.s32.totalorder %s452, %s454
      %p461 = scmp.eq.s32.totalorder %s31, 1
      %p462 = por %p460, %p461
      %p463 = scmp.ne.s32.totalorder %s454, %s455
      %p464 = scmp.eq.s32.totalorder %s31, 0
      %p465 = por %p463, %p464
      %p466 = scmp.ne.s32.totalorder %s454, %s455
      %p467 = scmp.eq.s32.totalorder %s32, 1
      %p468 = por %p466, %p467
      %p470 = scmp.ne.s32.totalorder %s455, %s469
      %p471 = scmp.eq.s32.totalorder %s32, 0
      %p472 = por %p470, %p471
      %s474 = sadd.s32 %s473, 1
      %p477 = scmp.eq.s32.totalorder %s26, 1
      %p478 = scmp.ne.s32.totalorder %s473, %s475
      %p479 = scmp.eq.s32.totalorder %s26, 0
      %p480 = por %p478, %p479
      %p481 = scmp.ne.s32.totalorder %s473, %s475
      %p482 = scmp.eq.s32.totalorder %s31, 1
      %p483 = por %p481, %p482
      %p484 = scmp.ne.s32.totalorder %s475, %s476
      %p485 = scmp.eq.s32.totalorder %s31, 0
      %p486 = por %p484, %p485
      %p487 = scmp.ne.s32.totalorder %s475, %s476
      %p488 = scmp.eq.s32.totalorder %s32, 1
      %p489 = por %p487, %p488
      %p491 = scmp.ne.s32.totalorder %s476, %s490
      %p492 = scmp.eq.s32.totalorder %s32, 0
      %p493 = por %p491, %p492
      %s494 = ssub.s32 %s33, %s45
      %p495 = scmp.eq.s32.totalorder %s494, 0
      %s497 = sadd.s32 %s496, 1
      %s498 = scalar_select %p495, %s496, %s497
      %p501 = pneg %p495
      %p502 = scmp.eq.s32.totalorder %s26, 1
      %p503 = por %p501, %p502
      %p504 = scmp.ne.s32.totalorder %s496, %s499
      %p505 = scmp.eq.s32.totalorder %s26, 0
      %p506 = por %p504, %p505
      %p507 = scmp.ne.s32.totalorder %s496, %s499
      %p508 = scmp.eq.s32.totalorder %s31, 1
      %p509 = por %p507, %p508
      %p510 = scmp.ne.s32.totalorder %s499, %s500
      %p511 = scmp.eq.s32.totalorder %s31, 0
      %p512 = por %p510, %p511
      %p513 = scmp.ne.s32.totalorder %s499, %s500
      %p514 = scmp.eq.s32.totalorder %s32, 1
      %p515 = por %p513, %p514
      %p517 = scmp.ne.s32.totalorder %s500, %s516
      %p518 = scmp.eq.s32.totalorder %s32, 0
      %p519 = por %p517, %p518
      %p520 = scmp.le.s32.totalorder 1, %s26
      %p521 = scmp.lt.s32.totalorder %s26, 3
      %p522 = pnand %p520, %p521
      %p523 = pneg %p522
      // Predicated region
      $region9: #{tpu_custom_call.1} parent=5 // pred_check
        _
      $region10: #{tpu_custom_call.1} parent=5 // pred_check_branch
        %525 = sbr.rel (%p522) target = $region12
      $region11: #{tpu_custom_call.1} parent=5 // pred_region
        %s526 = ssub.s32 %s26, 1
        // Predicated region
        $region13: #{tpu_custom_call.1} parent=11 // pred_check
          %p527 = pneg %p64
        $region14: #{tpu_custom_call.1} parent=11 // pred_check_branch
          %529 = sbr.rel (%p527) target = $region16
        $region15: #{tpu_custom_call.1} parent=11 // pred_region
          %s530 = smul.u32 2, %s35
          %p531 = scmp.lt.s32.totalorder %s530, 1
          %s532 = scalar_select %p531, %s530, 1
          %s533 = smul.addr %s532, 2
          %s534 = smul.addr %s533, 8
          %s535 = scalar_lea.vmem %s0, %s534
          %s536 = smul.u32 2, %s35
        $region16: #{tpu_custom_call.1} parent=11 // pred_fallthru
          _
        // Predicated region
        $region17: #{tpu_custom_call.1} parent=11 // pred_check
          %p537 = pneg %p85
        $region18: #{tpu_custom_call.1} parent=11 // pred_check_branch
          %539 = sbr.rel (%p537) target = $region20
        $region19: #{tpu_custom_call.1} parent=11 // pred_region
          _
        $region20: #{tpu_custom_call.1} parent=11 // pred_fallthru
          _
        // Predicated region
        $region21: #{tpu_custom_call.1} parent=11 // pred_check
          %p540 = pneg %p111
        $region22: #{tpu_custom_call.1} parent=11 // pred_check_branch
          %542 = sbr.rel (%p540) target = $region24
        $region23: #{tpu_custom_call.1} parent=11 // pred_region
          %s543 = smul.u32 2, %s35
          %p544 = scmp.lt.s32.totalorder %s543, 1
          %s545 = scalar_select %p544, %s543, 1
          %s546 = scalar_lea.vmem %s2, %s545
          %s547 = smul.u32 2, %s35
        $region24: #{tpu_custom_call.1} parent=11 // pred_fallthru
          _
        // Predicated region
        $region25: #{tpu_custom_call.1} parent=11 // pred_check
          %p548 = pneg %p444
        $region26: #{tpu_custom_call.1} parent=11 // pred_check_branch
          %550 = sbr.rel (%p548) target = $region28
        $region27: #{tpu_custom_call.1} parent=11 // pred_region
          _
        $region28: #{tpu_custom_call.1} parent=11 // pred_fallthru
          _
        // Predicated region
        $region29: #{tpu_custom_call.1} parent=11 // pred_check
          %p551 = pneg %p465
        $region30: #{tpu_custom_call.1} parent=11 // pred_check_branch
          %553 = sbr.rel (%p551) target = $region32
        $region31: #{tpu_custom_call.1} parent=11 // pred_region
          _
        $region32: #{tpu_custom_call.1} parent=11 // pred_fallthru
          _
        // Predicated region
        $region33: #{tpu_custom_call.1} parent=11 // pred_check
          %p554 = pneg %p486
        $region34: #{tpu_custom_call.1} parent=11 // pred_check_branch
          %556 = sbr.rel (%p554) target = $region36
        $region35: #{tpu_custom_call.1} parent=11 // pred_region
          _
        $region36: #{tpu_custom_call.1} parent=11 // pred_fallthru
          _
      $region12: #{tpu_custom_call.1} parent=5 // pred_fallthru
        _
      %p557 = scmp.lt.s32.totalorder %s26, 2
      // Predicated region
      $region37: #{tpu_custom_call.1} parent=5 // pred_check
        %p558 = pneg %p557
      $region38: #{tpu_custom_call.1} parent=5 // pred_check_branch
        %560 = sbr.rel (%p558) target = $region40
      $region39: #{tpu_custom_call.1} parent=5 // pred_region
        // Predicated region
        $region41: #{tpu_custom_call.1} parent=39 // pred_check
          %p561 = pneg %p131
        $region42: #{tpu_custom_call.1} parent=39 // pred_check_branch
          %563 = sbr.rel (%p561) target = $region44
        $region43: #{tpu_custom_call.1} parent=39 // pred_region
          %p564 = scmp.lt.s32.totalorder %s34, 1
          %s565 = scalar_select %p564, %s34, 1
          %s566 = scalar_lea.vmem %s3, %s565
        $region44: #{tpu_custom_call.1} parent=39 // pred_fallthru
          _
        // Predicated region
        $region45: #{tpu_custom_call.1} parent=39 // pred_check
          %p567 = pneg %p157
        $region46: #{tpu_custom_call.1} parent=39 // pred_check_branch
          %569 = sbr.rel (%p567) target = $region48
        $region47: #{tpu_custom_call.1} parent=39 // pred_region
          %p570 = scmp.lt.s32.totalorder %s34, 1
          %s571 = scalar_select %p570, %s34, 1
          %s572 = scalar_lea.vmem %s4, %s571
        $region48: #{tpu_custom_call.1} parent=39 // pred_fallthru
          _
        // Predicated region
        $region49: #{tpu_custom_call.1} parent=39 // pred_check
          %p573 = pneg %p183
        $region50: #{tpu_custom_call.1} parent=39 // pred_check_branch
          %575 = sbr.rel (%p573) target = $region52
        $region51: #{tpu_custom_call.1} parent=39 // pred_region
          %p576 = scmp.lt.s32.totalorder %s34, 1
          %s577 = scalar_select %p576, %s34, 1
          %s578 = smul.addr %s577, 4
          %s579 = smul.addr %s578, 4
          %s580 = scalar_lea.vmem %s5, %s579
        $region52: #{tpu_custom_call.1} parent=39 // pred_fallthru
          _
        // Predicated region
        $region53: #{tpu_custom_call.1} parent=39 // pred_check
          %p581 = pneg %p209
        $region54: #{tpu_custom_call.1} parent=39 // pred_check_branch
          %583 = sbr.rel (%p581) target = $region56
        $region55: #{tpu_custom_call.1} parent=39 // pred_region
          %p584 = scmp.lt.s32.totalorder %s34, 1
          %s585 = scalar_select %p584, %s34, 1
          %s586 = scalar_lea.vmem %s6, %s585
        $region56: #{tpu_custom_call.1} parent=39 // pred_fallthru
          _
        // Predicated region
        $region57: #{tpu_custom_call.1} parent=39 // pred_check
          %p587 = pneg %p235
        $region58: #{tpu_custom_call.1} parent=39 // pred_check_branch
          %589 = sbr.rel (%p587) target = $region60
        $region59: #{tpu_custom_call.1} parent=39 // pred_region
          %p590 = scmp.lt.s32.totalorder %s34, 1
          %s591 = scalar_select %p590, %s34, 1
          %s592 = smul.addr %s591, 4
          %s593 = smul.addr %s592, 4
          %s594 = scalar_lea.vmem %s7, %s593
        $region60: #{tpu_custom_call.1} parent=39 // pred_fallthru
          _
        // Predicated region
        $region61: #{tpu_custom_call.1} parent=39 // pred_check
          %p595 = pneg %p261
        $region62: #{tpu_custom_call.1} parent=39 // pred_check_branch
          %597 = sbr.rel (%p595) target = $region64
        $region63: #{tpu_custom_call.1} parent=39 // pred_region
          %p598 = scmp.lt.s32.totalorder %s34, 1
          %s599 = scalar_select %p598, %s34, 1
          %s600 = scalar_lea.vmem %s8, %s599
        $region64: #{tpu_custom_call.1} parent=39 // pred_fallthru
          _
        // Predicated region
        $region65: #{tpu_custom_call.1} parent=39 // pred_check
          %p601 = pneg %p287
        $region66: #{tpu_custom_call.1} parent=39 // pred_check_branch
          %603 = sbr.rel (%p601) target = $region68
        $region67: #{tpu_custom_call.1} parent=39 // pred_region
          %p604 = scmp.lt.s32.totalorder %s34, 1
          %s605 = scalar_select %p604, %s34, 1
          %s606 = scalar_lea.vmem %s9, %s605
        $region68: #{tpu_custom_call.1} parent=39 // pred_fallthru
          _
        // Predicated region
        $region69: #{tpu_custom_call.1} parent=39 // pred_check
          %p607 = pneg %p313
        $region70: #{tpu_custom_call.1} parent=39 // pred_check_branch
          %609 = sbr.rel (%p607) target = $region72
        $region71: #{tpu_custom_call.1} parent=39 // pred_region
          %p610 = scmp.lt.s32.totalorder %s34, 1
          %s611 = scalar_select %p610, %s34, 1
          %s612 = scalar_lea.vmem %s10, %s611
        $region72: #{tpu_custom_call.1} parent=39 // pred_fallthru
          _
        // Predicated region
        $region73: #{tpu_custom_call.1} parent=39 // pred_check
          %p613 = pneg %p339
        $region74: #{tpu_custom_call.1} parent=39 // pred_check_branch
          %615 = sbr.rel (%p613) target = $region76
        $region75: #{tpu_custom_call.1} parent=39 // pred_region
          %p616 = scmp.lt.s32.totalorder %s34, 1
          %s617 = scalar_select %p616, %s34, 1
          %s618 = smul.addr %s617, 4
          %s619 = smul.addr %s618, 4
          %s620 = scalar_lea.vmem %s11, %s619
        $region76: #{tpu_custom_call.1} parent=39 // pred_fallthru
          _
        // Predicated region
        $region77: #{tpu_custom_call.1} parent=39 // pred_check
          %p621 = pneg %p365
        $region78: #{tpu_custom_call.1} parent=39 // pred_check_branch
          %623 = sbr.rel (%p621) target = $region80
        $region79: #{tpu_custom_call.1} parent=39 // pred_region
          %p624 = scmp.lt.s32.totalorder %s34, 1
          %s625 = scalar_select %p624, %s34, 1
          %s626 = scalar_lea.vmem %s12, %s625
        $region80: #{tpu_custom_call.1} parent=39 // pred_fallthru
          _
        // Predicated region
        $region81: #{tpu_custom_call.1} parent=39 // pred_check
          %p627 = pneg %p391
        $region82: #{tpu_custom_call.1} parent=39 // pred_check_branch
          %629 = sbr.rel (%p627) target = $region84
        $region83: #{tpu_custom_call.1} parent=39 // pred_region
          %p630 = scmp.lt.s32.totalorder %s34, 1
          %s631 = scalar_select %p630, %s34, 1
          %s632 = smul.addr %s631, 16
          %s633 = smul.addr %s632, 4
          %s634 = scalar_lea.vmem %s13, %s633
        $region84: #{tpu_custom_call.1} parent=39 // pred_fallthru
          _
        // Predicated region
        $region85: #{tpu_custom_call.1} parent=39 // pred_check
          %p635 = pneg %p417
        $region86: #{tpu_custom_call.1} parent=39 // pred_check_branch
          %637 = sbr.rel (%p635) target = $region88
        $region87: #{tpu_custom_call.1} parent=39 // pred_region
          %p638 = scmp.lt.s32.totalorder %s34, 1
          %s639 = scalar_select %p638, %s34, 1
          %s640 = scalar_lea.vmem %s14, %s639
        $region88: #{tpu_custom_call.1} parent=39 // pred_fallthru
          _
      $region40: #{tpu_custom_call.1} parent=5 // pred_fallthru
        _
      %p641 = scmp.le.s32.totalorder 1, %s26
      %p642 = scmp.lt.s32.totalorder %s26, 3
      %p643 = pnand %p641, %p642
      %p644 = pneg %p643
      // Predicated region
      $region89: #{tpu_custom_call.1} parent=5 // pred_check
        _
      $region90: #{tpu_custom_call.1} parent=5 // pred_check_branch
        %646 = sbr.rel (%p643) target = $region92
      $region91: #{tpu_custom_call.1} parent=5 // pred_region
        %s647 = ssub.s32 %s26, 1
        %s648 = smul.u32 2, %s35
        %p649 = scmp.lt.s32.totalorder %s648, 1
        %s650 = scalar_select %p649, %s648, 1
        %s651 = smul.addr %s650, 2
        %s652 = smul.addr %s651, 8
        %s653 = scalar_lea.vmem %s0, %s652
        %p654 = pneg %p64
        %p655 = pneg %p61
        %p656 = pneg %p85
        %p657 = pneg %p82
        %s658 = smul.u32 2, %s35
        %p659 = scmp.lt.s32.totalorder %s658, 1
        %s660 = scalar_select %p659, %s658, 1
        %s661 = scalar_lea.vmem %s2, %s660
        %p662 = pneg %p111
        %p663 = pneg %p108
        %p664 = scmp.lt.s32.totalorder %s36, 1
        %s665 = scalar_select %p664, %s36, 1
        %s666 = scalar_lea.vmem %s3, %s665
        %p667 = pneg %p137
        %p668 = pneg %p134
        %p669 = scmp.lt.s32.totalorder %s36, 1
        %s670 = scalar_select %p669, %s36, 1
        %s671 = scalar_lea.vmem %s4, %s670
        %p672 = pneg %p163
        %p673 = pneg %p160
        %p674 = scmp.lt.s32.totalorder %s36, 1
        %s675 = scalar_select %p674, %s36, 1
        %s676 = smul.addr %s675, 4
        %s677 = smul.addr %s676, 4
        %s678 = scalar_lea.vmem %s5, %s677
        %p679 = pneg %p189
        %p680 = pneg %p186
        %p681 = scmp.lt.s32.totalorder %s36, 1
        %s682 = scalar_select %p681, %s36, 1
        %s683 = scalar_lea.vmem %s6, %s682
        %p684 = pneg %p215
        %p685 = pneg %p212
        %p686 = scmp.lt.s32.totalorder %s36, 1
        %s687 = scalar_select %p686, %s36, 1
        %s688 = smul.addr %s687, 4
        %s689 = smul.addr %s688, 4
        %s690 = scalar_lea.vmem %s7, %s689
        %p691 = pneg %p241
        %p692 = pneg %p238
        %p693 = scmp.lt.s32.totalorder %s36, 1
        %s694 = scalar_select %p693, %s36, 1
        %s695 = scalar_lea.vmem %s8, %s694
        %p696 = pneg %p267
        %p697 = pneg %p264
        %p698 = scmp.lt.s32.totalorder %s36, 1
        %s699 = scalar_select %p698, %s36, 1
        %s700 = scalar_lea.vmem %s9, %s699
        %p701 = pneg %p293
        %p702 = pneg %p290
        %p703 = scmp.lt.s32.totalorder %s36, 1
        %s704 = scalar_select %p703, %s36, 1
        %s705 = scalar_lea.vmem %s10, %s704
        %p706 = pneg %p319
        %p707 = pneg %p316
        %p708 = scmp.lt.s32.totalorder %s36, 1
        %s709 = scalar_select %p708, %s36, 1
        %s710 = smul.addr %s709, 4
        %s711 = smul.addr %s710, 4
        %s712 = scalar_lea.vmem %s11, %s711
        %p713 = pneg %p345
        %p714 = pneg %p342
        %p715 = scmp.lt.s32.totalorder %s36, 1
        %s716 = scalar_select %p715, %s36, 1
        %s717 = scalar_lea.vmem %s12, %s716
        %p718 = pneg %p371
        %p719 = pneg %p368
        %p720 = scmp.lt.s32.totalorder %s36, 1
        %s721 = scalar_select %p720, %s36, 1
        %s722 = smul.addr %s721, 16
        %s723 = smul.addr %s722, 4
        %s724 = scalar_lea.vmem %s13, %s723
        %p725 = pneg %p397
        %p726 = pneg %p394
        %p727 = scmp.lt.s32.totalorder %s36, 1
        %s728 = scalar_select %p727, %s36, 1
        %s729 = scalar_lea.vmem %s14, %s728
        %p730 = pneg %p423
        %p731 = pneg %p420
        %p732 = pneg %p444
        %p733 = pneg %p441
        %p734 = pneg %p465
        %p735 = pneg %p462
        %p736 = pneg %p486
        %p737 = pneg %p483
        %p738 = pneg %p512
        %p739 = pneg %p509
        %s740 = smul.u32 2, %s35
        %p741 = scmp.lt.s32.totalorder %s740, 1
        %s742 = scalar_select %p741, %s740, 1
        %s743 = smul.addr %s742, 2
        %s744 = smul.addr %s743, 8
        %s745 = scalar_lea.vmem %s0, %s744
        %s746 = smul.u32 2, %s35
        %s747 = smul.u32 2, %s35
        %p748 = scmp.lt.s32.totalorder %s747, 1
        %s749 = scalar_select %p748, %s747, 1
        %s750 = scalar_lea.vmem %s2, %s749
        %s751 = smul.u32 2, %s35
        %p752 = scmp.lt.s32.totalorder %s36, 1
        %s753 = scalar_select %p752, %s36, 1
        %s754 = scalar_lea.vmem %s3, %s753
        %p755 = scmp.lt.s32.totalorder %s36, 1
        %s756 = scalar_select %p755, %s36, 1
        %s757 = scalar_lea.vmem %s4, %s756
        %p758 = scmp.lt.s32.totalorder %s36, 1
        %s759 = scalar_select %p758, %s36, 1
        %s760 = smul.addr %s759, 4
        %s761 = smul.addr %s760, 4
        %s762 = scalar_lea.vmem %s5, %s761
        %p763 = scmp.lt.s32.totalorder %s36, 1
        %s764 = scalar_select %p763, %s36, 1
        %s765 = scalar_lea.vmem %s6, %s764
        %p766 = scmp.lt.s32.totalorder %s36, 1
        %s767 = scalar_select %p766, %s36, 1
        %s768 = smul.addr %s767, 4
        %s769 = smul.addr %s768, 4
        %s770 = scalar_lea.vmem %s7, %s769
        %p771 = scmp.lt.s32.totalorder %s36, 1
        %s772 = scalar_select %p771, %s36, 1
        %s773 = scalar_lea.vmem %s8, %s772
        %p774 = scmp.lt.s32.totalorder %s36, 1
        %s775 = scalar_select %p774, %s36, 1
        %s776 = scalar_lea.vmem %s9, %s775
        %p777 = scmp.lt.s32.totalorder %s36, 1
        %s778 = scalar_select %p777, %s36, 1
        %s779 = scalar_lea.vmem %s10, %s778
        %p780 = scmp.lt.s32.totalorder %s36, 1
        %s781 = scalar_select %p780, %s36, 1
        %s782 = smul.addr %s781, 4
        %s783 = smul.addr %s782, 4
        %s784 = scalar_lea.vmem %s11, %s783
        %p785 = scmp.lt.s32.totalorder %s36, 1
        %s786 = scalar_select %p785, %s36, 1
        %s787 = scalar_lea.vmem %s12, %s786
        %p788 = scmp.lt.s32.totalorder %s36, 1
        %s789 = scalar_select %p788, %s36, 1
        %s790 = smul.addr %s789, 16
        %s791 = smul.addr %s790, 4
        %s792 = scalar_lea.vmem %s13, %s791
        %p793 = scmp.lt.s32.totalorder %s36, 1
        %s794 = scalar_select %p793, %s36, 1
        %s795 = scalar_lea.vmem %s14, %s794
        %s796 = smul.u32 2, %s35
        %p798 = scmp.eq.s32.totalorder %s36, 0
        // Predicated region
        $region93: #{tpu_custom_call.1} parent=91 // pred_check
          %p799 = pneg %p798
        $region94: #{tpu_custom_call.1} parent=91 // pred_check_branch
          %801 = sbr.rel (%p799) target = $region96
        $region95: #{tpu_custom_call.1} parent=91 // pred_region
          %v802 = vld [vmem:[%s745] sm:$0xff]
          %v803 = vld [vmem:[%s745 + $0x8] sm:$0xff]
          %v804 = vld [vmem:[%s745 + $0x10] sm:$0xff]
          %v805 = vld [vmem:[%s745 + $0x18] sm:$0xff]
          %vm806 = vcmask 261120
          %807 = vst.msk [vmem:[#allocation2] sm:$0xff] %vm806, %v802
          %808 = vst.msk [vmem:[#allocation2 + $0x8] sm:$0xff] %vm806, %v803
          %809 = vst.msk [vmem:[#allocation2 + $0x10] sm:$0xff] %vm806, %v804
          %810 = vst.msk [vmem:[#allocation2 + $0x18] sm:$0xff] %vm806, %v805
          %v811 = vld [vmem:[%s1] sm:$0xff]
          %v812 = vld [vmem:[%s1 + $0x8] sm:$0xff]
          %vm813 = vcmp.gt.f32.partialorder %v811, 0.5
          %vm814 = vcmp.gt.f32.partialorder %v812, 0.5
          %v815 = vld [vmem:[%s750] sm:$0x1]
          %v816 = vld [vmem:[%s750 + $0x1] sm:$0x1]
          %vm817 = vcmp.gt.f32.partialorder %v815, 0.5
          %vm818 = vcmp.gt.f32.partialorder %v816, 0.5
          %v819 = vsel %vm813, 1, 0
          %v820 = vsel %vm814, 1, 0
          %vm821 = vcmp.eq.s32.totalorder %v819, 1
          %vm822 = vcmp.eq.s32.totalorder %v820, 1
          %v823 = vsel %vm817, 1, 0
          %v824 = vsel %vm818, 1, 0
          %v825 = vlaneseq
          %v826 = vshrl.u32 %v825, 7
          %v827 = vsub.s32 0, %v826
          %v828 = vrot.slane %v823, %v827
          %v829 = vlaneseq
          %v830 = vshrl.u32 %v829, 7
          %v831 = vsub.s32 0, %v830
          %v832 = vrot.slane %v824, %v831
          %vm833 = vcmp.eq.s32.totalorder %v828, 1
          %vm834 = vcmp.eq.s32.totalorder %v832, 1
          %vm835 = vmand %vm821, %vm833
          %vm836 = vmand %vm822, %vm833
          %vm837 = vmand %vm821, %vm834
          %vm838 = vmand %vm822, %vm834
          %v839 = vsel %vm835, 0.0, -1e+09
          %v840 = vsel %vm836, 0.0, -1e+09
          %v841 = vsel %vm837, 0.0, -1e+09
          %v842 = vsel %vm838, 0.0, -1e+09
          %vm843 = vcmask 130048
          %844 = vst.msk [vmem:[#allocation3] sm:$0xff] %vm843, %v839
          %845 = vst.msk [vmem:[#allocation3 + $0x8] sm:$0xff] %vm843, %v840
          %846 = vst.msk [vmem:[#allocation3 + $0x10] sm:$0xff] %vm843, %v841
          %847 = vst.msk [vmem:[#allocation3 + $0x18] sm:$0xff] %vm843, %v842
        $region96: #{tpu_custom_call.1} parent=91 // pred_fallthru
          _
        %v848 = vld [vmem:[#allocation2] sm:$0xff]
        %v849 = vld [vmem:[#allocation2 + $0x8] sm:$0xff]
        %v850 = vld [vmem:[#allocation2 + $0x10] sm:$0xff]
        %v851 = vld [vmem:[#allocation2 + $0x18] sm:$0xff]
        %v852 = vld [vmem:[#allocation3] sm:$0xff]
        %v853 = vld [vmem:[#allocation3 + $0x8] sm:$0xff]
        %v854 = vld [vmem:[#allocation3 + $0x10] sm:$0xff]
        %v855 = vld [vmem:[#allocation3 + $0x18] sm:$0xff]
        %v856 = vld [vmem:[%s754] sm:$0x1]
        %v857 = vld [vmem:[%s757] sm:$0x1]
        %vm858 = vcmask 261120
        %v859 = vsel %vm858, %v848, 0.0
        %860 = vadd.xlane.f32.xlu0 %v859
        %v861 = vpop.xlane.xlu0 %860
        %v862 = vsel %vm858, %v849, 0.0
        %863 = vadd.xlane.f32.xlu0 %v862
        %v864 = vpop.xlane.xlu0 %863
        %v865 = vsel %vm858, %v850, 0.0
        %866 = vadd.xlane.f32.xlu0 %v865
        %v867 = vpop.xlane.xlu0 %866
        %v868 = vsel %vm858, %v851, 0.0
        %869 = vadd.xlane.f32.xlu0 %v868
        %v870 = vpop.xlane.xlu0 %869
        %v871 = vrcp.pop 32.0
        %v872 = vmul.f32 %v861, %v871
        %v873 = vmul.f32 %v864, %v871
        %v874 = vmul.f32 %v867, %v871
        %v875 = vmul.f32 %v870, %v871
        %v876 = vsub.f32 %v848, %v872
        %v877 = vsub.f32 %v849, %v873
        %v878 = vsub.f32 %v850, %v874
        %v879 = vsub.f32 %v851, %v875
        %v880 = vmul.f32 %v876, %v876
        %v881 = vmul.f32 %v877, %v877
        %v882 = vmul.f32 %v878, %v878
        %v883 = vmul.f32 %v879, %v879
        %v884 = vsel %vm858, %v880, 0.0
        %885 = vadd.xlane.f32.xlu0 %v884
        %v886 = vpop.xlane.xlu0 %885
        %v887 = vsel %vm858, %v881, 0.0
        %888 = vadd.xlane.f32.xlu0 %v887
        %v889 = vpop.xlane.xlu0 %888
        %v890 = vsel %vm858, %v882, 0.0
        %891 = vadd.xlane.f32.xlu0 %v890
        %v892 = vpop.xlane.xlu0 %891
        %v893 = vsel %vm858, %v883, 0.0
        %894 = vadd.xlane.f32.xlu0 %v893
        %v895 = vpop.xlane.xlu0 %894
        %v896 = vmul.f32 %v886, %v871
        %v897 = vmul.f32 %v889, %v871
        %v898 = vmul.f32 %v892, %v871
        %v899 = vmul.f32 %v895, %v871
        %v900 = vadd.f32 %v896, 1e-05
        %v901 = vadd.f32 %v897, 1e-05
        %v902 = vadd.f32 %v898, 1e-05
        %v903 = vadd.f32 %v899, 1e-05
        %v904 = vrsqrt.pop %v900
        %v905 = vrsqrt.pop %v901
        %v906 = vrsqrt.pop %v902
        %v907 = vrsqrt.pop %v903
        %v908 = vmul.f32 %v876, %v904
        %v909 = vmul.f32 %v877, %v905
        %v910 = vmul.f32 %v878, %v906
        %v911 = vmul.f32 %v879, %v907
        %v913 = vlaneseq
        %v914 = vshrl.u32 %v913, 7
        %v915 = vsub.s32 0, %v914
        %v916 = vrot.slane %v856, %v915
        %v918 = vmul.f32 %v908, %v916
        %v919 = vmul.f32 %v909, %v916
        %v920 = vmul.f32 %v910, %v916
        %v921 = vmul.f32 %v911, %v916
        %v923 = vlaneseq
        %v924 = vshrl.u32 %v923, 7
        %v925 = vsub.s32 0, %v924
        %v926 = vrot.slane %v857, %v925
        %v928 = vadd.f32 %v918, %v926
        %v929 = vadd.f32 %v919, %v926
        %v930 = vadd.f32 %v920, %v926
        %v931 = vadd.f32 %v921, %v926
        %v932 = vpack.c.bf16 %v929, %v928
        %v933 = vpack.c.bf16 %v931, %v930
        %v934 = vld [vmem:[%s762] sm:$0xf]
        %v935 = vld [vmem:[%s762 + $0x4] sm:$0xf]
        %v936 = vld [vmem:[%s762 + $0x8] sm:$0xf]
        %v937 = vld [vmem:[%s762 + $0xc] sm:$0xf]
        %v938 = vld [vmem:[%s765] sm:$0x1]
        %v940 = vlaneseq
        %v941 = vshrl.u32 %v940, 7
        %v942 = vsub.s32 0, %v941
        %v943 = vrot.slane %v938, %v942
        %v949 = vunpack.c.l.b16 %v934
        %v950 = vunpack.c.l.b16 %v935
        %v951 = vunpack.c.l.b16 %v936
        %v952 = vunpack.c.l.b16 %v937
        %v953 = vpack.c.b16 %v950, %v949
        %v954 = vpack.c.b16 %v952, %v951
        %v958 = vsel %vm858, %v932, 0
        %v961 = vsel %vm858, %v933, 0
        %963 = vmatprep.subr.bf16.mxu0 0
        %964 = vmatpush1.bf16.msra.mxu0 %v953
        %965 = vmatprep.subr.bf16.mxu0 0
        %966 = vmatpush1.bf16.msra.mxu0 %v954
        %967 = vmatprep.subr.bf16.mxu0 0
        %968 = vmatpush1.bf16.msra.mxu0 0
        %969 = vmatprep.subr.bf16.mxu0 0
        %970 = vmatpush1.bf16.msra.mxu0 0
        %971 = vmatprep.subr.bf16.mxu0 0
        %972 = vmatpush1.bf16.msra.mxu0 0
        %973 = vmatprep.subr.bf16.mxu0 0
        %974 = vmatpush1.bf16.msra.mxu0 0
        %975 = vmatprep.subr.bf16.mxu0 0
        %976 = vmatpush1.bf16.msra.mxu0 0
        %977 = vmatprep.subr.bf16.mxu0 0
        %978 = vmatpush1.bf16.msra.mxu0 0
        %979 = vmatprep.subr.bf16.mxu0 0
        %980 = vmatpush1.bf16.msra.mxu0 0
        %981 = vmatprep.subr.bf16.mxu0 0
        %982 = vmatpush1.bf16.msra.mxu0 0
        %983 = vmatprep.subr.bf16.mxu0 0
        %984 = vmatpush1.bf16.msra.mxu0 0
        %985 = vmatprep.subr.bf16.mxu0 0
        %986 = vmatpush1.bf16.msra.mxu0 0
        %987 = vmatprep.subr.bf16.mxu0 0
        %988 = vmatpush1.bf16.msra.mxu0 0
        %989 = vmatprep.subr.bf16.mxu0 0
        %990 = vmatpush1.bf16.msra.mxu0 0
        %991 = vmatprep.subr.bf16.mxu0 0
        %992 = vmatpush1.bf16.msra.mxu0 0
        %993 = vmatprep.subr.bf16.mxu0 0
        %994 = vmatpush1.bf16.msra.mxu0 0
        %995 = vmatprep.mubr.bf16.mxu0 0
        %996 = vmatmul.mubr.bf16.gmra.mrb[0].mxu0 %v958
        %v997 = vpop.f32.mrb[0].mxu0
        %v998 = vadd.f32 %v943, %v997
        %v999 = vpop.f32.mrb[0].mxu0
        %v1000 = vpop.f32.mrb[0].mxu0
        %v1001 = vadd.f32 %v943, %v1000
        %v1002 = vpop.f32.mrb[0].mxu0
        %1003 = vmatprep.mubr.bf16.mxu0 0
        %1004 = vmatmul.mubr.bf16.gmra.mrb[0].mxu0 %v961
        %v1005 = vpop.f32.mrb[0].mxu0
        %v1006 = vadd.f32 %v943, %v1005
        %v1007 = vpop.f32.mrb[0].mxu0
        %v1008 = vpop.f32.mrb[0].mxu0
        %v1009 = vadd.f32 %v943, %v1008
        %v1010 = vpop.f32.mrb[0].mxu0
        %1011 = vdwg.mxu0
        %v1012 = vpack.c.bf16 %v1001, %v998
        %v1013 = vpack.c.bf16 %v1009, %v1006
        %1015 = vrot.lane.b32.xlu0 %v1012, 96
        %v1016 = vpop.permute.xlu0 %1015
        %vm1017 = vcmask 64512
        %v1019 = vsel %vm1017, %v1012, 0
        %v1022 = vsel %vm1017, %v1016, 0
        %1024 = vmatprep.subr.bf16.mxu0 0
        %1025 = vmatpush1.bf16.xpose.msra.mxu0 %v1022
        %1026 = vmatprep.subr.bf16.mxu0 0
        %1027 = vmatpush1.bf16.xpose.msra.mxu0 0
        %1028 = vmatprep.subr.bf16.mxu0 0
        %1029 = vmatpush1.bf16.xpose.msra.mxu0 0
        %1030 = vmatprep.subr.bf16.mxu0 0
        %1031 = vmatpush1.bf16.xpose.msra.mxu0 0
        %1032 = vmatprep.subr.bf16.mxu0 0
        %1033 = vmatpush1.bf16.xpose.msra.mxu0 0
        %1034 = vmatprep.subr.bf16.mxu0 0
        %1035 = vmatpush1.bf16.xpose.msra.mxu0 0
        %1036 = vmatprep.subr.bf16.mxu0 0
        %1037 = vmatpush1.bf16.xpose.msra.mxu0 0
        %1038 = vmatprep.subr.bf16.mxu0 0
        %1039 = vmatpush1.bf16.xpose.msra.mxu0 0
        %1040 = vmatprep.subr.bf16.mxu0 0
        %1041 = vmatpush1.bf16.xpose.msra.mxu0 0
        %1042 = vmatprep.subr.bf16.mxu0 0
        %1043 = vmatpush1.bf16.xpose.msra.mxu0 0
        %1044 = vmatprep.subr.bf16.mxu0 0
        %1045 = vmatpush1.bf16.xpose.msra.mxu0 0
        %1046 = vmatprep.subr.bf16.mxu0 0
        %1047 = vmatpush1.bf16.xpose.msra.mxu0 0
        %1048 = vmatprep.subr.bf16.mxu0 0
        %1049 = vmatpush1.bf16.xpose.msra.mxu0 0
        %1050 = vmatprep.subr.bf16.mxu0 0
        %1051 = vmatpush1.bf16.xpose.msra.mxu0 0
        %1052 = vmatprep.subr.bf16.mxu0 0
        %1053 = vmatpush1.bf16.xpose.msra.mxu0 0
        %1054 = vmatprep.subr.bf16.mxu0 0
        %1055 = vmatpush1.bf16.xpose.msra.mxu0 0
        %1056 = vmatprep.mubr.bf16.mxu0 0
        %1057 = vmatmul.mubr.bf16.gmra.mrb[0].mxu0 %v1019
        %v1058 = vpop.f32.mrb[0].mxu0
        %v1059 = vadd.f32 %v852, %v1058
        %v1060 = vpop.f32.mrb[0].mxu0
        %v1061 = vpop.f32.mrb[0].mxu0
        %v1062 = vadd.f32 %v853, %v1061
        %v1063 = vpop.f32.mrb[0].mxu0
        %1064 = vdwg.mxu0
        %1066 = vrot.lane.b32.xlu0 %v1013, 96
        %v1067 = vpop.permute.xlu0 %1066
        %v1069 = vsel %vm1017, %v1013, 0
        %v1072 = vsel %vm1017, %v1067, 0
        %1074 = vmatprep.subr.bf16.mxu0 0
        %1075 = vmatpush1.bf16.xpose.msra.mxu0 %v1072
        %1076 = vmatprep.subr.bf16.mxu0 0
        %1077 = vmatpush1.bf16.xpose.msra.mxu0 0
        %1078 = vmatprep.subr.bf16.mxu0 0
        %1079 = vmatpush1.bf16.xpose.msra.mxu0 0
        %1080 = vmatprep.subr.bf16.mxu0 0
        %1081 = vmatpush1.bf16.xpose.msra.mxu0 0
        %1082 = vmatprep.subr.bf16.mxu0 0
        %1083 = vmatpush1.bf16.xpose.msra.mxu0 0
        %1084 = vmatprep.subr.bf16.mxu0 0
        %1085 = vmatpush1.bf16.xpose.msra.mxu0 0
        %1086 = vmatprep.subr.bf16.mxu0 0
        %1087 = vmatpush1.bf16.xpose.msra.mxu0 0
        %1088 = vmatprep.subr.bf16.mxu0 0
        %1089 = vmatpush1.bf16.xpose.msra.mxu0 0
        %1090 = vmatprep.subr.bf16.mxu0 0
        %1091 = vmatpush1.bf16.xpose.msra.mxu0 0
        %1092 = vmatprep.subr.bf16.mxu0 0
        %1093 = vmatpush1.bf16.xpose.msra.mxu0 0
        %1094 = vmatprep.subr.bf16.mxu0 0
        %1095 = vmatpush1.bf16.xpose.msra.mxu0 0
        %1096 = vmatprep.subr.bf16.mxu0 0
        %1097 = vmatpush1.bf16.xpose.msra.mxu0 0
        %1098 = vmatprep.subr.bf16.mxu0 0
        %1099 = vmatpush1.bf16.xpose.msra.mxu0 0
        %1100 = vmatprep.subr.bf16.mxu0 0
        %1101 = vmatpush1.bf16.xpose.msra.mxu0 0
        %1102 = vmatprep.subr.bf16.mxu0 0
        %1103 = vmatpush1.bf16.xpose.msra.mxu0 0
        %1104 = vmatprep.subr.bf16.mxu0 0
        %1105 = vmatpush1.bf16.xpose.msra.mxu0 0
        %1106 = vmatprep.mubr.bf16.mxu0 0
        %1107 = vmatmul.mubr.bf16.gmra.mrb[0].mxu0 %v1069
        %v1108 = vpop.f32.mrb[0].mxu0
        %v1109 = vadd.f32 %v854, %v1108
        %v1110 = vpop.f32.mrb[0].mxu0
        %v1111 = vpop.f32.mrb[0].mxu0
        %v1112 = vadd.f32 %v855, %v1111
        %v1113 = vpop.f32.mrb[0].mxu0
        %1114 = vdwg.mxu0
        %vm1115 = vcmask 130048
        %v1116 = vsel %vm1115, %v1059, -inf
        %1117 = vmax.xlane.f32.xlu0 %v1116
        %v1118 = vpop.xlane.xlu0 %1117
        %v1119 = vsel %vm1115, %v1062, -inf
        %1120 = vmax.xlane.f32.xlu0 %v1119
        %v1121 = vpop.xlane.xlu0 %1120
        %v1122 = vsel %vm1115, %v1109, -inf
        %1123 = vmax.xlane.f32.xlu0 %v1122
        %v1124 = vpop.xlane.xlu0 %1123
        %v1125 = vsel %vm1115, %v1112, -inf
        %1126 = vmax.xlane.f32.xlu0 %v1125
        %v1127 = vpop.xlane.xlu0 %1126
        %v1128 = vsub.f32 %v1059, %v1118
        %v1129 = vsub.f32 %v1062, %v1121
        %v1130 = vsub.f32 %v1109, %v1124
        %v1131 = vsub.f32 %v1112, %v1127
        %v1132 = vmul.f32 %v1128, 1.442695
        %v1133 = vpow.pop %v1132
        %v1134 = vmul.f32 %v1129, 1.442695
        %v1135 = vpow.pop %v1134
        %v1136 = vmul.f32 %v1130, 1.442695
        %v1137 = vpow.pop %v1136
        %v1138 = vmul.f32 %v1131, 1.442695
        %v1139 = vpow.pop %v1138
        %v1140 = vsel %vm1115, %v1133, 0.0
        %1141 = vadd.xlane.f32.xlu0 %v1140
        %v1142 = vpop.xlane.xlu0 %1141
        %v1143 = vsel %vm1115, %v1135, 0.0
        %1144 = vadd.xlane.f32.xlu0 %v1143
        %v1145 = vpop.xlane.xlu0 %1144
        %v1146 = vsel %vm1115, %v1137, 0.0
        %1147 = vadd.xlane.f32.xlu0 %v1146
        %v1148 = vpop.xlane.xlu0 %1147
        %v1149 = vsel %vm1115, %v1139, 0.0
        %1150 = vadd.xlane.f32.xlu0 %v1149
        %v1151 = vpop.xlane.xlu0 %1150
        %v1152 = vrcp.pop %v1142
        %v1153 = vrcp.pop %v1145
        %v1154 = vrcp.pop %v1148
        %v1155 = vrcp.pop %v1151
        %v1156 = vmul.f32 %v1133, %v1152
        %v1157 = vmul.f32 %v1135, %v1153
        %v1158 = vmul.f32 %v1137, %v1154
        %v1159 = vmul.f32 %v1139, %v1155
        %v1160 = vpack.c.bf16 %v1157, %v1156
        %v1161 = vpack.c.bf16 %v1159, %v1158
        %1162 = vrot.lane.b32.xlu0 %v1012, 64
        %v1163 = vpop.permute.xlu0 %1162
        %v1166 = vsel %vm1115, %v1160, 0
        %1168 = vmatprep.subr.bf16.mxu0 0
        %1169 = vmatpush1.bf16.msra.mxu0 %v1163
        %1170 = vmatprep.subr.bf16.mxu0 0
        %1171 = vmatpush1.bf16.msra.mxu0 0
        %1172 = vmatprep.subr.bf16.mxu0 0
        %1173 = vmatpush1.bf16.msra.mxu0 0
        %1174 = vmatprep.subr.bf16.mxu0 0
        %1175 = vmatpush1.bf16.msra.mxu0 0
        %1176 = vmatprep.subr.bf16.mxu0 0
        %1177 = vmatpush1.bf16.msra.mxu0 0
        %1178 = vmatprep.subr.bf16.mxu0 0
        %1179 = vmatpush1.bf16.msra.mxu0 0
        %1180 = vmatprep.subr.bf16.mxu0 0
        %1181 = vmatpush1.bf16.msra.mxu0 0
        %1182 = vmatprep.subr.bf16.mxu0 0
        %1183 = vmatpush1.bf16.msra.mxu0 0
        %1184 = vmatprep.subr.bf16.mxu0 0
        %1185 = vmatpush1.bf16.msra.mxu0 0
        %1186 = vmatprep.subr.bf16.mxu0 0
        %1187 = vmatpush1.bf16.msra.mxu0 0
        %1188 = vmatprep.subr.bf16.mxu0 0
        %1189 = vmatpush1.bf16.msra.mxu0 0
        %1190 = vmatprep.subr.bf16.mxu0 0
        %1191 = vmatpush1.bf16.msra.mxu0 0
        %1192 = vmatprep.subr.bf16.mxu0 0
        %1193 = vmatpush1.bf16.msra.mxu0 0
        %1194 = vmatprep.subr.bf16.mxu0 0
        %1195 = vmatpush1.bf16.msra.mxu0 0
        %1196 = vmatprep.subr.bf16.mxu0 0
        %1197 = vmatpush1.bf16.msra.mxu0 0
        %1198 = vmatprep.subr.bf16.mxu0 0
        %1199 = vmatpush1.bf16.msra.mxu0 0
        %1200 = vmatprep.mubr.bf16.mxu0 0
        %1201 = vmatmul.mubr.bf16.gmra.mrb[0].mxu0 %v1166
        %v1202 = vpop.f32.mrb[0].mxu0
        %v1203 = vadd.f32 0.0, %v1202
        %v1204 = vpop.f32.mrb[0].mxu0
        %v1205 = vpop.f32.mrb[0].mxu0
        %v1206 = vadd.f32 0.0, %v1205
        %v1207 = vpop.f32.mrb[0].mxu0
        %1208 = vdwg.mxu0
        %1209 = vrot.lane.b32.xlu0 %v1013, 64
        %v1210 = vpop.permute.xlu0 %1209
        %v1213 = vsel %vm1115, %v1161, 0
        %1215 = vmatprep.subr.bf16.mxu0 0
        %1216 = vmatpush1.bf16.msra.mxu0 %v1210
        %1217 = vmatprep.subr.bf16.mxu0 0
        %1218 = vmatpush1.bf16.msra.mxu0 0
        %1219 = vmatprep.subr.bf16.mxu0 0
        %1220 = vmatpush1.bf16.msra.mxu0 0
        %1221 = vmatprep.subr.bf16.mxu0 0
        %1222 = vmatpush1.bf16.msra.mxu0 0
        %1223 = vmatprep.subr.bf16.mxu0 0
        %1224 = vmatpush1.bf16.msra.mxu0 0
        %1225 = vmatprep.subr.bf16.mxu0 0
        %1226 = vmatpush1.bf16.msra.mxu0 0
        %1227 = vmatprep.subr.bf16.mxu0 0
        %1228 = vmatpush1.bf16.msra.mxu0 0
        %1229 = vmatprep.subr.bf16.mxu0 0
        %1230 = vmatpush1.bf16.msra.mxu0 0
        %1231 = vmatprep.subr.bf16.mxu0 0
        %1232 = vmatpush1.bf16.msra.mxu0 0
        %1233 = vmatprep.subr.bf16.mxu0 0
        %1234 = vmatpush1.bf16.msra.mxu0 0
        %1235 = vmatprep.subr.bf16.mxu0 0
        %1236 = vmatpush1.bf16.msra.mxu0 0
        %1237 = vmatprep.subr.bf16.mxu0 0
        %1238 = vmatpush1.bf16.msra.mxu0 0
        %1239 = vmatprep.subr.bf16.mxu0 0
        %1240 = vmatpush1.bf16.msra.mxu0 0
        %1241 = vmatprep.subr.bf16.mxu0 0
        %1242 = vmatpush1.bf16.msra.mxu0 0
        %1243 = vmatprep.subr.bf16.mxu0 0
        %1244 = vmatpush1.bf16.msra.mxu0 0
        %1245 = vmatprep.subr.bf16.mxu0 0
        %1246 = vmatpush1.bf16.msra.mxu0 0
        %1247 = vmatprep.mubr.bf16.mxu0 0
        %1248 = vmatmul.mubr.bf16.gmra.mrb[0].mxu0 %v1213
        %v1249 = vpop.f32.mrb[0].mxu0
        %v1250 = vadd.f32 0.0, %v1249
        %v1251 = vpop.f32.mrb[0].mxu0
        %v1252 = vpop.f32.mrb[0].mxu0
        %v1253 = vadd.f32 0.0, %v1252
        %v1254 = vpop.f32.mrb[0].mxu0
        %1255 = vdwg.mxu0
        %1256 = vrot.lane.b32.xlu0 %v1012, 120
        %v1257 = vpop.permute.xlu0 %1256
        %1258 = vrot.lane.b32.xlu0 %v1012, 88
        %v1259 = vpop.permute.xlu0 %1258
        %v1261 = vsel %vm1017, %v1257, 0
        %v1264 = vsel %vm1017, %v1259, 0
        %1266 = vmatprep.subr.bf16.mxu0 0
        %1267 = vmatpush1.bf16.xpose.msra.mxu0 %v1264
        %1268 = vmatprep.subr.bf16.mxu0 0
        %1269 = vmatpush1.bf16.xpose.msra.mxu0 0
        %1270 = vmatprep.subr.bf16.mxu0 0
        %1271 = vmatpush1.bf16.xpose.msra.mxu0 0
        %1272 = vmatprep.subr.bf16.mxu0 0
        %1273 = vmatpush1.bf16.xpose.msra.mxu0 0
        %1274 = vmatprep.subr.bf16.mxu0 0
        %1275 = vmatpush1.bf16.xpose.msra.mxu0 0
        %1276 = vmatprep.subr.bf16.mxu0 0
        %1277 = vmatpush1.bf16.xpose.msra.mxu0 0
        %1278 = vmatprep.subr.bf16.mxu0 0
        %1279 = vmatpush1.bf16.xpose.msra.mxu0 0
        %1280 = vmatprep.subr.bf16.mxu0 0
        %1281 = vmatpush1.bf16.xpose.msra.mxu0 0
        %1282 = vmatprep.subr.bf16.mxu0 0
        %1283 = vmatpush1.bf16.xpose.msra.mxu0 0
        %1284 = vmatprep.subr.bf16.mxu0 0
        %1285 = vmatpush1.bf16.xpose.msra.mxu0 0
        %1286 = vmatprep.subr.bf16.mxu0 0
        %1287 = vmatpush1.bf16.xpose.msra.mxu0 0
        %1288 = vmatprep.subr.bf16.mxu0 0
        %1289 = vmatpush1.bf16.xpose.msra.mxu0 0
        %1290 = vmatprep.subr.bf16.mxu0 0
        %1291 = vmatpush1.bf16.xpose.msra.mxu0 0
        %1292 = vmatprep.subr.bf16.mxu0 0
        %1293 = vmatpush1.bf16.xpose.msra.mxu0 0
        %1294 = vmatprep.subr.bf16.mxu0 0
        %1295 = vmatpush1.bf16.xpose.msra.mxu0 0
        %1296 = vmatprep.subr.bf16.mxu0 0
        %1297 = vmatpush1.bf16.xpose.msra.mxu0 0
        %1298 = vmatprep.mubr.bf16.mxu0 0
        %1299 = vmatmul.mubr.bf16.gmra.mrb[0].mxu0 %v1261
        %v1300 = vpop.f32.mrb[0].mxu0
        %v1301 = vadd.f32 %v852, %v1300
        %v1302 = vpop.f32.mrb[0].mxu0
        %v1303 = vpop.f32.mrb[0].mxu0
        %v1304 = vadd.f32 %v853, %v1303
        %v1305 = vpop.f32.mrb[0].mxu0
        %1306 = vdwg.mxu0
        %1307 = vrot.lane.b32.xlu0 %v1013, 120
        %v1308 = vpop.permute.xlu0 %1307
        %1309 = vrot.lane.b32.xlu0 %v1013, 88
        %v1310 = vpop.permute.xlu0 %1309
        %v1312 = vsel %vm1017, %v1308, 0
        %v1315 = vsel %vm1017, %v1310, 0
        %1317 = vmatprep.subr.bf16.mxu0 0
        %1318 = vmatpush1.bf16.xpose.msra.mxu0 %v1315
        %1319 = vmatprep.subr.bf16.mxu0 0
        %1320 = vmatpush1.bf16.xpose.msra.mxu0 0
        %1321 = vmatprep.subr.bf16.mxu0 0
        %1322 = vmatpush1.bf16.xpose.msra.mxu0 0
        %1323 = vmatprep.subr.bf16.mxu0 0
        %1324 = vmatpush1.bf16.xpose.msra.mxu0 0
        %1325 = vmatprep.subr.bf16.mxu0 0
        %1326 = vmatpush1.bf16.xpose.msra.mxu0 0
        %1327 = vmatprep.subr.bf16.mxu0 0
        %1328 = vmatpush1.bf16.xpose.msra.mxu0 0
        %1329 = vmatprep.subr.bf16.mxu0 0
        %1330 = vmatpush1.bf16.xpose.msra.mxu0 0
        %1331 = vmatprep.subr.bf16.mxu0 0
        %1332 = vmatpush1.bf16.xpose.msra.mxu0 0
        %1333 = vmatprep.subr.bf16.mxu0 0
        %1334 = vmatpush1.bf16.xpose.msra.mxu0 0
        %1335 = vmatprep.subr.bf16.mxu0 0
        %1336 = vmatpush1.bf16.xpose.msra.mxu0 0
        %1337 = vmatprep.subr.bf16.mxu0 0
        %1338 = vmatpush1.bf16.xpose.msra.mxu0 0
        %1339 = vmatprep.subr.bf16.mxu0 0
        %1340 = vmatpush1.bf16.xpose.msra.mxu0 0
        %1341 = vmatprep.subr.bf16.mxu0 0
        %1342 = vmatpush1.bf16.xpose.msra.mxu0 0
        %1343 = vmatprep.subr.bf16.mxu0 0
        %1344 = vmatpush1.bf16.xpose.msra.mxu0 0
        %1345 = vmatprep.subr.bf16.mxu0 0
        %1346 = vmatpush1.bf16.xpose.msra.mxu0 0
        %1347 = vmatprep.subr.bf16.mxu0 0
        %1348 = vmatpush1.bf16.xpose.msra.mxu0 0
        %1349 = vmatprep.mubr.bf16.mxu0 0
        %1350 = vmatmul.mubr.bf16.gmra.mrb[0].mxu0 %v1312
        %v1351 = vpop.f32.mrb[0].mxu0
        %v1352 = vadd.f32 %v854, %v1351
        %v1353 = vpop.f32.mrb[0].mxu0
        %v1354 = vpop.f32.mrb[0].mxu0
        %v1355 = vadd.f32 %v855, %v1354
        %v1356 = vpop.f32.mrb[0].mxu0
        %1357 = vdwg.mxu0
        %v1358 = vsel %vm1115, %v1301, -inf
        %1359 = vmax.xlane.f32.xlu0 %v1358
        %v1360 = vpop.xlane.xlu0 %1359
        %v1361 = vsel %vm1115, %v1304, -inf
        %1362 = vmax.xlane.f32.xlu0 %v1361
        %v1363 = vpop.xlane.xlu0 %1362
        %v1364 = vsel %vm1115, %v1352, -inf
        %1365 = vmax.xlane.f32.xlu0 %v1364
        %v1366 = vpop.xlane.xlu0 %1365
        %v1367 = vsel %vm1115, %v1355, -inf
        %1368 = vmax.xlane.f32.xlu0 %v1367
        %v1369 = vpop.xlane.xlu0 %1368
        %v1370 = vsub.f32 %v1301, %v1360
        %v1371 = vsub.f32 %v1304, %v1363
        %v1372 = vsub.f32 %v1352, %v1366
        %v1373 = vsub.f32 %v1355, %v1369
        %v1374 = vmul.f32 %v1370, 1.442695
        %v1375 = vpow.pop %v1374
        %v1376 = vmul.f32 %v1371, 1.442695
        %v1377 = vpow.pop %v1376
        %v1378 = vmul.f32 %v1372, 1.442695
        %v1379 = vpow.pop %v1378
        %v1380 = vmul.f32 %v1373, 1.442695
        %v1381 = vpow.pop %v1380
        %v1382 = vsel %vm1115, %v1375, 0.0
        %1383 = vadd.xlane.f32.xlu0 %v1382
        %v1384 = vpop.xlane.xlu0 %1383
        %v1385 = vsel %vm1115, %v1377, 0.0
        %1386 = vadd.xlane.f32.xlu0 %v1385
        %v1387 = vpop.xlane.xlu0 %1386
        %v1388 = vsel %vm1115, %v1379, 0.0
        %1389 = vadd.xlane.f32.xlu0 %v1388
        %v1390 = vpop.xlane.xlu0 %1389
        %v1391 = vsel %vm1115, %v1381, 0.0
        %1392 = vadd.xlane.f32.xlu0 %v1391
        %v1393 = vpop.xlane.xlu0 %1392
        %v1394 = vrcp.pop %v1384
        %v1395 = vrcp.pop %v1387
        %v1396 = vrcp.pop %v1390
        %v1397 = vrcp.pop %v1393
        %v1398 = vmul.f32 %v1375, %v1394
        %v1399 = vmul.f32 %v1377, %v1395
        %v1400 = vmul.f32 %v1379, %v1396
        %v1401 = vmul.f32 %v1381, %v1397
        %v1402 = vpack.c.bf16 %v1399, %v1398
        %v1403 = vpack.c.bf16 %v1401, %v1400
        %1404 = vrot.lane.b32.xlu0 %v1012, 56
        %v1405 = vpop.permute.xlu0 %1404
        %v1408 = vsel %vm1115, %v1402, 0
        %1410 = vmatprep.subr.bf16.mxu0 0
        %1411 = vmatpush1.bf16.msra.mxu0 %v1405
        %1412 = vmatprep.subr.bf16.mxu0 0
        %1413 = vmatpush1.bf16.msra.mxu0 0
        %1414 = vmatprep.subr.bf16.mxu0 0
        %1415 = vmatpush1.bf16.msra.mxu0 0
        %1416 = vmatprep.subr.bf16.mxu0 0
        %1417 = vmatpush1.bf16.msra.mxu0 0
        %1418 = vmatprep.subr.bf16.mxu0 0
        %1419 = vmatpush1.bf16.msra.mxu0 0
        %1420 = vmatprep.subr.bf16.mxu0 0
        %1421 = vmatpush1.bf16.msra.mxu0 0
        %1422 = vmatprep.subr.bf16.mxu0 0
        %1423 = vmatpush1.bf16.msra.mxu0 0
        %1424 = vmatprep.subr.bf16.mxu0 0
        %1425 = vmatpush1.bf16.msra.mxu0 0
        %1426 = vmatprep.subr.bf16.mxu0 0
        %1427 = vmatpush1.bf16.msra.mxu0 0
        %1428 = vmatprep.subr.bf16.mxu0 0
        %1429 = vmatpush1.bf16.msra.mxu0 0
        %1430 = vmatprep.subr.bf16.mxu0 0
        %1431 = vmatpush1.bf16.msra.mxu0 0
        %1432 = vmatprep.subr.bf16.mxu0 0
        %1433 = vmatpush1.bf16.msra.mxu0 0
        %1434 = vmatprep.subr.bf16.mxu0 0
        %1435 = vmatpush1.bf16.msra.mxu0 0
        %1436 = vmatprep.subr.bf16.mxu0 0
        %1437 = vmatpush1.bf16.msra.mxu0 0
        %1438 = vmatprep.subr.bf16.mxu0 0
        %1439 = vmatpush1.bf16.msra.mxu0 0
        %1440 = vmatprep.subr.bf16.mxu0 0
        %1441 = vmatpush1.bf16.msra.mxu0 0
        %1442 = vmatprep.mubr.bf16.mxu0 0
        %1443 = vmatmul.mubr.bf16.gmra.mrb[0].mxu0 %v1408
        %v1444 = vpop.f32.mrb[0].mxu0
        %v1445 = vadd.f32 0.0, %v1444
        %v1446 = vpop.f32.mrb[0].mxu0
        %v1447 = vpop.f32.mrb[0].mxu0
        %v1448 = vadd.f32 0.0, %v1447
        %v1449 = vpop.f32.mrb[0].mxu0
        %1450 = vdwg.mxu0
        %1451 = vrot.lane.b32.xlu0 %v1013, 56
        %v1452 = vpop.permute.xlu0 %1451
        %v1455 = vsel %vm1115, %v1403, 0
        %1457 = vmatprep.subr.bf16.mxu0 0
        %1458 = vmatpush1.bf16.msra.mxu0 %v1452
        %1459 = vmatprep.subr.bf16.mxu0 0
        %1460 = vmatpush1.bf16.msra.mxu0 0
        %1461 = vmatprep.subr.bf16.mxu0 0
        %1462 = vmatpush1.bf16.msra.mxu0 0
        %1463 = vmatprep.subr.bf16.mxu0 0
        %1464 = vmatpush1.bf16.msra.mxu0 0
        %1465 = vmatprep.subr.bf16.mxu0 0
        %1466 = vmatpush1.bf16.msra.mxu0 0
        %1467 = vmatprep.subr.bf16.mxu0 0
        %1468 = vmatpush1.bf16.msra.mxu0 0
        %1469 = vmatprep.subr.bf16.mxu0 0
        %1470 = vmatpush1.bf16.msra.mxu0 0
        %1471 = vmatprep.subr.bf16.mxu0 0
        %1472 = vmatpush1.bf16.msra.mxu0 0
        %1473 = vmatprep.subr.bf16.mxu0 0
        %1474 = vmatpush1.bf16.msra.mxu0 0
        %1475 = vmatprep.subr.bf16.mxu0 0
        %1476 = vmatpush1.bf16.msra.mxu0 0
        %1477 = vmatprep.subr.bf16.mxu0 0
        %1478 = vmatpush1.bf16.msra.mxu0 0
        %1479 = vmatprep.subr.bf16.mxu0 0
        %1480 = vmatpush1.bf16.msra.mxu0 0
        %1481 = vmatprep.subr.bf16.mxu0 0
        %1482 = vmatpush1.bf16.msra.mxu0 0
        %1483 = vmatprep.subr.bf16.mxu0 0
        %1484 = vmatpush1.bf16.msra.mxu0 0
        %1485 = vmatprep.subr.bf16.mxu0 0
        %1486 = vmatpush1.bf16.msra.mxu0 0
        %1487 = vmatprep.subr.bf16.mxu0 0
        %1488 = vmatpush1.bf16.msra.mxu0 0
        %1489 = vmatprep.mubr.bf16.mxu0 0
        %1490 = vmatmul.mubr.bf16.gmra.mrb[0].mxu0 %v1455
        %v1491 = vpop.f32.mrb[0].mxu0
        %v1492 = vadd.f32 0.0, %v1491
        %v1493 = vpop.f32.mrb[0].mxu0
        %v1494 = vpop.f32.mrb[0].mxu0
        %v1495 = vadd.f32 0.0, %v1494
        %v1496 = vpop.f32.mrb[0].mxu0
        %1497 = vdwg.mxu0
        %1498 = vrot.lane.b32.xlu0 %v1012, 112
        %v1499 = vpop.permute.xlu0 %1498
        %1500 = vrot.lane.b32.xlu0 %v1012, 80
        %v1501 = vpop.permute.xlu0 %1500
        %v1503 = vsel %vm1017, %v1499, 0
        %v1506 = vsel %vm1017, %v1501, 0
        %1508 = vmatprep.subr.bf16.mxu0 0
        %1509 = vmatpush1.bf16.xpose.msra.mxu0 %v1506
        %1510 = vmatprep.subr.bf16.mxu0 0
        %1511 = vmatpush1.bf16.xpose.msra.mxu0 0
        %1512 = vmatprep.subr.bf16.mxu0 0
        %1513 = vmatpush1.bf16.xpose.msra.mxu0 0
        %1514 = vmatprep.subr.bf16.mxu0 0
        %1515 = vmatpush1.bf16.xpose.msra.mxu0 0
        %1516 = vmatprep.subr.bf16.mxu0 0
        %1517 = vmatpush1.bf16.xpose.msra.mxu0 0
        %1518 = vmatprep.subr.bf16.mxu0 0
        %1519 = vmatpush1.bf16.xpose.msra.mxu0 0
        %1520 = vmatprep.subr.bf16.mxu0 0
        %1521 = vmatpush1.bf16.xpose.msra.mxu0 0
        %1522 = vmatprep.subr.bf16.mxu0 0
        %1523 = vmatpush1.bf16.xpose.msra.mxu0 0
        %1524 = vmatprep.subr.bf16.mxu0 0
        %1525 = vmatpush1.bf16.xpose.msra.mxu0 0
        %1526 = vmatprep.subr.bf16.mxu0 0
        %1527 = vmatpush1.bf16.xpose.msra.mxu0 0
        %1528 = vmatprep.subr.bf16.mxu0 0
        %1529 = vmatpush1.bf16.xpose.msra.mxu0 0
        %1530 = vmatprep.subr.bf16.mxu0 0
        %1531 = vmatpush1.bf16.xpose.msra.mxu0 0
        %1532 = vmatprep.subr.bf16.mxu0 0
        %1533 = vmatpush1.bf16.xpose.msra.mxu0 0
        %1534 = vmatprep.subr.bf16.mxu0 0
        %1535 = vmatpush1.bf16.xpose.msra.mxu0 0
        %1536 = vmatprep.subr.bf16.mxu0 0
        %1537 = vmatpush1.bf16.xpose.msra.mxu0 0
        %1538 = vmatprep.subr.bf16.mxu0 0
        %1539 = vmatpush1.bf16.xpose.msra.mxu0 0
        %1540 = vmatprep.mubr.bf16.mxu0 0
        %1541 = vmatmul.mubr.bf16.gmra.mrb[0].mxu0 %v1503
        %v1542 = vpop.f32.mrb[0].mxu0
        %v1543 = vadd.f32 %v852, %v1542
        %v1544 = vpop.f32.mrb[0].mxu0
        %v1545 = vpop.f32.mrb[0].mxu0
        %v1546 = vadd.f32 %v853, %v1545
        %v1547 = vpop.f32.mrb[0].mxu0
        %1548 = vdwg.mxu0
        %1549 = vrot.lane.b32.xlu0 %v1013, 112
        %v1550 = vpop.permute.xlu0 %1549
        %1551 = vrot.lane.b32.xlu0 %v1013, 80
        %v1552 = vpop.permute.xlu0 %1551
        %v1554 = vsel %vm1017, %v1550, 0
        %v1557 = vsel %vm1017, %v1552, 0
        %1559 = vmatprep.subr.bf16.mxu0 0
        %1560 = vmatpush1.bf16.xpose.msra.mxu0 %v1557
        %1561 = vmatprep.subr.bf16.mxu0 0
        %1562 = vmatpush1.bf16.xpose.msra.mxu0 0
        %1563 = vmatprep.subr.bf16.mxu0 0
        %1564 = vmatpush1.bf16.xpose.msra.mxu0 0
        %1565 = vmatprep.subr.bf16.mxu0 0
        %1566 = vmatpush1.bf16.xpose.msra.mxu0 0
        %1567 = vmatprep.subr.bf16.mxu0 0
        %1568 = vmatpush1.bf16.xpose.msra.mxu0 0
        %1569 = vmatprep.subr.bf16.mxu0 0
        %1570 = vmatpush1.bf16.xpose.msra.mxu0 0
        %1571 = vmatprep.subr.bf16.mxu0 0
        %1572 = vmatpush1.bf16.xpose.msra.mxu0 0
        %1573 = vmatprep.subr.bf16.mxu0 0
        %1574 = vmatpush1.bf16.xpose.msra.mxu0 0
        %1575 = vmatprep.subr.bf16.mxu0 0
        %1576 = vmatpush1.bf16.xpose.msra.mxu0 0
        %1577 = vmatprep.subr.bf16.mxu0 0
        %1578 = vmatpush1.bf16.xpose.msra.mxu0 0
        %1579 = vmatprep.subr.bf16.mxu0 0
        %1580 = vmatpush1.bf16.xpose.msra.mxu0 0
        %1581 = vmatprep.subr.bf16.mxu0 0
        %1582 = vmatpush1.bf16.xpose.msra.mxu0 0
        %1583 = vmatprep.subr.bf16.mxu0 0
        %1584 = vmatpush1.bf16.xpose.msra.mxu0 0
        %1585 = vmatprep.subr.bf16.mxu0 0
        %1586 = vmatpush1.bf16.xpose.msra.mxu0 0
        %1587 = vmatprep.subr.bf16.mxu0 0
        %1588 = vmatpush1.bf16.xpose.msra.mxu0 0
        %1589 = vmatprep.subr.bf16.mxu0 0
        %1590 = vmatpush1.bf16.xpose.msra.mxu0 0
        %1591 = vmatprep.mubr.bf16.mxu0 0
        %1592 = vmatmul.mubr.bf16.gmra.mrb[0].mxu0 %v1554
        %v1593 = vpop.f32.mrb[0].mxu0
        %v1594 = vadd.f32 %v854, %v1593
        %v1595 = vpop.f32.mrb[0].mxu0
        %v1596 = vpop.f32.mrb[0].mxu0
        %v1597 = vadd.f32 %v855, %v1596
        %v1598 = vpop.f32.mrb[0].mxu0
        %1599 = vdwg.mxu0
        %v1600 = vsel %vm1115, %v1543, -inf
        %1601 = vmax.xlane.f32.xlu0 %v1600
        %v1602 = vpop.xlane.xlu0 %1601
        %v1603 = vsel %vm1115, %v1546, -inf
        %1604 = vmax.xlane.f32.xlu0 %v1603
        %v1605 = vpop.xlane.xlu0 %1604
        %v1606 = vsel %vm1115, %v1594, -inf
        %1607 = vmax.xlane.f32.xlu0 %v1606
        %v1608 = vpop.xlane.xlu0 %1607
        %v1609 = vsel %vm1115, %v1597, -inf
        %1610 = vmax.xlane.f32.xlu0 %v1609
        %v1611 = vpop.xlane.xlu0 %1610
        %v1612 = vsub.f32 %v1543, %v1602
        %v1613 = vsub.f32 %v1546, %v1605
        %v1614 = vsub.f32 %v1594, %v1608
        %v1615 = vsub.f32 %v1597, %v1611
        %v1616 = vmul.f32 %v1612, 1.442695
        %v1617 = vpow.pop %v1616
        %v1618 = vmul.f32 %v1613, 1.442695
        %v1619 = vpow.pop %v1618
        %v1620 = vmul.f32 %v1614, 1.442695
        %v1621 = vpow.pop %v1620
        %v1622 = vmul.f32 %v1615, 1.442695
        %v1623 = vpow.pop %v1622
        %v1624 = vsel %vm1115, %v1617, 0.0
        %1625 = vadd.xlane.f32.xlu0 %v1624
        %v1626 = vpop.xlane.xlu0 %1625
        %v1627 = vsel %vm1115, %v1619, 0.0
        %1628 = vadd.xlane.f32.xlu0 %v1627
        %v1629 = vpop.xlane.xlu0 %1628
        %v1630 = vsel %vm1115, %v1621, 0.0
        %1631 = vadd.xlane.f32.xlu0 %v1630
        %v1632 = vpop.xlane.xlu0 %1631
        %v1633 = vsel %vm1115, %v1623, 0.0
        %1634 = vadd.xlane.f32.xlu0 %v1633
        %v1635 = vpop.xlane.xlu0 %1634
        %v1636 = vrcp.pop %v1626
        %v1637 = vrcp.pop %v1629
        %v1638 = vrcp.pop %v1632
        %v1639 = vrcp.pop %v1635
        %v1640 = vmul.f32 %v1617, %v1636
        %v1641 = vmul.f32 %v1619, %v1637
        %v1642 = vmul.f32 %v1621, %v1638
        %v1643 = vmul.f32 %v1623, %v1639
        %v1644 = vpack.c.bf16 %v1641, %v1640
        %v1645 = vpack.c.bf16 %v1643, %v1642
        %1646 = vrot.lane.b32.xlu0 %v1012, 48
        %v1647 = vpop.permute.xlu0 %1646
        %v1650 = vsel %vm1115, %v1644, 0
        %1652 = vmatprep.subr.bf16.mxu0 0
        %1653 = vmatpush1.bf16.msra.mxu0 %v1647
        %1654 = vmatprep.subr.bf16.mxu0 0
        %1655 = vmatpush1.bf16.msra.mxu0 0
        %1656 = vmatprep.subr.bf16.mxu0 0
        %1657 = vmatpush1.bf16.msra.mxu0 0
        %1658 = vmatprep.subr.bf16.mxu0 0
        %1659 = vmatpush1.bf16.msra.mxu0 0
        %1660 = vmatprep.subr.bf16.mxu0 0
        %1661 = vmatpush1.bf16.msra.mxu0 0
        %1662 = vmatprep.subr.bf16.mxu0 0
        %1663 = vmatpush1.bf16.msra.mxu0 0
        %1664 = vmatprep.subr.bf16.mxu0 0
        %1665 = vmatpush1.bf16.msra.mxu0 0
        %1666 = vmatprep.subr.bf16.mxu0 0
        %1667 = vmatpush1.bf16.msra.mxu0 0
        %1668 = vmatprep.subr.bf16.mxu0 0
        %1669 = vmatpush1.bf16.msra.mxu0 0
        %1670 = vmatprep.subr.bf16.mxu0 0
        %1671 = vmatpush1.bf16.msra.mxu0 0
        %1672 = vmatprep.subr.bf16.mxu0 0
        %1673 = vmatpush1.bf16.msra.mxu0 0
        %1674 = vmatprep.subr.bf16.mxu0 0
        %1675 = vmatpush1.bf16.msra.mxu0 0
        %1676 = vmatprep.subr.bf16.mxu0 0
        %1677 = vmatpush1.bf16.msra.mxu0 0
        %1678 = vmatprep.subr.bf16.mxu0 0
        %1679 = vmatpush1.bf16.msra.mxu0 0
        %1680 = vmatprep.subr.bf16.mxu0 0
        %1681 = vmatpush1.bf16.msra.mxu0 0
        %1682 = vmatprep.subr.bf16.mxu0 0
        %1683 = vmatpush1.bf16.msra.mxu0 0
        %1684 = vmatprep.mubr.bf16.mxu0 0
        %1685 = vmatmul.mubr.bf16.gmra.mrb[0].mxu0 %v1650
        %v1686 = vpop.f32.mrb[0].mxu0
        %v1687 = vadd.f32 0.0, %v1686
        %v1688 = vpop.f32.mrb[0].mxu0
        %v1689 = vpop.f32.mrb[0].mxu0
        %v1690 = vadd.f32 0.0, %v1689
        %v1691 = vpop.f32.mrb[0].mxu0
        %1692 = vdwg.mxu0
        %1693 = vrot.lane.b32.xlu0 %v1013, 48
        %v1694 = vpop.permute.xlu0 %1693
        %v1697 = vsel %vm1115, %v1645, 0
        %1699 = vmatprep.subr.bf16.mxu0 0
        %1700 = vmatpush1.bf16.msra.mxu0 %v1694
        %1701 = vmatprep.subr.bf16.mxu0 0
        %1702 = vmatpush1.bf16.msra.mxu0 0
        %1703 = vmatprep.subr.bf16.mxu0 0
        %1704 = vmatpush1.bf16.msra.mxu0 0
        %1705 = vmatprep.subr.bf16.mxu0 0
        %1706 = vmatpush1.bf16.msra.mxu0 0
        %1707 = vmatprep.subr.bf16.mxu0 0
        %1708 = vmatpush1.bf16.msra.mxu0 0
        %1709 = vmatprep.subr.bf16.mxu0 0
        %1710 = vmatpush1.bf16.msra.mxu0 0
        %1711 = vmatprep.subr.bf16.mxu0 0
        %1712 = vmatpush1.bf16.msra.mxu0 0
        %1713 = vmatprep.subr.bf16.mxu0 0
        %1714 = vmatpush1.bf16.msra.mxu0 0
        %1715 = vmatprep.subr.bf16.mxu0 0
        %1716 = vmatpush1.bf16.msra.mxu0 0
        %1717 = vmatprep.subr.bf16.mxu0 0
        %1718 = vmatpush1.bf16.msra.mxu0 0
        %1719 = vmatprep.subr.bf16.mxu0 0
        %1720 = vmatpush1.bf16.msra.mxu0 0
        %1721 = vmatprep.subr.bf16.mxu0 0
        %1722 = vmatpush1.bf16.msra.mxu0 0
        %1723 = vmatprep.subr.bf16.mxu0 0
        %1724 = vmatpush1.bf16.msra.mxu0 0
        %1725 = vmatprep.subr.bf16.mxu0 0
        %1726 = vmatpush1.bf16.msra.mxu0 0
        %1727 = vmatprep.subr.bf16.mxu0 0
        %1728 = vmatpush1.bf16.msra.mxu0 0
        %1729 = vmatprep.subr.bf16.mxu0 0
        %1730 = vmatpush1.bf16.msra.mxu0 0
        %1731 = vmatprep.mubr.bf16.mxu0 0
        %1732 = vmatmul.mubr.bf16.gmra.mrb[0].mxu0 %v1697
        %v1733 = vpop.f32.mrb[0].mxu0
        %v1734 = vadd.f32 0.0, %v1733
        %v1735 = vpop.f32.mrb[0].mxu0
        %v1736 = vpop.f32.mrb[0].mxu0
        %v1737 = vadd.f32 0.0, %v1736
        %v1738 = vpop.f32.mrb[0].mxu0
        %1739 = vdwg.mxu0
        %1740 = vrot.lane.b32.xlu0 %v1012, 104
        %v1741 = vpop.permute.xlu0 %1740
        %1742 = vrot.lane.b32.xlu0 %v1012, 72
        %v1743 = vpop.permute.xlu0 %1742
        %v1745 = vsel %vm1017, %v1741, 0
        %v1748 = vsel %vm1017, %v1743, 0
        %1750 = vmatprep.subr.bf16.mxu0 0
        %1751 = vmatpush1.bf16.xpose.msra.mxu0 %v1748
        %1752 = vmatprep.subr.bf16.mxu0 0
        %1753 = vmatpush1.bf16.xpose.msra.mxu0 0
        %1754 = vmatprep.subr.bf16.mxu0 0
        %1755 = vmatpush1.bf16.xpose.msra.mxu0 0
        %1756 = vmatprep.subr.bf16.mxu0 0
        %1757 = vmatpush1.bf16.xpose.msra.mxu0 0
        %1758 = vmatprep.subr.bf16.mxu0 0
        %1759 = vmatpush1.bf16.xpose.msra.mxu0 0
        %1760 = vmatprep.subr.bf16.mxu0 0
        %1761 = vmatpush1.bf16.xpose.msra.mxu0 0
        %1762 = vmatprep.subr.bf16.mxu0 0
        %1763 = vmatpush1.bf16.xpose.msra.mxu0 0
        %1764 = vmatprep.subr.bf16.mxu0 0
        %1765 = vmatpush1.bf16.xpose.msra.mxu0 0
        %1766 = vmatprep.subr.bf16.mxu0 0
        %1767 = vmatpush1.bf16.xpose.msra.mxu0 0
        %1768 = vmatprep.subr.bf16.mxu0 0
        %1769 = vmatpush1.bf16.xpose.msra.mxu0 0
        %1770 = vmatprep.subr.bf16.mxu0 0
        %1771 = vmatpush1.bf16.xpose.msra.mxu0 0
        %1772 = vmatprep.subr.bf16.mxu0 0
        %1773 = vmatpush1.bf16.xpose.msra.mxu0 0
        %1774 = vmatprep.subr.bf16.mxu0 0
        %1775 = vmatpush1.bf16.xpose.msra.mxu0 0
        %1776 = vmatprep.subr.bf16.mxu0 0
        %1777 = vmatpush1.bf16.xpose.msra.mxu0 0
        %1778 = vmatprep.subr.bf16.mxu0 0
        %1779 = vmatpush1.bf16.xpose.msra.mxu0 0
        %1780 = vmatprep.subr.bf16.mxu0 0
        %1781 = vmatpush1.bf16.xpose.msra.mxu0 0
        %1782 = vmatprep.mubr.bf16.mxu0 0
        %1783 = vmatmul.mubr.bf16.gmra.mrb[0].mxu0 %v1745
        %v1784 = vpop.f32.mrb[0].mxu0
        %v1785 = vadd.f32 %v852, %v1784
        %v1786 = vpop.f32.mrb[0].mxu0
        %v1787 = vpop.f32.mrb[0].mxu0
        %v1788 = vadd.f32 %v853, %v1787
        %v1789 = vpop.f32.mrb[0].mxu0
        %1790 = vdwg.mxu0
        %1791 = vrot.lane.b32.xlu0 %v1013, 104
        %v1792 = vpop.permute.xlu0 %1791
        %1793 = vrot.lane.b32.xlu0 %v1013, 72
        %v1794 = vpop.permute.xlu0 %1793
        %v1796 = vsel %vm1017, %v1792, 0
        %v1799 = vsel %vm1017, %v1794, 0
        %1801 = vmatprep.subr.bf16.mxu0 0
        %1802 = vmatpush1.bf16.xpose.msra.mxu0 %v1799
        %1803 = vmatprep.subr.bf16.mxu0 0
        %1804 = vmatpush1.bf16.xpose.msra.mxu0 0
        %1805 = vmatprep.subr.bf16.mxu0 0
        %1806 = vmatpush1.bf16.xpose.msra.mxu0 0
        %1807 = vmatprep.subr.bf16.mxu0 0
        %1808 = vmatpush1.bf16.xpose.msra.mxu0 0
        %1809 = vmatprep.subr.bf16.mxu0 0
        %1810 = vmatpush1.bf16.xpose.msra.mxu0 0
        %1811 = vmatprep.subr.bf16.mxu0 0
        %1812 = vmatpush1.bf16.xpose.msra.mxu0 0
        %1813 = vmatprep.subr.bf16.mxu0 0
        %1814 = vmatpush1.bf16.xpose.msra.mxu0 0
        %1815 = vmatprep.subr.bf16.mxu0 0
        %1816 = vmatpush1.bf16.xpose.msra.mxu0 0
        %1817 = vmatprep.subr.bf16.mxu0 0
        %1818 = vmatpush1.bf16.xpose.msra.mxu0 0
        %1819 = vmatprep.subr.bf16.mxu0 0
        %1820 = vmatpush1.bf16.xpose.msra.mxu0 0
        %1821 = vmatprep.subr.bf16.mxu0 0
        %1822 = vmatpush1.bf16.xpose.msra.mxu0 0
        %1823 = vmatprep.subr.bf16.mxu0 0
        %1824 = vmatpush1.bf16.xpose.msra.mxu0 0
        %1825 = vmatprep.subr.bf16.mxu0 0
        %1826 = vmatpush1.bf16.xpose.msra.mxu0 0
        %1827 = vmatprep.subr.bf16.mxu0 0
        %1828 = vmatpush1.bf16.xpose.msra.mxu0 0
        %1829 = vmatprep.subr.bf16.mxu0 0
        %1830 = vmatpush1.bf16.xpose.msra.mxu0 0
        %1831 = vmatprep.subr.bf16.mxu0 0
        %1832 = vmatpush1.bf16.xpose.msra.mxu0 0
        %1833 = vmatprep.mubr.bf16.mxu0 0
        %1834 = vmatmul.mubr.bf16.gmra.mrb[0].mxu0 %v1796
        %v1835 = vpop.f32.mrb[0].mxu0
        %v1836 = vadd.f32 %v854, %v1835
        %v1837 = vpop.f32.mrb[0].mxu0
        %v1838 = vpop.f32.mrb[0].mxu0
        %v1839 = vadd.f32 %v855, %v1838
        %v1840 = vpop.f32.mrb[0].mxu0
        %1841 = vdwg.mxu0
        %v1842 = vsel %vm1115, %v1785, -inf
        %1843 = vmax.xlane.f32.xlu0 %v1842
        %v1844 = vpop.xlane.xlu0 %1843
        %v1845 = vsel %vm1115, %v1788, -inf
        %1846 = vmax.xlane.f32.xlu0 %v1845
        %v1847 = vpop.xlane.xlu0 %1846
        %v1848 = vsel %vm1115, %v1836, -inf
        %1849 = vmax.xlane.f32.xlu0 %v1848
        %v1850 = vpop.xlane.xlu0 %1849
        %v1851 = vsel %vm1115, %v1839, -inf
        %1852 = vmax.xlane.f32.xlu0 %v1851
        %v1853 = vpop.xlane.xlu0 %1852
        %v1854 = vsub.f32 %v1785, %v1844
        %v1855 = vsub.f32 %v1788, %v1847
        %v1856 = vsub.f32 %v1836, %v1850
        %v1857 = vsub.f32 %v1839, %v1853
        %v1858 = vmul.f32 %v1854, 1.442695
        %v1859 = vpow.pop %v1858
        %v1860 = vmul.f32 %v1855, 1.442695
        %v1861 = vpow.pop %v1860
        %v1862 = vmul.f32 %v1856, 1.442695
        %v1863 = vpow.pop %v1862
        %v1864 = vmul.f32 %v1857, 1.442695
        %v1865 = vpow.pop %v1864
        %v1866 = vsel %vm1115, %v1859, 0.0
        %1867 = vadd.xlane.f32.xlu0 %v1866
        %v1868 = vpop.xlane.xlu0 %1867
        %v1869 = vsel %vm1115, %v1861, 0.0
        %1870 = vadd.xlane.f32.xlu0 %v1869
        %v1871 = vpop.xlane.xlu0 %1870
        %v1872 = vsel %vm1115, %v1863, 0.0
        %1873 = vadd.xlane.f32.xlu0 %v1872
        %v1874 = vpop.xlane.xlu0 %1873
        %v1875 = vsel %vm1115, %v1865, 0.0
        %1876 = vadd.xlane.f32.xlu0 %v1875
        %v1877 = vpop.xlane.xlu0 %1876
        %v1878 = vrcp.pop %v1868
        %v1879 = vrcp.pop %v1871
        %v1880 = vrcp.pop %v1874
        %v1881 = vrcp.pop %v1877
        %v1882 = vmul.f32 %v1859, %v1878
        %v1883 = vmul.f32 %v1861, %v1879
        %v1884 = vmul.f32 %v1863, %v1880
        %v1885 = vmul.f32 %v1865, %v1881
        %v1886 = vpack.c.bf16 %v1883, %v1882
        %v1887 = vpack.c.bf16 %v1885, %v1884
        %1888 = vrot.lane.b32.xlu0 %v1012, 40
        %v1889 = vpop.permute.xlu0 %1888
        %v1892 = vsel %vm1115, %v1886, 0
        %1894 = vmatprep.subr.bf16.mxu0 0
        %1895 = vmatpush1.bf16.msra.mxu0 %v1889
        %1896 = vmatprep.subr.bf16.mxu0 0
        %1897 = vmatpush1.bf16.msra.mxu0 0
        %1898 = vmatprep.subr.bf16.mxu0 0
        %1899 = vmatpush1.bf16.msra.mxu0 0
        %1900 = vmatprep.subr.bf16.mxu0 0
        %1901 = vmatpush1.bf16.msra.mxu0 0
        %1902 = vmatprep.subr.bf16.mxu0 0
        %1903 = vmatpush1.bf16.msra.mxu0 0
        %1904 = vmatprep.subr.bf16.mxu0 0
        %1905 = vmatpush1.bf16.msra.mxu0 0
        %1906 = vmatprep.subr.bf16.mxu0 0
        %1907 = vmatpush1.bf16.msra.mxu0 0
        %1908 = vmatprep.subr.bf16.mxu0 0
        %1909 = vmatpush1.bf16.msra.mxu0 0
        %1910 = vmatprep.subr.bf16.mxu0 0
        %1911 = vmatpush1.bf16.msra.mxu0 0
        %1912 = vmatprep.subr.bf16.mxu0 0
        %1913 = vmatpush1.bf16.msra.mxu0 0
        %1914 = vmatprep.subr.bf16.mxu0 0
        %1915 = vmatpush1.bf16.msra.mxu0 0
        %1916 = vmatprep.subr.bf16.mxu0 0
        %1917 = vmatpush1.bf16.msra.mxu0 0
        %1918 = vmatprep.subr.bf16.mxu0 0
        %1919 = vmatpush1.bf16.msra.mxu0 0
        %1920 = vmatprep.subr.bf16.mxu0 0
        %1921 = vmatpush1.bf16.msra.mxu0 0
        %1922 = vmatprep.subr.bf16.mxu0 0
        %1923 = vmatpush1.bf16.msra.mxu0 0
        %1924 = vmatprep.subr.bf16.mxu0 0
        %1925 = vmatpush1.bf16.msra.mxu0 0
        %1926 = vmatprep.mubr.bf16.mxu0 0
        %1927 = vmatmul.mubr.bf16.gmra.mrb[0].mxu0 %v1892
        %v1928 = vpop.f32.mrb[0].mxu0
        %v1929 = vadd.f32 0.0, %v1928
        %v1930 = vpop.f32.mrb[0].mxu0
        %v1931 = vpop.f32.mrb[0].mxu0
        %v1932 = vadd.f32 0.0, %v1931
        %v1933 = vpop.f32.mrb[0].mxu0
        %1934 = vdwg.mxu0
        %1935 = vrot.lane.b32.xlu0 %v1013, 40
        %v1936 = vpop.permute.xlu0 %1935
        %v1939 = vsel %vm1115, %v1887, 0
        %1941 = vmatprep.subr.bf16.mxu0 0
        %1942 = vmatpush1.bf16.msra.mxu0 %v1936
        %1943 = vmatprep.subr.bf16.mxu0 0
        %1944 = vmatpush1.bf16.msra.mxu0 0
        %1945 = vmatprep.subr.bf16.mxu0 0
        %1946 = vmatpush1.bf16.msra.mxu0 0
        %1947 = vmatprep.subr.bf16.mxu0 0
        %1948 = vmatpush1.bf16.msra.mxu0 0
        %1949 = vmatprep.subr.bf16.mxu0 0
        %1950 = vmatpush1.bf16.msra.mxu0 0
        %1951 = vmatprep.subr.bf16.mxu0 0
        %1952 = vmatpush1.bf16.msra.mxu0 0
        %1953 = vmatprep.subr.bf16.mxu0 0
        %1954 = vmatpush1.bf16.msra.mxu0 0
        %1955 = vmatprep.subr.bf16.mxu0 0
        %1956 = vmatpush1.bf16.msra.mxu0 0
        %1957 = vmatprep.subr.bf16.mxu0 0
        %1958 = vmatpush1.bf16.msra.mxu0 0
        %1959 = vmatprep.subr.bf16.mxu0 0
        %1960 = vmatpush1.bf16.msra.mxu0 0
        %1961 = vmatprep.subr.bf16.mxu0 0
        %1962 = vmatpush1.bf16.msra.mxu0 0
        %1963 = vmatprep.subr.bf16.mxu0 0
        %1964 = vmatpush1.bf16.msra.mxu0 0
        %1965 = vmatprep.subr.bf16.mxu0 0
        %1966 = vmatpush1.bf16.msra.mxu0 0
        %1967 = vmatprep.subr.bf16.mxu0 0
        %1968 = vmatpush1.bf16.msra.mxu0 0
        %1969 = vmatprep.subr.bf16.mxu0 0
        %1970 = vmatpush1.bf16.msra.mxu0 0
        %1971 = vmatprep.subr.bf16.mxu0 0
        %1972 = vmatpush1.bf16.msra.mxu0 0
        %1973 = vmatprep.mubr.bf16.mxu0 0
        %1974 = vmatmul.mubr.bf16.gmra.mrb[0].mxu0 %v1939
        %v1975 = vpop.f32.mrb[0].mxu0
        %v1976 = vadd.f32 0.0, %v1975
        %v1977 = vpop.f32.mrb[0].mxu0
        %v1978 = vpop.f32.mrb[0].mxu0
        %v1979 = vadd.f32 0.0, %v1978
        %v1980 = vpop.f32.mrb[0].mxu0
        %1981 = vdwg.mxu0
        %1986 = vrot.lane.b32.xlu0 %v1445, 8
        %v1987 = vpop.permute.xlu0 %1986
        %1988 = vrot.lane.b32.xlu0 %v1448, 8
        %v1989 = vpop.permute.xlu0 %1988
        %1990 = vrot.lane.b32.xlu0 %v1492, 8
        %v1991 = vpop.permute.xlu0 %1990
        %1992 = vrot.lane.b32.xlu0 %v1495, 8
        %v1993 = vpop.permute.xlu0 %1992
        %2002 = vrot.lane.b32.xlu0 %v1687, 16
        %v2003 = vpop.permute.xlu0 %2002
        %2004 = vrot.lane.b32.xlu0 %v1690, 16
        %v2005 = vpop.permute.xlu0 %2004
        %2006 = vrot.lane.b32.xlu0 %v1734, 16
        %v2007 = vpop.permute.xlu0 %2006
        %2008 = vrot.lane.b32.xlu0 %v1737, 16
        %v2009 = vpop.permute.xlu0 %2008
        %2018 = vrot.lane.b32.xlu0 %v1929, 24
        %v2019 = vpop.permute.xlu0 %2018
        %2020 = vrot.lane.b32.xlu0 %v1932, 24
        %v2021 = vpop.permute.xlu0 %2020
        %2022 = vrot.lane.b32.xlu0 %v1976, 24
        %v2023 = vpop.permute.xlu0 %2022
        %2024 = vrot.lane.b32.xlu0 %v1979, 24
        %v2025 = vpop.permute.xlu0 %2024
        %v2030 = vsel %vm1017, %v1203, %v1987
        %v2031 = vsel %vm1017, %v1206, %v1989
        %v2032 = vsel %vm1017, %v1250, %v1991
        %v2033 = vsel %vm1017, %v1253, %v1993
        %v2034 = vsel %vm1115, %v2030, %v2003
        %v2035 = vsel %vm1115, %v2031, %v2005
        %v2036 = vsel %vm1115, %v2032, %v2007
        %v2037 = vsel %vm1115, %v2033, %v2009
        %vm2038 = vcmask 195584
        %v2039 = vsel %vm2038, %v2034, %v2019
        %v2040 = vsel %vm2038, %v2035, %v2021
        %v2041 = vsel %vm2038, %v2036, %v2023
        %v2042 = vsel %vm2038, %v2037, %v2025
        %v2043 = vpack.c.bf16 %v2040, %v2039
        %v2044 = vpack.c.bf16 %v2042, %v2041
        %v2045 = vld [vmem:[%s770] sm:$0xf]
        %v2046 = vld [vmem:[%s770 + $0x4] sm:$0xf]
        %v2047 = vld [vmem:[%s770 + $0x8] sm:$0xf]
        %v2048 = vld [vmem:[%s770 + $0xc] sm:$0xf]
        %v2049 = vld [vmem:[%s773] sm:$0x1]
        %v2051 = vlaneseq
        %v2052 = vshrl.u32 %v2051, 7
        %v2053 = vsub.s32 0, %v2052
        %v2054 = vrot.slane %v2049, %v2053
        %v2060 = vunpack.c.l.b16 %v2045
        %v2061 = vunpack.c.l.b16 %v2046
        %v2062 = vunpack.c.l.b16 %v2047
        %v2063 = vunpack.c.l.b16 %v2048
        %v2064 = vpack.c.b16 %v2061, %v2060
        %v2065 = vpack.c.b16 %v2063, %v2062
        %v2069 = vsel %vm858, %v2043, 0
        %v2072 = vsel %vm858, %v2044, 0
        %2074 = vmatprep.subr.bf16.mxu0 0
        %2075 = vmatpush1.bf16.msra.mxu0 %v2064
        %2076 = vmatprep.subr.bf16.mxu0 0
        %2077 = vmatpush1.bf16.msra.mxu0 %v2065
        %2078 = vmatprep.subr.bf16.mxu0 0
        %2079 = vmatpush1.bf16.msra.mxu0 0
        %2080 = vmatprep.subr.bf16.mxu0 0
        %2081 = vmatpush1.bf16.msra.mxu0 0
        %2082 = vmatprep.subr.bf16.mxu0 0
        %2083 = vmatpush1.bf16.msra.mxu0 0
        %2084 = vmatprep.subr.bf16.mxu0 0
        %2085 = vmatpush1.bf16.msra.mxu0 0
        %2086 = vmatprep.subr.bf16.mxu0 0
        %2087 = vmatpush1.bf16.msra.mxu0 0
        %2088 = vmatprep.subr.bf16.mxu0 0
        %2089 = vmatpush1.bf16.msra.mxu0 0
        %2090 = vmatprep.subr.bf16.mxu0 0
        %2091 = vmatpush1.bf16.msra.mxu0 0
        %2092 = vmatprep.subr.bf16.mxu0 0
        %2093 = vmatpush1.bf16.msra.mxu0 0
        %2094 = vmatprep.subr.bf16.mxu0 0
        %2095 = vmatpush1.bf16.msra.mxu0 0
        %2096 = vmatprep.subr.bf16.mxu0 0
        %2097 = vmatpush1.bf16.msra.mxu0 0
        %2098 = vmatprep.subr.bf16.mxu0 0
        %2099 = vmatpush1.bf16.msra.mxu0 0
        %2100 = vmatprep.subr.bf16.mxu0 0
        %2101 = vmatpush1.bf16.msra.mxu0 0
        %2102 = vmatprep.subr.bf16.mxu0 0
        %2103 = vmatpush1.bf16.msra.mxu0 0
        %2104 = vmatprep.subr.bf16.mxu0 0
        %2105 = vmatpush1.bf16.msra.mxu0 0
        %2106 = vmatprep.mubr.bf16.mxu0 0
        %2107 = vmatmul.mubr.bf16.gmra.mrb[0].mxu0 %v2069
        %v2108 = vpop.f32.mrb[0].mxu0
        %v2109 = vadd.f32 %v2054, %v2108
        %v2110 = vpop.f32.mrb[0].mxu0
        %v2111 = vpop.f32.mrb[0].mxu0
        %v2112 = vadd.f32 %v2054, %v2111
        %v2113 = vpop.f32.mrb[0].mxu0
        %2114 = vmatprep.mubr.bf16.mxu0 0
        %2115 = vmatmul.mubr.bf16.gmra.mrb[0].mxu0 %v2072
        %v2116 = vpop.f32.mrb[0].mxu0
        %v2117 = vadd.f32 %v2054, %v2116
        %v2118 = vpop.f32.mrb[0].mxu0
        %v2119 = vpop.f32.mrb[0].mxu0
        %v2120 = vadd.f32 %v2054, %v2119
        %v2121 = vpop.f32.mrb[0].mxu0
        %2122 = vdwg.mxu0
        %v2123 = vadd.f32 %v848, %v2109
        %v2124 = vadd.f32 %v849, %v2112
        %v2125 = vadd.f32 %v850, %v2117
        %v2126 = vadd.f32 %v851, %v2120
        %v2127 = vld [vmem:[%s776] sm:$0x1]
        %v2128 = vld [vmem:[%s779] sm:$0x1]
        %v2129 = vsel %vm858, %v2123, 0.0
        %2130 = vadd.xlane.f32.xlu0 %v2129
        %v2131 = vpop.xlane.xlu0 %2130
        %v2132 = vsel %vm858, %v2124, 0.0
        %2133 = vadd.xlane.f32.xlu0 %v2132
        %v2134 = vpop.xlane.xlu0 %2133
        %v2135 = vsel %vm858, %v2125, 0.0
        %2136 = vadd.xlane.f32.xlu0 %v2135
        %v2137 = vpop.xlane.xlu0 %2136
        %v2138 = vsel %vm858, %v2126, 0.0
        %2139 = vadd.xlane.f32.xlu0 %v2138
        %v2140 = vpop.xlane.xlu0 %2139
        %v2141 = vmul.f32 %v2131, %v871
        %v2142 = vmul.f32 %v2134, %v871
        %v2143 = vmul.f32 %v2137, %v871
        %v2144 = vmul.f32 %v2140, %v871
        %v2145 = vsub.f32 %v2123, %v2141
        %v2146 = vsub.f32 %v2124, %v2142
        %v2147 = vsub.f32 %v2125, %v2143
        %v2148 = vsub.f32 %v2126, %v2144
        %v2149 = vmul.f32 %v2145, %v2145
        %v2150 = vmul.f32 %v2146, %v2146
        %v2151 = vmul.f32 %v2147, %v2147
        %v2152 = vmul.f32 %v2148, %v2148
        %v2153 = vsel %vm858, %v2149, 0.0
        %2154 = vadd.xlane.f32.xlu0 %v2153
        %v2155 = vpop.xlane.xlu0 %2154
        %v2156 = vsel %vm858, %v2150, 0.0
        %2157 = vadd.xlane.f32.xlu0 %v2156
        %v2158 = vpop.xlane.xlu0 %2157
        %v2159 = vsel %vm858, %v2151, 0.0
        %2160 = vadd.xlane.f32.xlu0 %v2159
        %v2161 = vpop.xlane.xlu0 %2160
        %v2162 = vsel %vm858, %v2152, 0.0
        %2163 = vadd.xlane.f32.xlu0 %v2162
        %v2164 = vpop.xlane.xlu0 %2163
        %v2165 = vmul.f32 %v2155, %v871
        %v2166 = vmul.f32 %v2158, %v871
        %v2167 = vmul.f32 %v2161, %v871
        %v2168 = vmul.f32 %v2164, %v871
        %v2169 = vadd.f32 %v2165, 1e-05
        %v2170 = vadd.f32 %v2166, 1e-05
        %v2171 = vadd.f32 %v2167, 1e-05
        %v2172 = vadd.f32 %v2168, 1e-05
        %v2173 = vrsqrt.pop %v2169
        %v2174 = vrsqrt.pop %v2170
        %v2175 = vrsqrt.pop %v2171
        %v2176 = vrsqrt.pop %v2172
        %v2177 = vmul.f32 %v2145, %v2173
        %v2178 = vmul.f32 %v2146, %v2174
        %v2179 = vmul.f32 %v2147, %v2175
        %v2180 = vmul.f32 %v2148, %v2176
        %v2182 = vlaneseq
        %v2183 = vshrl.u32 %v2182, 7
        %v2184 = vsub.s32 0, %v2183
        %v2185 = vrot.slane %v2127, %v2184
        %v2187 = vmul.f32 %v2177, %v2185
        %v2188 = vmul.f32 %v2178, %v2185
        %v2189 = vmul.f32 %v2179, %v2185
        %v2190 = vmul.f32 %v2180, %v2185
        %v2192 = vlaneseq
        %v2193 = vshrl.u32 %v2192, 7
        %v2194 = vsub.s32 0, %v2193
        %v2195 = vrot.slane %v2128, %v2194
        %v2197 = vadd.f32 %v2187, %v2195
        %v2198 = vadd.f32 %v2188, %v2195
        %v2199 = vadd.f32 %v2189, %v2195
        %v2200 = vadd.f32 %v2190, %v2195
        %v2201 = vpack.c.bf16 %v2198, %v2197
        %v2202 = vpack.c.bf16 %v2200, %v2199
        %v2203 = vld [vmem:[%s784] sm:$0xf]
        %v2204 = vld [vmem:[%s784 + $0x4] sm:$0xf]
        %v2205 = vld [vmem:[%s784 + $0x8] sm:$0xf]
        %v2206 = vld [vmem:[%s784 + $0xc] sm:$0xf]
        %v2207 = vld [vmem:[%s787] sm:$0x1]
        %v2209 = vlaneseq
        %v2210 = vshrl.u32 %v2209, 7
        %v2211 = vsub.s32 0, %v2210
        %v2212 = vrot.slane %v2207, %v2211
        %v2218 = vunpack.c.l.b16 %v2203
        %v2219 = vunpack.c.l.b16 %v2204
        %v2220 = vunpack.c.l.b16 %v2205
        %v2221 = vunpack.c.l.b16 %v2206
        %v2222 = vpack.c.b16 %v2219, %v2218
        %v2223 = vpack.c.b16 %v2221, %v2220
        %v2227 = vsel %vm858, %v2201, 0
        %v2230 = vsel %vm858, %v2202, 0
        %2232 = vmatprep.subr.bf16.mxu0 0
        %2233 = vmatpush1.bf16.msra.mxu0 %v2222
        %2234 = vmatprep.subr.bf16.mxu0 0
        %2235 = vmatpush1.bf16.msra.mxu0 %v2223
        %2236 = vmatprep.subr.bf16.mxu0 0
        %2237 = vmatpush1.bf16.msra.mxu0 0
        %2238 = vmatprep.subr.bf16.mxu0 0
        %2239 = vmatpush1.bf16.msra.mxu0 0
        %2240 = vmatprep.subr.bf16.mxu0 0
        %2241 = vmatpush1.bf16.msra.mxu0 0
        %2242 = vmatprep.subr.bf16.mxu0 0
        %2243 = vmatpush1.bf16.msra.mxu0 0
        %2244 = vmatprep.subr.bf16.mxu0 0
        %2245 = vmatpush1.bf16.msra.mxu0 0
        %2246 = vmatprep.subr.bf16.mxu0 0
        %2247 = vmatpush1.bf16.msra.mxu0 0
        %2248 = vmatprep.subr.bf16.mxu0 0
        %2249 = vmatpush1.bf16.msra.mxu0 0
        %2250 = vmatprep.subr.bf16.mxu0 0
        %2251 = vmatpush1.bf16.msra.mxu0 0
        %2252 = vmatprep.subr.bf16.mxu0 0
        %2253 = vmatpush1.bf16.msra.mxu0 0
        %2254 = vmatprep.subr.bf16.mxu0 0
        %2255 = vmatpush1.bf16.msra.mxu0 0
        %2256 = vmatprep.subr.bf16.mxu0 0
        %2257 = vmatpush1.bf16.msra.mxu0 0
        %2258 = vmatprep.subr.bf16.mxu0 0
        %2259 = vmatpush1.bf16.msra.mxu0 0
        %2260 = vmatprep.subr.bf16.mxu0 0
        %2261 = vmatpush1.bf16.msra.mxu0 0
        %2262 = vmatprep.subr.bf16.mxu0 0
        %2263 = vmatpush1.bf16.msra.mxu0 0
        %2264 = vmatprep.mubr.bf16.mxu0 0
        %2265 = vmatmul.mubr.bf16.gmra.mrb[0].mxu0 %v2227
        %v2266 = vpop.f32.mrb[0].mxu0
        %v2267 = vadd.f32 %v2212, %v2266
        %v2268 = vpop.f32.mrb[0].mxu0
        %v2269 = vpop.f32.mrb[0].mxu0
        %v2270 = vadd.f32 %v2212, %v2269
        %v2271 = vpop.f32.mrb[0].mxu0
        %2272 = vmatprep.mubr.bf16.mxu0 0
        %2273 = vmatmul.mubr.bf16.gmra.mrb[0].mxu0 %v2230
        %v2274 = vpop.f32.mrb[0].mxu0
        %v2275 = vadd.f32 %v2212, %v2274
        %v2276 = vpop.f32.mrb[0].mxu0
        %v2277 = vpop.f32.mrb[0].mxu0
        %v2278 = vadd.f32 %v2212, %v2277
        %v2279 = vpop.f32.mrb[0].mxu0
        %2280 = vdwg.mxu0
        %v2281 = vmul.f32 %v2267, 0.5
        %v2282 = vmul.f32 %v2270, 0.5
        %v2283 = vmul.f32 %v2275, 0.5
        %v2284 = vmul.f32 %v2278, 0.5
        %v2285 = vmul.f32 %v2267, 0.70710677
        %v2286 = vmul.f32 %v2270, 0.70710677
        %v2287 = vmul.f32 %v2275, 0.70710677
        %v2288 = vmul.f32 %v2278, 0.70710677
        %vm2289 = vcmp.ge.f32.partialorder %v2285, 0.0
        %vm2290 = vcmp.ge.f32.partialorder %v2286, 0.0
        %vm2291 = vcmp.ge.f32.partialorder %v2287, 0.0
        %vm2292 = vcmp.ge.f32.partialorder %v2288, 0.0
        %v2293 = vsel %vm2289, 1.0, -1.0
        %v2294 = vsel %vm2290, 1.0, -1.0
        %v2295 = vsel %vm2291, 1.0, -1.0
        %v2296 = vsel %vm2292, 1.0, -1.0
        %v2297 = vand.u32 2147483647, %v2285
        %v2298 = vand.u32 2147483647, %v2286
        %v2299 = vand.u32 2147483647, %v2287
        %v2300 = vand.u32 2147483647, %v2288
        %v2301 = vmul.f32 %v2297, 0.3275911
        %v2302 = vmul.f32 %v2298, 0.3275911
        %v2303 = vmul.f32 %v2299, 0.3275911
        %v2304 = vmul.f32 %v2300, 0.3275911
        %v2305 = vadd.f32 %v2301, 1.0
        %v2306 = vadd.f32 %v2302, 1.0
        %v2307 = vadd.f32 %v2303, 1.0
        %v2308 = vadd.f32 %v2304, 1.0
        %v2309 = vrcp.pop %v2305
        %v2310 = vmul.f32 1.0, %v2309
        %v2311 = vrcp.pop %v2306
        %v2312 = vmul.f32 1.0, %v2311
        %v2313 = vrcp.pop %v2307
        %v2314 = vmul.f32 1.0, %v2313
        %v2315 = vrcp.pop %v2308
        %v2316 = vmul.f32 1.0, %v2315
        %v2317 = vmul.f32 %v2310, 1.0614054
        %v2318 = vmul.f32 %v2312, 1.0614054
        %v2319 = vmul.f32 %v2314, 1.0614054
        %v2320 = vmul.f32 %v2316, 1.0614054
        %v2321 = vadd.f32 %v2317, -1.4531521
        %v2322 = vadd.f32 %v2318, -1.4531521
        %v2323 = vadd.f32 %v2319, -1.4531521
        %v2324 = vadd.f32 %v2320, -1.4531521
        %v2325 = vmul.f32 %v2321, %v2310
        %v2326 = vmul.f32 %v2322, %v2312
        %v2327 = vmul.f32 %v2323, %v2314
        %v2328 = vmul.f32 %v2324, %v2316
        %v2329 = vadd.f32 %v2325, 1.4214138
        %v2330 = vadd.f32 %v2326, 1.4214138
        %v2331 = vadd.f32 %v2327, 1.4214138
        %v2332 = vadd.f32 %v2328, 1.4214138
        %v2333 = vmul.f32 %v2329, %v2310
        %v2334 = vmul.f32 %v2330, %v2312
        %v2335 = vmul.f32 %v2331, %v2314
        %v2336 = vmul.f32 %v2332, %v2316
        %v2337 = vadd.f32 %v2333, -0.28449672
        %v2338 = vadd.f32 %v2334, -0.28449672
        %v2339 = vadd.f32 %v2335, -0.28449672
        %v2340 = vadd.f32 %v2336, -0.28449672
        %v2341 = vmul.f32 %v2337, %v2310
        %v2342 = vmul.f32 %v2338, %v2312
        %v2343 = vmul.f32 %v2339, %v2314
        %v2344 = vmul.f32 %v2340, %v2316
        %v2345 = vadd.f32 %v2341, 0.2548296
        %v2346 = vadd.f32 %v2342, 0.2548296
        %v2347 = vadd.f32 %v2343, 0.2548296
        %v2348 = vadd.f32 %v2344, 0.2548296
        %v2349 = vmul.f32 %v2345, %v2310
        %v2350 = vmul.f32 %v2346, %v2312
        %v2351 = vmul.f32 %v2347, %v2314
        %v2352 = vmul.f32 %v2348, %v2316
        %v2353 = vmul.f32 %v2297, %v2297
        %v2354 = vmul.f32 %v2298, %v2298
        %v2355 = vmul.f32 %v2299, %v2299
        %v2356 = vmul.f32 %v2300, %v2300
        %v2357 = vsub.f32 0.0, %v2353
        %v2358 = vsub.f32 0.0, %v2354
        %v2359 = vsub.f32 0.0, %v2355
        %v2360 = vsub.f32 0.0, %v2356
        %v2361 = vmul.f32 %v2357, 1.442695
        %v2362 = vpow.pop %v2361
        %v2363 = vmul.f32 %v2358, 1.442695
        %v2364 = vpow.pop %v2363
        %v2365 = vmul.f32 %v2359, 1.442695
        %v2366 = vpow.pop %v2365
        %v2367 = vmul.f32 %v2360, 1.442695
        %v2368 = vpow.pop %v2367
        %v2369 = vmul.f32 %v2349, %v2362
        %v2370 = vmul.f32 %v2350, %v2364
        %v2371 = vmul.f32 %v2351, %v2366
        %v2372 = vmul.f32 %v2352, %v2368
        %v2373 = vsub.f32 1.0, %v2369
        %v2374 = vsub.f32 1.0, %v2370
        %v2375 = vsub.f32 1.0, %v2371
        %v2376 = vsub.f32 1.0, %v2372
        %v2377 = vmul.f32 %v2293, %v2373
        %v2378 = vmul.f32 %v2294, %v2374
        %v2379 = vmul.f32 %v2295, %v2375
        %v2380 = vmul.f32 %v2296, %v2376
        %v2381 = vadd.f32 %v2377, 1.0
        %v2382 = vadd.f32 %v2378, 1.0
        %v2383 = vadd.f32 %v2379, 1.0
        %v2384 = vadd.f32 %v2380, 1.0
        %v2385 = vmul.f32 %v2281, %v2381
        %v2386 = vmul.f32 %v2282, %v2382
        %v2387 = vmul.f32 %v2283, %v2383
        %v2388 = vmul.f32 %v2284, %v2384
        %v2389 = vpack.c.bf16 %v2386, %v2385
        %v2390 = vpack.c.bf16 %v2388, %v2387
        %v2391 = vld [vmem:[%s792] sm:$0xf]
        %v2392 = vld [vmem:[%s792 + $0x4] sm:$0xf]
        %v2393 = vld [vmem:[%s792 + $0x8] sm:$0xf]
        %v2394 = vld [vmem:[%s792 + $0xc] sm:$0xf]
        %v2395 = vld [vmem:[%s792 + $0x10] sm:$0xf]
        %v2396 = vld [vmem:[%s792 + $0x14] sm:$0xf]
        %v2397 = vld [vmem:[%s792 + $0x18] sm:$0xf]
        %v2398 = vld [vmem:[%s792 + $0x1c] sm:$0xf]
        %v2399 = vld [vmem:[%s792 + $0x20] sm:$0xf]
        %v2400 = vld [vmem:[%s792 + $0x24] sm:$0xf]
        %v2401 = vld [vmem:[%s792 + $0x28] sm:$0xf]
        %v2402 = vld [vmem:[%s792 + $0x2c] sm:$0xf]
        %v2403 = vld [vmem:[%s792 + $0x30] sm:$0xf]
        %v2404 = vld [vmem:[%s792 + $0x34] sm:$0xf]
        %v2405 = vld [vmem:[%s792 + $0x38] sm:$0xf]
        %v2406 = vld [vmem:[%s792 + $0x3c] sm:$0xf]
        %v2407 = vld [vmem:[%s795] sm:$0x1]
        %v2409 = vlaneseq
        %v2410 = vshrl.u32 %v2409, 7
        %v2411 = vsub.s32 0, %v2410
        %v2412 = vrot.slane %v2407, %v2411
        %v2430 = vunpack.c.l.b16 %v2391
        %v2431 = vunpack.c.l.b16 %v2392
        %v2432 = vunpack.c.l.b16 %v2393
        %v2433 = vunpack.c.l.b16 %v2394
        %v2434 = vunpack.c.l.b16 %v2395
        %v2435 = vunpack.c.l.b16 %v2396
        %v2436 = vunpack.c.l.b16 %v2397
        %v2437 = vunpack.c.l.b16 %v2398
        %v2438 = vunpack.c.l.b16 %v2399
        %v2439 = vunpack.c.l.b16 %v2400
        %v2440 = vunpack.c.l.b16 %v2401
        %v2441 = vunpack.c.l.b16 %v2402
        %v2442 = vunpack.c.l.b16 %v2403
        %v2443 = vunpack.c.l.b16 %v2404
        %v2444 = vunpack.c.l.b16 %v2405
        %v2445 = vunpack.c.l.b16 %v2406
        %v2446 = vpack.c.b16 %v2431, %v2430
        %v2447 = vpack.c.b16 %v2433, %v2432
        %v2448 = vpack.c.b16 %v2435, %v2434
        %v2449 = vpack.c.b16 %v2437, %v2436
        %v2450 = vpack.c.b16 %v2439, %v2438
        %v2451 = vpack.c.b16 %v2441, %v2440
        %v2452 = vpack.c.b16 %v2443, %v2442
        %v2453 = vpack.c.b16 %v2445, %v2444
        %2462 = vmatprep.subr.bf16.mxu0 0
        %2463 = vmatpush1.bf16.msra.mxu0 %v2446
        %2464 = vmatprep.subr.bf16.mxu0 0
        %2465 = vmatpush1.bf16.msra.mxu0 %v2447
        %2466 = vmatprep.subr.bf16.mxu0 0
        %2467 = vmatpush1.bf16.msra.mxu0 %v2448
        %2468 = vmatprep.subr.bf16.mxu0 0
        %2469 = vmatpush1.bf16.msra.mxu0 %v2449
        %2470 = vmatprep.subr.bf16.mxu0 0
        %2471 = vmatpush1.bf16.msra.mxu0 %v2450
        %2472 = vmatprep.subr.bf16.mxu0 0
        %2473 = vmatpush1.bf16.msra.mxu0 %v2451
        %2474 = vmatprep.subr.bf16.mxu0 0
        %2475 = vmatpush1.bf16.msra.mxu0 %v2452
        %2476 = vmatprep.subr.bf16.mxu0 0
        %2477 = vmatpush1.bf16.msra.mxu0 %v2453
        %2478 = vmatprep.subr.bf16.mxu0 0
        %2479 = vmatpush1.bf16.msra.mxu0 0
        %2480 = vmatprep.subr.bf16.mxu0 0
        %2481 = vmatpush1.bf16.msra.mxu0 0
        %2482 = vmatprep.subr.bf16.mxu0 0
        %2483 = vmatpush1.bf16.msra.mxu0 0
        %2484 = vmatprep.subr.bf16.mxu0 0
        %2485 = vmatpush1.bf16.msra.mxu0 0
        %2486 = vmatprep.subr.bf16.mxu0 0
        %2487 = vmatpush1.bf16.msra.mxu0 0
        %2488 = vmatprep.subr.bf16.mxu0 0
        %2489 = vmatpush1.bf16.msra.mxu0 0
        %2490 = vmatprep.subr.bf16.mxu0 0
        %2491 = vmatpush1.bf16.msra.mxu0 0
        %2492 = vmatprep.subr.bf16.mxu0 0
        %2493 = vmatpush1.bf16.msra.mxu0 0
        %2494 = vmatprep.mubr.bf16.mxu0 0
        %2495 = vmatmul.mubr.bf16.gmra.mrb[0].mxu0 %v2389
        %v2496 = vpop.f32.mrb[0].mxu0
        %v2497 = vadd.f32 %v2412, %v2496
        %v2498 = vpop.f32.mrb[0].mxu0
        %v2499 = vpop.f32.mrb[0].mxu0
        %v2500 = vadd.f32 %v2412, %v2499
        %v2501 = vpop.f32.mrb[0].mxu0
        %2502 = vmatprep.mubr.bf16.mxu0 0
        %2503 = vmatmul.mubr.bf16.gmra.mrb[0].mxu0 %v2390
        %v2504 = vpop.f32.mrb[0].mxu0
        %v2505 = vadd.f32 %v2412, %v2504
        %v2506 = vpop.f32.mrb[0].mxu0
        %v2507 = vpop.f32.mrb[0].mxu0
        %v2508 = vadd.f32 %v2412, %v2507
        %v2509 = vpop.f32.mrb[0].mxu0
        %2510 = vdwg.mxu0
        %v2511 = vadd.f32 %v2123, %v2497
        %v2512 = vadd.f32 %v2124, %v2500
        %v2513 = vadd.f32 %v2125, %v2505
        %v2514 = vadd.f32 %v2126, %v2508
        %2515 = vst.msk [vmem:[#allocation2] sm:$0xff] %vm858, %v2511
        %2516 = vst.msk [vmem:[#allocation2 + $0x8] sm:$0xff] %vm858, %v2512
        %2517 = vst.msk [vmem:[#allocation2 + $0x10] sm:$0xff] %vm858, %v2513
        %2518 = vst.msk [vmem:[#allocation2 + $0x18] sm:$0xff] %vm858, %v2514
        %p2519 = scmp.eq.s32.totalorder %s36, 1
        // Predicated region
        $region97: #{tpu_custom_call.1} parent=91 // pred_check
          %p2520 = pneg %p2519
        $region98: #{tpu_custom_call.1} parent=91 // pred_check_branch
          %2522 = sbr.rel (%p2520) target = $region100
        $region99: #{tpu_custom_call.1} parent=91 // pred_region
          %v2523 = vld [vmem:[%s745] sm:$0xff]
          %v2524 = vld [vmem:[%s745 + $0x8] sm:$0xff]
          %v2525 = vld [vmem:[%s745 + $0x10] sm:$0xff]
          %v2526 = vld [vmem:[%s745 + $0x18] sm:$0xff]
          %s2527 = sld [smem:[#allocation4]]
          %v2528 = vstv %s2527
          %v2529 = vmul.f32 %v2528, %v2511
          %v2530 = vmul.f32 %v2528, %v2512
          %v2531 = vmul.f32 %v2528, %v2513
          %v2532 = vmul.f32 %v2528, %v2514
          %v2533 = vadd.f32 %v2523, %v2529
          %v2534 = vadd.f32 %v2524, %v2530
          %v2535 = vadd.f32 %v2525, %v2531
          %v2536 = vadd.f32 %v2526, %v2532
          %v2537 = vld [vmem:[%s16] sm:$0x1]
          %v2538 = vld [vmem:[%s17] sm:$0x1]
          %v2539 = vsel %vm858, %v2533, 0.0
          %2540 = vadd.xlane.f32.xlu0 %v2539
          %v2541 = vpop.xlane.xlu0 %2540
          %v2542 = vsel %vm858, %v2534, 0.0
          %2543 = vadd.xlane.f32.xlu0 %v2542
          %v2544 = vpop.xlane.xlu0 %2543
          %v2545 = vsel %vm858, %v2535, 0.0
          %2546 = vadd.xlane.f32.xlu0 %v2545
          %v2547 = vpop.xlane.xlu0 %2546
          %v2548 = vsel %vm858, %v2536, 0.0
          %2549 = vadd.xlane.f32.xlu0 %v2548
          %v2550 = vpop.xlane.xlu0 %2549
          %v2551 = vmul.f32 %v2541, %v871
          %v2552 = vmul.f32 %v2544, %v871
          %v2553 = vmul.f32 %v2547, %v871
          %v2554 = vmul.f32 %v2550, %v871
          %v2555 = vsub.f32 %v2533, %v2551
          %v2556 = vsub.f32 %v2534, %v2552
          %v2557 = vsub.f32 %v2535, %v2553
          %v2558 = vsub.f32 %v2536, %v2554
          %v2559 = vmul.f32 %v2555, %v2555
          %v2560 = vmul.f32 %v2556, %v2556
          %v2561 = vmul.f32 %v2557, %v2557
          %v2562 = vmul.f32 %v2558, %v2558
          %v2563 = vsel %vm858, %v2559, 0.0
          %2564 = vadd.xlane.f32.xlu0 %v2563
          %v2565 = vpop.xlane.xlu0 %2564
          %v2566 = vsel %vm858, %v2560, 0.0
          %2567 = vadd.xlane.f32.xlu0 %v2566
          %v2568 = vpop.xlane.xlu0 %2567
          %v2569 = vsel %vm858, %v2561, 0.0
          %2570 = vadd.xlane.f32.xlu0 %v2569
          %v2571 = vpop.xlane.xlu0 %2570
          %v2572 = vsel %vm858, %v2562, 0.0
          %2573 = vadd.xlane.f32.xlu0 %v2572
          %v2574 = vpop.xlane.xlu0 %2573
          %v2575 = vmul.f32 %v2565, %v871
          %v2576 = vmul.f32 %v2568, %v871
          %v2577 = vmul.f32 %v2571, %v871
          %v2578 = vmul.f32 %v2574, %v871
          %v2579 = vadd.f32 %v2575, 1e-05
          %v2580 = vadd.f32 %v2576, 1e-05
          %v2581 = vadd.f32 %v2577, 1e-05
          %v2582 = vadd.f32 %v2578, 1e-05
          %v2583 = vrsqrt.pop %v2579
          %v2584 = vrsqrt.pop %v2580
          %v2585 = vrsqrt.pop %v2581
          %v2586 = vrsqrt.pop %v2582
          %v2587 = vmul.f32 %v2555, %v2583
          %v2588 = vmul.f32 %v2556, %v2584
          %v2589 = vmul.f32 %v2557, %v2585
          %v2590 = vmul.f32 %v2558, %v2586
          %v2592 = vlaneseq
          %v2593 = vshrl.u32 %v2592, 7
          %v2594 = vsub.s32 0, %v2593
          %v2595 = vrot.slane %v2537, %v2594
          %v2597 = vmul.f32 %v2587, %v2595
          %v2598 = vmul.f32 %v2588, %v2595
          %v2599 = vmul.f32 %v2589, %v2595
          %v2600 = vmul.f32 %v2590, %v2595
          %v2602 = vlaneseq
          %v2603 = vshrl.u32 %v2602, 7
          %v2604 = vsub.s32 0, %v2603
          %v2605 = vrot.slane %v2538, %v2604
          %v2607 = vadd.f32 %v2597, %v2605
          %v2608 = vadd.f32 %v2598, %v2605
          %v2609 = vadd.f32 %v2599, %v2605
          %v2610 = vadd.f32 %v2600, %v2605
          %2611 = vst.msk [vmem:[#allocation5] sm:$0xff] %vm858, %v2607
          %2612 = vst.msk [vmem:[#allocation5 + $0x8] sm:$0xff] %vm858, %v2608
          %2613 = vst.msk [vmem:[#allocation5 + $0x10] sm:$0xff] %vm858, %v2609
          %2614 = vst.msk [vmem:[#allocation5 + $0x18] sm:$0xff] %vm858, %v2610
        $region100: #{tpu_custom_call.1} parent=91 // pred_fallthru
          _
        // Predicated region
        $region101: #{tpu_custom_call.1} parent=91 // pred_check
          %p2615 = pneg %p509
        $region102: #{tpu_custom_call.1} parent=91 // pred_check_branch
          %2617 = sbr.rel (%p2615) target = $region104
        $region103: #{tpu_custom_call.1} parent=91 // pred_region
          %s2618 = smul.u32 2, %s35
          %s2620 = ssub.s32 512, 512
          %2621 = vsyncadd [#allocation6], %s2620
          %s2622 = smul.addr %s2618, 2
          %s2623 = smul.addr %s2622, 128
          %s2624 = scalar_lea.hbm %s18, %s2623
          %s2625 = sshll.u32 [#allocation5], 4
          %s2626 = int_to_ptr.vmem [resolvable:$true] %s2625
          %2631 = dma.vmem_to_hbm [thread:$0]  %s2626, 512, %s2624, [#allocation6], 128, 128, 8
        $region104: #{tpu_custom_call.1} parent=91 // pred_fallthru
          _
        // Predicated region
        $region105: #{tpu_custom_call.1} parent=91 // pred_check
          %p2632 = pneg %p509
        $region106: #{tpu_custom_call.1} parent=91 // pred_check_branch
          %2634 = sbr.rel (%p2632) target = $region108
        $region107: #{tpu_custom_call.1} parent=91 // pred_region
          %2635 = dma.done [#allocation6], 512
        $region108: #{tpu_custom_call.1} parent=91 // pred_fallthru
          _
      $region92: #{tpu_custom_call.1} parent=5 // pred_fallthru
        _
      %p2636 = scmp.le.s32.totalorder 2, %s26
      // Predicated region
      $region109: #{tpu_custom_call.1} parent=5 // pred_check
        %p2637 = pneg %p2636
      $region110: #{tpu_custom_call.1} parent=5 // pred_check_branch
        %2639 = sbr.rel (%p2637) target = $region112
      $region111: #{tpu_custom_call.1} parent=5 // pred_region
        %s2640 = ssub.s32 %s26, 2
      $region112: #{tpu_custom_call.1} parent=5 // pred_fallthru
        _
    $region6: #{tpu_custom_call.1} parent=1 // loop_footer
      %s30 = sadd.s32 1, %s26
    $region7: #{tpu_custom_call.1} parent=1 // loop_footer_branch
      %25 = sbr.rel target = $region3
    $region8: #{tpu_custom_call.1} parent=1 // loop_exit
      _
    %2641 = vsyncpa [#allocation6], 1
    %s2642 = scalar_lea.sflag [#allocation6], 1
    %2643 = vsyncpa %s2642, 1

</llo_original>
